<compile_context>
chip_gen: v6e
topology: v6e:2x2x1
jax: 0.10.0
libtpu: 0.0.40
codegen_flags: <defaults>
</compile_context>

<pallas_src>
import functools

import jax
import jax.numpy as jnp
from jax.experimental import pallas as pl
from jax.experimental.pallas import tpu as pltpu


# ----------------------------- tile selection --------------------------------

_TM_PREF = 256          # preferred token tile (multiple of 8); cdiv-masked


def _tile_m(M):
    """Token-dim tile: full dim if small, else fixed 256 with cdiv masking."""
    return M if M <= _TM_PREF else _TM_PREF


def _pick_div(dim, cap):
    """Largest multiple of 128 <= cap that divides `dim`; else the full dim
    (always legal).  Used for N / K; K *must* divide exactly so garbage in a
    partial contraction block can never pollute the accumulator."""
    c = (min(cap, dim) // 128) * 128
    while c >= 128:
        if dim % c == 0:
            return c
        c -= 128
    return dim


def _round_up(x, m):
    return ((x + m - 1) // m) * m


# ----------------------------- Pallas kernels --------------------------------

def _matmul_kernel(*refs, act, has_res):
    """Tiled matmul with K-axis f32 accumulator; bias / activation / residual
    are fused into the finalize step (last K block)."""
    if has_res:
        x_ref, w_ref, b_ref, r_ref, o_ref, acc_ref = refs
    else:
        x_ref, w_ref, b_ref, o_ref, acc_ref = refs
        r_ref = None
    k = pl.program_id(2)

    @pl.when(k == 0)
    def _():
        acc_ref[...] = jnp.zeros_like(acc_ref)

    acc_ref[...] += jnp.dot(x_ref[...].astype(jnp.bfloat16),
                            w_ref[...],
                            preferred_element_type=jnp.float32)

    @pl.when(k == pl.num_programs(2) - 1)
    def _():
        y = acc_ref[...] + b_ref[...]
        if act == "quick_gelu":
            y16 = y.astype(jnp.bfloat16)          # bf16 sigmoid -> EUP bf16 path
            y = y16 * jax.nn.sigmoid(1.702 * y16)
        if has_res:
            y = y + r_ref[...]
        o_ref[...] = y.astype(o_ref.dtype)


def linear(x, w, b2d, *, act=None, residual=None, out_dtype=jnp.float32):
    """x: (M, K), w: (K, N) bf16, b2d: (1, N) f32 -> (M, N) out_dtype."""
    M, K = x.shape
    N = w.shape[1]
    tm = _tile_m(M)
    tn = _pick_div(N, 256)
    tk = _pick_div(K, 512)
    grid = (pl.cdiv(M, tm), N // tn, K // tk)

    in_specs = [
        pl.BlockSpec((tm, tk), lambda i, j, k: (i, k)),
        pl.BlockSpec((tk, tn), lambda i, j, k: (k, j)),
        pl.BlockSpec((1, tn), lambda i, j, k: (0, j)),
    ]
    args = [x, w, b2d]
    if residual is not None:
        in_specs.append(pl.BlockSpec((tm, tn), lambda i, j, k: (i, j)))
        args.append(residual)

    kernel = functools.partial(_matmul_kernel, act=act,
                               has_res=residual is not None)
    return pl.pallas_call(
        kernel,
        grid=grid,
        in_specs=in_specs,
        out_specs=pl.BlockSpec((tm, tn), lambda i, j, k: (i, j)),
        out_shape=jax.ShapeDtypeStruct((M, N), out_dtype),
        scratch_shapes=[pltpu.VMEM((tm, tn), jnp.float32)],
        compiler_params=pltpu.CompilerParams(
            dimension_semantics=("parallel", "parallel", "arbitrary")),
    )(*args)


def _ln_matmul_kernel(x_ref, g_ref, bln_ref, w_ref, b_ref, o_ref, xn_ref,
                      *, eps, act):
    """LayerNorm fused into its consumer matmul.  The normalized (bf16) row
    tile is cached in VMEM scratch and only recomputed on the first N tile."""
    @pl.when(pl.program_id(1) == 0)
    def _():
        x = x_ref[...].astype(jnp.float32)
        mean = jnp.mean(x, axis=-1, keepdims=True)
        var = jnp.mean(jnp.square(x - mean), axis=-1, keepdims=True)
        xn = (x - mean) * jax.lax.rsqrt(var + eps) * g_ref[...] + bln_ref[...]
        xn_ref[...] = xn.astype(jnp.bfloat16)

    y = jnp.dot(xn_ref[...], w_ref[...],
                preferred_element_type=jnp.float32) + b_ref[...]
    if act == "quick_gelu":
        y16 = y.astype(jnp.bfloat16)
        y = y16 * jax.nn.sigmoid(1.702 * y16)
    o_ref[...] = y.astype(o_ref.dtype)


def ln_linear(x, g2d, bln2d, w, b2d, *, act=None, eps=1e-5,
              out_dtype=jnp.float32):
    """layernorm(x) @ w + b with optional fused quick-GELU.  K kept whole so
    the LN statistics see the full hidden dim; the normalized tile stays
    VMEM-resident (bf16 scratch) across the inner N-tile loop."""
    M, K = x.shape
    N = w.shape[1]
    tm = _tile_m(M)
    tn = _pick_div(N, 256)
    grid = (pl.cdiv(M, tm), N // tn)

    return pl.pallas_call(
        functools.partial(_ln_matmul_kernel, eps=eps, act=act),
        grid=grid,
        in_specs=[
            pl.BlockSpec((tm, K), lambda i, j: (i, 0)),
            pl.BlockSpec((1, K), lambda i, j: (0, 0)),
            pl.BlockSpec((1, K), lambda i, j: (0, 0)),
            pl.BlockSpec((K, tn), lambda i, j: (0, j)),
            pl.BlockSpec((1, tn), lambda i, j: (0, j)),
        ],
        out_specs=pl.BlockSpec((tm, tn), lambda i, j: (i, j)),
        out_shape=jax.ShapeDtypeStruct((M, N), out_dtype),
        scratch_shapes=[pltpu.VMEM((tm, K), jnp.bfloat16)],
        # N axis "arbitrary": the LN cache (written at j==0) must never be
        # split across cores; the M axis is the parallel one.
        compiler_params=pltpu.CompilerParams(
            dimension_semantics=("parallel", "arbitrary")),
    )(x, g2d, bln2d, w, b2d)


def _layernorm_kernel(x_ref, g_ref, b_ref, o_ref, *, eps):
    x = x_ref[...].astype(jnp.float32)
    mean = jnp.mean(x, axis=-1, keepdims=True)
    var = jnp.mean(jnp.square(x - mean), axis=-1, keepdims=True)
    o_ref[...] = ((x - mean) * jax.lax.rsqrt(var + eps) * g_ref[...]
                  + b_ref[...]).astype(o_ref.dtype)


def layernorm(x, g2d, b2d, eps=1e-5):
    """Standalone tiled layernorm (post_layernorm on the pooled CLS rows)."""
    M, D = x.shape
    tm = _tile_m(M)
    return pl.pallas_call(
        functools.partial(_layernorm_kernel, eps=eps),
        grid=(pl.cdiv(M, tm),),
        in_specs=[pl.BlockSpec((tm, D), lambda i: (i, 0)),
                  pl.BlockSpec((1, D), lambda i: (0, 0)),
                  pl.BlockSpec((1, D), lambda i: (0, 0))],
        out_specs=pl.BlockSpec((tm, D), lambda i: (i, 0)),
        out_shape=jax.ShapeDtypeStruct((M, D), jnp.float32),
        compiler_params=pltpu.CompilerParams(
            dimension_semantics=("parallel",)),
    )(x, g2d, b2d)


def _embed_ln_kernel(hid_ref, pos_ref, g_ref, b_ref, o_ref, *, eps):
    """pre_layrnorm fused with the positional-embedding add (per batch elem)."""
    x = hid_ref[...].astype(jnp.float32) + pos_ref[...].astype(jnp.float32)
    mean = jnp.mean(x, axis=-1, keepdims=True)
    var = jnp.mean(jnp.square(x - mean), axis=-1, keepdims=True)
    o_ref[...] = ((x - mean) * jax.lax.rsqrt(var + eps) * g_ref[...]
                  + b_ref[...]).astype(o_ref.dtype)


def embed_ln(hidden, pos, g2d, b2d, eps=1e-5):
    """hidden: (B, S, D), pos: (S, D) -> layernorm(hidden + pos) f32."""
    B, S, D = hidden.shape
    return pl.pallas_call(
        functools.partial(_embed_ln_kernel, eps=eps),
        grid=(B,),
        in_specs=[pl.BlockSpec((None, S, D), lambda b: (b, 0, 0)),
                  pl.BlockSpec((S, D), lambda b: (0, 0)),
                  pl.BlockSpec((1, D), lambda b: (0, 0)),
                  pl.BlockSpec((1, D), lambda b: (0, 0))],
        out_specs=pl.BlockSpec((None, S, D), lambda b: (b, 0, 0)),
        out_shape=jax.ShapeDtypeStruct((B, S, D), jnp.float32),
        compiler_params=pltpu.CompilerParams(
            dimension_semantics=("parallel",)),
    )(hidden, pos, g2d, b2d)


def _attention_kernel(q_ref, k_ref, v_ref, o_ref, *, G, hd):
    """One (batch, head-group) step.  Scale already folded into the Q weights.
    All heads of the group are written back with a single lane-dense store."""
    outs = []
    for h in range(G):                         # G is small (2 for real CLIP)
        sl = slice(h * hd, (h + 1) * hd)
        q = q_ref[:, sl].astype(jnp.bfloat16)
        k = k_ref[:, sl].astype(jnp.bfloat16)
        s = jax.lax.dot_general(               # q @ k^T without a transpose
            q, k, (((1,), (1,)), ((), ())),
            preferred_element_type=jnp.float32)         # (S, S) f32
        m = jnp.max(s, axis=-1, keepdims=True)
        p = jnp.exp(s - m)
        denom = jnp.sum(p, axis=-1, keepdims=True)
        p = p * pl.reciprocal(denom, approx=True)       # EUP slot
        o = jnp.dot(p.astype(jnp.bfloat16),
                    v_ref[:, sl].astype(jnp.bfloat16),
                    preferred_element_type=jnp.float32)  # (S, hd)
        outs.append(o)
    o_ref[...] = jnp.concatenate(outs, axis=-1).astype(o_ref.dtype)


def attention(qkv, *, heads):
    """qkv: (B, S, 3*D) bf16 (head-major Q|K|V) -> (B, S, D) bf16."""
    B, S, threeD = qkv.shape
    D = threeD // 3
    hd = D // heads
    # Largest head group whose width is <= 128 lanes (2 heads for hd=64).
    G = 1
    for g in range(heads, 0, -1):
        if heads % g == 0 and g * hd <= 128:
            G = g
            break
    W = G * hd
    n_groups = heads // G

    return pl.pallas_call(
        functools.partial(_attention_kernel, G=G, hd=hd),
        grid=(B, n_groups),
        in_specs=[
            pl.BlockSpec((None, S, W), lambda b, g: (b, 0, g)),
            pl.BlockSpec((None, S, W), lambda b, g: (b, 0, n_groups + g)),
            pl.BlockSpec((None, S, W), lambda b, g: (b, 0, 2 * n_groups + g)),
        ],
        out_specs=pl.BlockSpec((None, S, W), lambda b, g: (b, 0, g)),
        out_shape=jax.ShapeDtypeStruct((B, S, D), jnp.bfloat16),
        compiler_params=pltpu.CompilerParams(
            dimension_semantics=("parallel", "parallel")),
    )(qkv, qkv, qkv)


# ------------------------------- Parameters ----------------------------------

def init_params(key, *, C, P, D, mlp_dim, layers, num_patches):
    """PyTorch-style parameter shapes (as in CLIPVisionModel)."""
    S = num_patches + 1

    def nrm(k, shape, std=0.02):
        return std * jax.random.normal(k, shape, dtype=jnp.float32)

    keys = iter(jax.random.split(key, 8 + layers * 8))
    params = {
        "patch_w": nrm(next(keys), (D, C * P * P)),   # conv(C->D, k=P, s=P), no bias
        "class_emb": nrm(next(keys), (D,)),
        "pos_emb": nrm(next(keys), (S, D)),
        "pre_ln_g": jnp.ones((D,), jnp.float32),
        "pre_ln_b": jnp.zeros((D,), jnp.float32),
        "post_ln_g": jnp.ones((D,), jnp.float32),
        "post_ln_b": jnp.zeros((D,), jnp.float32),
        "layers": [],
    }
    for _ in range(layers):
        lyr = {
            "ln1_g": jnp.ones((D,), jnp.float32),
            "ln1_b": jnp.zeros((D,), jnp.float32),
            "q_w": nrm(next(keys), (D, D)), "q_b": jnp.zeros((D,), jnp.float32),
            "k_w": nrm(next(keys), (D, D)), "k_b": jnp.zeros((D,), jnp.float32),
            "v_w": nrm(next(keys), (D, D)), "v_b": jnp.zeros((D,), jnp.float32),
            "o_w": nrm(next(keys), (D, D)), "o_b": jnp.zeros((D,), jnp.float32),
            "ln2_g": jnp.ones((D,), jnp.float32),
            "ln2_b": jnp.zeros((D,), jnp.float32),
            "fc1_w": nrm(next(keys), (D, mlp_dim)),
            "fc1_b": jnp.zeros((mlp_dim,), jnp.float32),
            "fc2_w": nrm(next(keys), (mlp_dim, D)),
            "fc2_b": jnp.zeros((D,), jnp.float32),
        }
        params["layers"].append(lyr)
    return params


def prepare_params(raw, *, C, P, heads):
    """One-time layout prep hoisted out of the forward pass: transpose + pad
    the patch conv weight to a x128 contraction dim, fold the attention scale
    into Q, fuse Q/K/V into one (D, 3D) bf16 matrix, reshape biases/LN params
    to (1, N), cast matmul weights to bf16."""
    D = raw["class_emb"].shape[0]
    hd = D // heads
    scale = float(hd) ** -0.5
    CPP = C * P * P
    Kp = _round_up(CPP, 128)

    patch_w = raw["patch_w"].T                    # (CPP, D)
    if Kp != CPP:
        patch_w = jnp.pad(patch_w, ((0, Kp - CPP), (0, 0)))
    prep = {
        "patch_w": patch_w.astype(jnp.bfloat16),  # (Kp, D)
        "patch_b": jnp.zeros((1, D), jnp.float32),
        "class_emb": raw["class_emb"],
        "pos_emb": raw["pos_emb"],
        "pre_ln_g": raw["pre_ln_g"].reshape(1, D),
        "pre_ln_b": raw["pre_ln_b"].reshape(1, D),
        "post_ln_g": raw["post_ln_g"].reshape(1, D),
        "post_ln_b": raw["post_ln_b"].reshape(1, D),
        "layers": [],
    }
    for lyr in raw["layers"]:
        mlp_dim = lyr["fc1_w"].shape[1]
        prep["layers"].append({
            "ln1_g": lyr["ln1_g"].reshape(1, D),
            "ln1_b": lyr["ln1_b"].reshape(1, D),
            "qkv_w": jnp.concatenate(
                [lyr["q_w"] * scale, lyr["k_w"], lyr["v_w"]], axis=1
            ).astype(jnp.bfloat16),                           # (D, 3D)
            "qkv_b": jnp.concatenate(
                [lyr["q_b"] * scale, lyr["k_b"], lyr["v_b"]]).reshape(1, 3 * D),
            "o_w": lyr["o_w"].astype(jnp.bfloat16),
            "o_b": lyr["o_b"].reshape(1, D),
            "ln2_g": lyr["ln2_g"].reshape(1, D),
            "ln2_b": lyr["ln2_b"].reshape(1, D),
            "fc1_w": lyr["fc1_w"].astype(jnp.bfloat16),
            "fc1_b": lyr["fc1_b"].reshape(1, mlp_dim),
            "fc2_w": lyr["fc2_w"].astype(jnp.bfloat16),
            "fc2_b": lyr["fc2_b"].reshape(1, D),
        })
    return prep


# ------------------------------ Forward pass ---------------------------------

def clip_vision_encoder(pixel_values, params, *, P, heads):
    """Mirrors CLIPVisionModel forward -> pooler_output (B, hidden_size)."""
    B, C, H, W = pixel_values.shape
    D = params["class_emb"].shape[0]
    nH, nW = H // P, W // P
    num_patches = nH * nW
    S = num_patches + 1
    CPP = C * P * P
    Kp = params["patch_w"].shape[0]

    # --- patch embedding: stride-P conv == matmul over flattened patches ----
    patches = pixel_values.reshape(B, C, nH, P, nW, P)
    patches = patches.transpose(0, 2, 4, 1, 3, 5).reshape(B * num_patches, CPP)
    if Kp != CPP:                                   # pad contraction to x128
        patches = jnp.pad(patches, ((0, 0), (0, Kp - CPP)))
    patch_embeds = linear(patches, params["patch_w"], params["patch_b"])
    patch_embeds = patch_embeds.reshape(B, num_patches, D)

    cls = jnp.broadcast_to(params["class_emb"].reshape(1, 1, D), (B, 1, D))
    hidden = jnp.concatenate([cls, patch_embeds], axis=1)        # (B, S, D)

    # pre_layrnorm fused with the +pos_emb add
    x = embed_ln(hidden, params["pos_emb"],
                 params["pre_ln_g"], params["pre_ln_b"]).reshape(B * S, D)

    for lyr in params["layers"]:
        # --- self-attention block: LN1 fused into the QKV projection -------
        residual = x
        qkv = ln_linear(x, lyr["ln1_g"], lyr["ln1_b"],
                        lyr["qkv_w"], lyr["qkv_b"],
                        out_dtype=jnp.bfloat16)                  # (B*S, 3D) bf16
        attn = attention(qkv.reshape(B, S, 3 * D), heads=heads)  # (B, S, D) bf16
        x = linear(attn.reshape(B * S, D), lyr["o_w"], lyr["o_b"],
                   residual=residual)                            # fused +res, f32

        # --- MLP block: LN2 + bias + quick-GELU fused into fc1; +res in fc2 -
        residual = x
        h = ln_linear(x, lyr["ln2_g"], lyr["ln2_b"],
                      lyr["fc1_w"], lyr["fc1_b"], act="quick_gelu",
                      out_dtype=jnp.bfloat16)                    # (B*S, mlp) bf16
        x = linear(h, lyr["fc2_w"], lyr["fc2_b"], residual=residual)

    last_hidden = x.reshape(B, S, D)
    pooled = last_hidden[:, 0, :]                                # CLS token
    pooled = layernorm(pooled, params["post_ln_g"], params["post_ln_b"])
    return pooled                                                # pooler_output


# ---------------------------------- main --------------------------------------

if __name__ == "__main__":
    # TODO(synk): pretrained-weight loading (from_pretrained) and PIL/image
    # preprocessing from the PyTorch wrapper are out of scope; random weights.
    key = jax.random.PRNGKey(0)
    # Small, shape-consistent config: 16x16 image, 3 channels, patch 8 ->
    # 4 patches + CLS = 5 tokens, hidden 128, 2 heads (hd=64), MLP 256, 2 layers.
    B, C, H, W = 2, 3, 16, 16
    P, D, heads, mlp_dim, layers = 8, 128, 2, 256, 2

    k_img, k_par = jax.random.split(key)
    pixel_values = jax.random.normal(k_img, (B, C, H, W), dtype=jnp.float32)
    num_patches = (H // P) * (W // P)
    raw_params = init_params(k_par, C=C, P=P, D=D, mlp_dim=mlp_dim,
                             layers=layers, num_patches=num_patches)
    params = prepare_params(raw_params, C=C, P=P, heads=heads)

    fwd = jax.jit(functools.partial(clip_vision_encoder, P=P, heads=heads))
    feats = fwd(pixel_values, params)
    jax.block_until_ready(feats)
    assert feats.shape == (B, D) and feats.dtype == jnp.float32
    print("KERNEL_OK")
</pallas_src>

<mosaic_0001>
module attributes {stable_mosaic.version = 11 : i64} {
  func.func @_matmul_kernel(%arg0: i32, %arg1: i32, %arg2: i32, %arg3: memref<8x256xf32, #tpu.memory_space<vmem>>, %arg4: memref<256x128xbf16, #tpu.memory_space<vmem>>, %arg5: memref<1x128xf32, #tpu.memory_space<vmem>>, %arg6: memref<8x128xf32, #tpu.memory_space<vmem>>, %arg7: memref<8x128xf32, #tpu.memory_space<vmem>>) attributes {dimension_semantics = [#tpu.dimension_semantics<parallel>, #tpu.dimension_semantics<parallel>, #tpu.dimension_semantics<arbitrary>], iteration_bounds = array<i64: 1, 1, 1>, scalar_prefetch = 0 : i64, scratch_operands = 1 : i64, tpu.core_type = #tpu.core_type<tc>, window_params = [{transform_indices = @transform_0, window_bounds = array<i64: 8, 256>}, {transform_indices = @transform_1, window_bounds = array<i64: 256, 128>}, {transform_indices = @transform_2, window_bounds = array<i64: 1, 128>}, {transform_indices = @transform_3, window_bounds = array<i64: 8, 128>}]} {
    %c0_i32 = arith.constant 0 : i32
    %0 = arith.cmpi eq, %arg2, %c0_i32 : i32
    %1 = arith.extui %0 : i1 to i32
    %c0_i32_0 = arith.constant 0 : i32
    %2 = arith.cmpi ne, %1, %c0_i32_0 : i32
    scf.if %2 {
      %cst_10 = arith.constant 0.000000e+00 : f32
      %13 = vector.broadcast %cst_10 : f32 to vector<8x128xf32>
      %c0_11 = arith.constant 0 : index
      %c0_12 = arith.constant 0 : index
      %14 = vector.load %arg7[%c0_11, %c0_12] : memref<8x128xf32, #tpu.memory_space<vmem>>, vector<8x128xf32>
      tpu.vector_store %arg7[%c0_11, %c0_12], %13 {strides = array<i32>} : memref<8x128xf32, #tpu.memory_space<vmem>>, vector<8x128xf32>,
    } else {
    }
    %c0 = arith.constant 0 : index
    %c0_1 = arith.constant 0 : index
    %3 = vector.load %arg7[%c0, %c0_1] : memref<8x128xf32, #tpu.memory_space<vmem>>, vector<8x128xf32>
    %c0_2 = arith.constant 0 : index
    %c0_3 = arith.constant 0 : index
    %4 = vector.load %arg3[%c0_2, %c0_3] : memref<8x256xf32, #tpu.memory_space<vmem>>, vector<8x256xf32>
    %5 = arith.truncf %4 : vector<8x256xf32> to vector<8x256xbf16>
    %c0_4 = arith.constant 0 : index
    %c0_5 = arith.constant 0 : index
    %6 = vector.load %arg4[%c0_4, %c0_5] : memref<256x128xbf16, #tpu.memory_space<vmem>>, vector<256x128xbf16>
    %cst = arith.constant dense<0.000000e+00> : vector<8x128xf32>
    %7 = tpu.matmul %5, %6, %cst {dimension_numbers = #tpu.dot_dimension_numbers<[1], [0], [0], [1], [0, 0, 1, 1], [], []>} : vector<8x256xbf16>, vector<256x128xbf16>, vector<8x128xf32> -> vector<8x128xf32>
    %8 = arith.addf %3, %7 : vector<8x128xf32>
    %c0_6 = arith.constant 0 : index
    %c0_7 = arith.constant 0 : index
    %9 = vector.load %arg7[%c0_6, %c0_7] : memref<8x128xf32, #tpu.memory_space<vmem>>, vector<8x128xf32>
    tpu.vector_store %arg7[%c0_6, %c0_7], %8 {strides = array<i32>} : memref<8x128xf32, #tpu.memory_space<vmem>>, vector<8x128xf32>,
    %c0_i32_8 = arith.constant 0 : i32
    %10 = arith.cmpi eq, %arg2, %c0_i32_8 : i32
    %11 = arith.extui %10 : i1 to i32
    %c0_i32_9 = arith.constant 0 : i32
    %12 = arith.cmpi ne, %11, %c0_i32_9 : i32
    scf.if %12 {
      %c0_10 = arith.constant 0 : index
      %c0_11 = arith.constant 0 : index
      %13 = vector.load %arg7[%c0_10, %c0_11] : memref<8x128xf32, #tpu.memory_space<vmem>>, vector<8x128xf32>
      %c0_12 = arith.constant 0 : index
      %c0_13 = arith.constant 0 : index
      %14 = vector.load %arg5[%c0_12, %c0_13] : memref<1x128xf32, #tpu.memory_space<vmem>>, vector<1x128xf32>
      %15 = vector.broadcast %14 : vector<1x128xf32> to vector<8x128xf32>
      %16 = arith.addf %13, %15 : vector<8x128xf32>
      %c0_14 = arith.constant 0 : index
      %c0_15 = arith.constant 0 : index
      %17 = vector.load %arg6[%c0_14, %c0_15] : memref<8x128xf32, #tpu.memory_space<vmem>>, vector<8x128xf32>
      tpu.vector_store %arg6[%c0_14, %c0_15], %16 {strides = array<i32>} : memref<8x128xf32, #tpu.memory_space<vmem>>, vector<8x128xf32>,
    } else {
    }
    return
  }
  func.func @transform_0(%arg0: i32, %arg1: i32, %arg2: i32) -> (i32, i32) {
    %c0_i32 = arith.constant 0 : i32
    return %arg0, %arg2 : i32, i32
  }
  func.func @transform_1(%arg0: i32, %arg1: i32, %arg2: i32) -> (i32, i32) {
    %c0_i32 = arith.constant 0 : i32
    return %arg2, %arg1 : i32, i32
  }
  func.func @transform_2(%arg0: i32, %arg1: i32, %arg2: i32) -> (i32, i32) {
    %c0_i32 = arith.constant 0 : i32
    %c0_i32_0 = arith.constant 0 : i32
    return %c0_i32, %arg1 : i32, i32
  }
  func.func @transform_3(%arg0: i32, %arg1: i32, %arg2: i32) -> (i32, i32) {
    %c0_i32 = arith.constant 0 : i32
    return %arg0, %arg1 : i32, i32
  }
}

module attributes {stable_mosaic.version = 11 : i64} {
  func.func @_ln_matmul_kernel(%arg0: i32, %arg1: i32, %arg2: memref<10x128xf32, #tpu.memory_space<vmem>>, %arg3: memref<1x128xf32, #tpu.memory_space<vmem>>, %arg4: memref<1x128xf32, #tpu.memory_space<vmem>>, %arg5: memref<128x128xbf16, #tpu.memory_space<vmem>>, %arg6: memref<1x128xf32, #tpu.memory_space<vmem>>, %arg7: memref<10x128xbf16, #tpu.memory_space<vmem>>, %arg8: memref<10x128xbf16, #tpu.memory_space<vmem>>) attributes {dimension_semantics = [#tpu.dimension_semantics<parallel>, #tpu.dimension_semantics<arbitrary>], iteration_bounds = array<i64: 1, 3>, scalar_prefetch = 0 : i64, scratch_operands = 1 : i64, tpu.core_type = #tpu.core_type<tc>, window_params = [{transform_indices = @transform_0, window_bounds = array<i64: 10, 128>}, {pipeline_mode = #tpu.pipeline_mode<synchronous>, transform_indices = @transform_1, window_bounds = array<i64: 1, 128>}, {pipeline_mode = #tpu.pipeline_mode<synchronous>, transform_indices = @transform_2, window_bounds = array<i64: 1, 128>}, {transform_indices = @transform_3, window_bounds = array<i64: 128, 128>}, {transform_indices = @transform_4, window_bounds = array<i64: 1, 128>}, {transform_indices = @transform_5, window_bounds = array<i64: 10, 128>}]} {
    %c0_i32 = arith.constant 0 : i32
    %0 = arith.cmpi eq, %arg1, %c0_i32 : i32
    %1 = arith.extui %0 : i1 to i32
    %c0_i32_0 = arith.constant 0 : i32
    %2 = arith.cmpi ne, %1, %c0_i32_0 : i32
    scf.if %2 {
      %c0_8 = arith.constant 0 : index
      %c0_9 = arith.constant 0 : index
      %11 = vector.load %arg2[%c0_8, %c0_9] : memref<10x128xf32, #tpu.memory_space<vmem>>, vector<10x128xf32>
      %cst_10 = arith.constant dense<0.000000e+00> : vector<10xf32>
      %12 = vector.multi_reduction <add>, %11, %cst_10 [1] : vector<10x128xf32> to vector<10xf32>
      %13 = vector.shape_cast %12 : vector<10xf32> to vector<10x1xf32>
      %cst_11 = arith.constant 1.280000e+02 : f32
      %14 = vector.broadcast %cst_11 : f32 to vector<10x1xf32>
      %15 = arith.divf %13, %14 : vector<10x1xf32>
      %16 = vector.broadcast %15 : vector<10x1xf32> to vector<10x128xf32>
      %17 = arith.subf %11, %16 : vector<10x128xf32>
      %18 = arith.mulf %17, %17 : vector<10x128xf32>
      %cst_12 = arith.constant dense<0.000000e+00> : vector<10xf32>
      %19 = vector.multi_reduction <add>, %18, %cst_12 [1] : vector<10x128xf32> to vector<10xf32>
      %20 = vector.shape_cast %19 : vector<10xf32> to vector<10x1xf32>
      %cst_13 = arith.constant 1.280000e+02 : f32
      %21 = vector.broadcast %cst_13 : f32 to vector<10x1xf32>
      %22 = arith.divf %20, %21 : vector<10x1xf32>
      %23 = vector.broadcast %15 : vector<10x1xf32> to vector<10x128xf32>
      %24 = arith.subf %11, %23 : vector<10x128xf32>
      %cst_14 = arith.constant 9.99999974E-6 : f32
      %25 = vector.broadcast %cst_14 : f32 to vector<10x1xf32>
      %26 = arith.addf %22, %25 : vector<10x1xf32>
      %27 = math.rsqrt %26 : vector<10x1xf32>
      %28 = vector.broadcast %27 : vector<10x1xf32> to vector<10x128xf32>
      %29 = arith.mulf %24, %28 : vector<10x128xf32>
      %c0_15 = arith.constant 0 : index
      %c0_16 = arith.constant 0 : index
      %30 = vector.load %arg3[%c0_15, %c0_16] : memref<1x128xf32, #tpu.memory_space<vmem>>, vector<1x128xf32>
      %31 = vector.broadcast %30 : vector<1x128xf32> to vector<10x128xf32>
      %32 = arith.mulf %29, %31 : vector<10x128xf32>
      %c0_17 = arith.constant 0 : index
      %c0_18 = arith.constant 0 : index
      %33 = vector.load %arg4[%c0_17, %c0_18] : memref<1x128xf32, #tpu.memory_space<vmem>>, vector<1x128xf32>
      %34 = vector.broadcast %33 : vector<1x128xf32> to vector<10x128xf32>
      %35 = arith.addf %32, %34 : vector<10x128xf32>
      %36 = arith.truncf %35 : vector<10x128xf32> to vector<10x128xbf16>
      %c0_19 = arith.constant 0 : index
      %c0_20 = arith.constant 0 : index
      %37 = vector.load %arg8[%c0_19, %c0_20] : memref<10x128xbf16, #tpu.memory_space<vmem>>, vector<10x128xbf16>
      tpu.vector_store %arg8[%c0_19, %c0_20], %36 {strides = array<i32>} : memref<10x128xbf16, #tpu.memory_space<vmem>>, vector<10x128xbf16>,
    } else {
    }
    %c0 = arith.constant 0 : index
    %c0_1 = arith.constant 0 : index
    %3 = vector.load %arg8[%c0, %c0_1] : memref<10x128xbf16, #tpu.memory_space<vmem>>, vector<10x128xbf16>
    %c0_2 = arith.constant 0 : index
    %c0_3 = arith.constant 0 : index
    %4 = vector.load %arg5[%c0_2, %c0_3] : memref<128x128xbf16, #tpu.memory_space<vmem>>, vector<128x128xbf16>
    %cst = arith.constant dense<0.000000e+00> : vector<10x128xf32>
    %5 = tpu.matmul %3, %4, %cst {dimension_numbers = #tpu.dot_dimension_numbers<[1], [0], [0], [1], [0, 0, 1, 1], [], []>} : vector<10x128xbf16>, vector<128x128xbf16>, vector<10x128xf32> -> vector<10x128xf32>
    %c0_4 = arith.constant 0 : index
    %c0_5 = arith.constant 0 : index
    %6 = vector.load %arg6[%c0_4, %c0_5] : memref<1x128xf32, #tpu.memory_space<vmem>>, vector<1x128xf32>
    %7 = vector.broadcast %6 : vector<1x128xf32> to vector<10x128xf32>
    %8 = arith.addf %5, %7 : vector<10x128xf32>
    %9 = arith.truncf %8 : vector<10x128xf32> to vector<10x128xbf16>
    %c0_6 = arith.constant 0 : index
    %c0_7 = arith.constant 0 : index
    %10 = vector.load %arg7[%c0_6, %c0_7] : memref<10x128xbf16, #tpu.memory_space<vmem>>, vector<10x128xbf16>
    tpu.vector_store %arg7[%c0_6, %c0_7], %9 {strides = array<i32>} : memref<10x128xbf16, #tpu.memory_space<vmem>>, vector<10x128xbf16>,
    return
  }
  func.func @transform_0(%arg0: i32, %arg1: i32) -> (i32, i32) {
    %c0_i32 = arith.constant 0 : i32
    %c0_i32_0 = arith.constant 0 : i32
    return %arg0, %c0_i32 : i32, i32
  }
  func.func @transform_1(%arg0: i32, %arg1: i32) -> (i32, i32) {
    %c0_i32 = arith.constant 0 : i32
    %c0_i32_0 = arith.constant 0 : i32
    %c0_i32_1 = arith.constant 0 : i32
    return %c0_i32, %c0_i32_0 : i32, i32
  }
  func.func @transform_2(%arg0: i32, %arg1: i32) -> (i32, i32) {
    %c0_i32 = arith.constant 0 : i32
    %c0_i32_0 = arith.constant 0 : i32
    %c0_i32_1 = arith.constant 0 : i32
    return %c0_i32, %c0_i32_0 : i32, i32
  }
  func.func @transform_3(%arg0: i32, %arg1: i32) -> (i32, i32) {
    %c0_i32 = arith.constant 0 : i32
    %c0_i32_0 = arith.constant 0 : i32
    return %c0_i32, %arg1 : i32, i32
  }
  func.func @transform_4(%arg0: i32, %arg1: i32) -> (i32, i32) {
    %c0_i32 = arith.constant 0 : i32
    %c0_i32_0 = arith.constant 0 : i32
    return %c0_i32, %arg1 : i32, i32
  }
  func.func @transform_5(%arg0: i32, %arg1: i32) -> (i32, i32) {
    %c0_i32 = arith.constant 0 : i32
    return %arg0, %arg1 : i32, i32
  }
}

module attributes {stable_mosaic.version = 11 : i64} {
  func.func @_embed_ln_kernel(%arg0: i32, %arg1: memref<1x5x128xf32, #tpu.memory_space<vmem>>, %arg2: memref<5x128xf32, #tpu.memory_space<vmem>>, %arg3: memref<1x128xf32, #tpu.memory_space<vmem>>, %arg4: memref<1x128xf32, #tpu.memory_space<vmem>>, %arg5: memref<1x5x128xf32, #tpu.memory_space<vmem>>) attributes {dimension_semantics = [#tpu.dimension_semantics<parallel>], iteration_bounds = array<i64: 2>, scalar_prefetch = 0 : i64, scratch_operands = 0 : i64, tpu.core_type = #tpu.core_type<tc>, window_params = [{transform_indices = @transform_0, window_bounds = array<i64: 1, 5, 128>}, {pipeline_mode = #tpu.pipeline_mode<synchronous>, transform_indices = @transform_1, window_bounds = array<i64: 5, 128>}, {pipeline_mode = #tpu.pipeline_mode<synchronous>, transform_indices = @transform_2, window_bounds = array<i64: 1, 128>}, {pipeline_mode = #tpu.pipeline_mode<synchronous>, transform_indices = @transform_3, window_bounds = array<i64: 1, 128>}, {transform_indices = @transform_4, window_bounds = array<i64: 1, 5, 128>}]} {
    %c0 = arith.constant 0 : index
    %c0_0 = arith.constant 0 : index
    %c0_1 = arith.constant 0 : index
    %0 = vector.load %arg1[%c0, %c0_0, %c0_1] : memref<1x5x128xf32, #tpu.memory_space<vmem>>, vector<1x5x128xf32>
    %1 = vector.shape_cast %0 : vector<1x5x128xf32> to vector<5x128xf32>
    %c0_2 = arith.constant 0 : index
    %c0_3 = arith.constant 0 : index
    %2 = vector.load %arg2[%c0_2, %c0_3] : memref<5x128xf32, #tpu.memory_space<vmem>>, vector<5x128xf32>
    %3 = arith.addf %1, %2 : vector<5x128xf32>
    %cst = arith.constant dense<0.000000e+00> : vector<5xf32>
    %4 = vector.multi_reduction <add>, %3, %cst [1] : vector<5x128xf32> to vector<5xf32>
    %5 = vector.shape_cast %4 : vector<5xf32> to vector<5x1xf32>
    %cst_4 = arith.constant 1.280000e+02 : f32
    %6 = vector.broadcast %cst_4 : f32 to vector<5x1xf32>
    %7 = arith.divf %5, %6 : vector<5x1xf32>
    %8 = vector.broadcast %7 : vector<5x1xf32> to vector<5x128xf32>
    %9 = arith.subf %3, %8 : vector<5x128xf32>
    %10 = arith.mulf %9, %9 : vector<5x128xf32>
    %cst_5 = arith.constant dense<0.000000e+00> : vector<5xf32>
    %11 = vector.multi_reduction <add>, %10, %cst_5 [1] : vector<5x128xf32> to vector<5xf32>
    %12 = vector.shape_cast %11 : vector<5xf32> to vector<5x1xf32>
    %cst_6 = arith.constant 1.280000e+02 : f32
    %13 = vector.broadcast %cst_6 : f32 to vector<5x1xf32>
    %14 = arith.divf %12, %13 : vector<5x1xf32>
    %15 = vector.broadcast %7 : vector<5x1xf32> to vector<5x128xf32>
    %16 = arith.subf %3, %15 : vector<5x128xf32>
    %cst_7 = arith.constant 9.99999974E-6 : f32
    %17 = vector.broadcast %cst_7 : f32 to vector<5x1xf32>
    %18 = arith.addf %14, %17 : vector<5x1xf32>
    %19 = math.rsqrt %18 : vector<5x1xf32>
    %20 = vector.broadcast %19 : vector<5x1xf32> to vector<5x128xf32>
    %21 = arith.mulf %16, %20 : vector<5x128xf32>
    %c0_8 = arith.constant 0 : index
    %c0_9 = arith.constant 0 : index
    %22 = vector.load %arg3[%c0_8, %c0_9] : memref<1x128xf32, #tpu.memory_space<vmem>>, vector<1x128xf32>
    %23 = vector.broadcast %22 : vector<1x128xf32> to vector<5x128xf32>
    %24 = arith.mulf %21, %23 : vector<5x128xf32>
    %c0_10 = arith.constant 0 : index
    %c0_11 = arith.constant 0 : index
    %25 = vector.load %arg4[%c0_10, %c0_11] : memref<1x128xf32, #tpu.memory_space<vmem>>, vector<1x128xf32>
    %26 = vector.broadcast %25 : vector<1x128xf32> to vector<5x128xf32>
    %27 = arith.addf %24, %26 : vector<5x128xf32>
    %c0_12 = arith.constant 0 : index
    %c0_13 = arith.constant 0 : index
    %c0_14 = arith.constant 0 : index
    %28 = vector.load %arg5[%c0_12, %c0_13, %c0_14] : memref<1x5x128xf32, #tpu.memory_space<vmem>>, vector<1x5x128xf32>
    %29 = vector.shape_cast %28 : vector<1x5x128xf32> to vector<5x128xf32>
    %30 = vector.shape_cast %27 : vector<5x128xf32> to vector<1x5x128xf32>
    tpu.vector_store %arg5[%c0_12, %c0_13, %c0_14], %30 {strides = array<i32>} : memref<1x5x128xf32, #tpu.memory_space<vmem>>, vector<1x5x128xf32>,
    return
  }
  func.func @transform_0(%arg0: i32) -> (i32, i32, i32) {
    %c0_i32 = arith.constant 0 : i32
    %c0_i32_0 = arith.constant 0 : i32
    %c0_i32_1 = arith.constant 0 : i32
    return %arg0, %c0_i32, %c0_i32_0 : i32, i32, i32
  }
  func.func @transform_1(%arg0: i32) -> (i32, i32) {
    %c0_i32 = arith.constant 0 : i32
    %c0_i32_0 = arith.constant 0 : i32
    %c0_i32_1 = arith.constant 0 : i32
    return %c0_i32, %c0_i32_0 : i32, i32
  }
  func.func @transform_2(%arg0: i32) -> (i32, i32) {
    %c0_i32 = arith.constant 0 : i32
    %c0_i32_0 = arith.constant 0 : i32
    %c0_i32_1 = arith.constant 0 : i32
    return %c0_i32, %c0_i32_0 : i32, i32
  }
  func.func @transform_3(%arg0: i32) -> (i32, i32) {
    %c0_i32 = arith.constant 0 : i32
    %c0_i32_0 = arith.constant 0 : i32
    %c0_i32_1 = arith.constant 0 : i32
    return %c0_i32, %c0_i32_0 : i32, i32
  }
  func.func @transform_4(%arg0: i32) -> (i32, i32, i32) {
    %c0_i32 = arith.constant 0 : i32
    %c0_i32_0 = arith.constant 0 : i32
    %c0_i32_1 = arith.constant 0 : i32
    return %arg0, %c0_i32, %c0_i32_0 : i32, i32, i32
  }
}

module attributes {stable_mosaic.version = 11 : i64} {
  func.func @_attention_kernel(%arg0: i32, %arg1: i32, %arg2: memref<1x5x128xbf16, #tpu.memory_space<vmem>>, %arg3: memref<1x5x128xbf16, #tpu.memory_space<vmem>>, %arg4: memref<1x5x128xbf16, #tpu.memory_space<vmem>>, %arg5: memref<1x5x128xbf16, #tpu.memory_space<vmem>>) attributes {dimension_semantics = [#tpu.dimension_semantics<parallel>, #tpu.dimension_semantics<parallel>], iteration_bounds = array<i64: 2, 1>, scalar_prefetch = 0 : i64, scratch_operands = 0 : i64, tpu.core_type = #tpu.core_type<tc>, window_params = [{transform_indices = @transform_0, window_bounds = array<i64: 1, 5, 128>}, {transform_indices = @transform_1, window_bounds = array<i64: 1, 5, 128>}, {transform_indices = @transform_2, window_bounds = array<i64: 1, 5, 128>}, {transform_indices = @transform_3, window_bounds = array<i64: 1, 5, 128>}]} {
    %c0 = arith.constant 0 : index
    %c0_0 = arith.constant 0 : index
    %c0_1 = arith.constant 0 : index
    %0 = vector.load %arg2[%c0, %c0_0, %c0_1] : memref<1x5x128xbf16, #tpu.memory_space<vmem>>, vector<1x5x64xbf16>
    %1 = vector.shape_cast %0 : vector<1x5x64xbf16> to vector<5x64xbf16>
    %c0_2 = arith.constant 0 : index
    %c0_3 = arith.constant 0 : index
    %c0_4 = arith.constant 0 : index
    %2 = vector.load %arg3[%c0_2, %c0_3, %c0_4] : memref<1x5x128xbf16, #tpu.memory_space<vmem>>, vector<1x5x64xbf16>
    %3 = vector.shape_cast %2 : vector<1x5x64xbf16> to vector<5x64xbf16>
    %cst = arith.constant dense<0.000000e+00> : vector<5x5xf32>
    %4 = tpu.matmul %1, %3, %cst {dimension_numbers = #tpu.dot_dimension_numbers<[1], [1], [0], [0], [0, 0, 1, 0], [], []>} : vector<5x64xbf16>, vector<5x64xbf16>, vector<5x5xf32> -> vector<5x5xf32>
    %cst_5 = arith.constant dense<0xFF800000> : vector<5xf32>
    %5 = vector.multi_reduction <maximumf>, %4, %cst_5 [1] : vector<5x5xf32> to vector<5xf32>
    %6 = vector.shape_cast %5 : vector<5xf32> to vector<5x1xf32>
    %7 = vector.broadcast %6 : vector<5x1xf32> to vector<5x5xf32>
    %8 = arith.subf %4, %7 : vector<5x5xf32>
    %9 = math.exp %8 : vector<5x5xf32>
    %cst_6 = arith.constant dense<0.000000e+00> : vector<5xf32>
    %10 = vector.multi_reduction <add>, %9, %cst_6 [1] : vector<5x5xf32> to vector<5xf32>
    %11 = vector.shape_cast %10 : vector<5xf32> to vector<5x1xf32>
    %12 = tpu.reciprocal %11 {approx = true} : vector<5x1xf32> -> vector<5x1xf32>
    %13 = vector.broadcast %12 : vector<5x1xf32> to vector<5x5xf32>
    %14 = arith.mulf %9, %13 : vector<5x5xf32>
    %15 = arith.truncf %14 : vector<5x5xf32> to vector<5x5xbf16>
    %c0_7 = arith.constant 0 : index
    %c0_8 = arith.constant 0 : index
    %c0_9 = arith.constant 0 : index
    %16 = vector.load %arg4[%c0_7, %c0_8, %c0_9] : memref<1x5x128xbf16, #tpu.memory_space<vmem>>, vector<1x5x64xbf16>
    %17 = vector.shape_cast %16 : vector<1x5x64xbf16> to vector<5x64xbf16>
    %cst_10 = arith.constant dense<0.000000e+00> : vector<5x64xf32>
    %18 = tpu.matmul %15, %17, %cst_10 {dimension_numbers = #tpu.dot_dimension_numbers<[1], [0], [0], [1], [0, 0, 1, 1], [], []>} : vector<5x5xbf16>, vector<5x64xbf16>, vector<5x64xf32> -> vector<5x64xf32>
    %c0_11 = arith.constant 0 : index
    %c0_12 = arith.constant 0 : index
    %c64 = arith.constant 64 : index
    %19 = vector.load %arg2[%c0_11, %c0_12, %c64] : memref<1x5x128xbf16, #tpu.memory_space<vmem>>, vector<1x5x64xbf16>
    %20 = vector.shape_cast %19 : vector<1x5x64xbf16> to vector<5x64xbf16>
    %c0_13 = arith.constant 0 : index
    %c0_14 = arith.constant 0 : index
    %c64_15 = arith.constant 64 : index
    %21 = vector.load %arg3[%c0_13, %c0_14, %c64_15] : memref<1x5x128xbf16, #tpu.memory_space<vmem>>, vector<1x5x64xbf16>
    %22 = vector.shape_cast %21 : vector<1x5x64xbf16> to vector<5x64xbf16>
    %cst_16 = arith.constant dense<0.000000e+00> : vector<5x5xf32>
    %23 = tpu.matmul %20, %22, %cst_16 {dimension_numbers = #tpu.dot_dimension_numbers<[1], [1], [0], [0], [0, 0, 1, 0], [], []>} : vector<5x64xbf16>, vector<5x64xbf16>, vector<5x5xf32> -> vector<5x5xf32>
    %cst_17 = arith.constant dense<0xFF800000> : vector<5xf32>
    %24 = vector.multi_reduction <maximumf>, %23, %cst_17 [1] : vector<5x5xf32> to vector<5xf32>
    %25 = vector.shape_cast %24 : vector<5xf32> to vector<5x1xf32>
    %26 = vector.broadcast %25 : vector<5x1xf32> to vector<5x5xf32>
    %27 = arith.subf %23, %26 : vector<5x5xf32>
    %28 = math.exp %27 : vector<5x5xf32>
    %cst_18 = arith.constant dense<0.000000e+00> : vector<5xf32>
    %29 = vector.multi_reduction <add>, %28, %cst_18 [1] : vector<5x5xf32> to vector<5xf32>
    %30 = vector.shape_cast %29 : vector<5xf32> to vector<5x1xf32>
    %31 = tpu.reciprocal %30 {approx = true} : vector<5x1xf32> -> vector<5x1xf32>
    %32 = vector.broadcast %31 : vector<5x1xf32> to vector<5x5xf32>
    %33 = arith.mulf %28, %32 : vector<5x5xf32>
    %34 = arith.truncf %33 : vector<5x5xf32> to vector<5x5xbf16>
    %c0_19 = arith.constant 0 : index
    %c0_20 = arith.constant 0 : index
    %c64_21 = arith.constant 64 : index
    %35 = vector.load %arg4[%c0_19, %c0_20, %c64_21] : memref<1x5x128xbf16, #tpu.memory_space<vmem>>, vector<1x5x64xbf16>
    %36 = vector.shape_cast %35 : vector<1x5x64xbf16> to vector<5x64xbf16>
    %cst_22 = arith.constant dense<0.000000e+00> : vector<5x64xf32>
    %37 = tpu.matmul %34, %36, %cst_22 {dimension_numbers = #tpu.dot_dimension_numbers<[1], [0], [0], [1], [0, 0, 1, 1], [], []>} : vector<5x5xbf16>, vector<5x64xbf16>, vector<5x64xf32> -> vector<5x64xf32>
    %38 = tpu.concatenate %18, %37 in 1 : vector<5x64xf32>, vector<5x64xf32> -> vector<5x128xf32>
    %39 = arith.truncf %38 : vector<5x128xf32> to vector<5x128xbf16>
    %c0_23 = arith.constant 0 : index
    %c0_24 = arith.constant 0 : index
    %c0_25 = arith.constant 0 : index
    %40 = vector.load %arg5[%c0_23, %c0_24, %c0_25] : memref<1x5x128xbf16, #tpu.memory_space<vmem>>, vector<1x5x128xbf16>
    %41 = vector.shape_cast %40 : vector<1x5x128xbf16> to vector<5x128xbf16>
    %42 = vector.shape_cast %39 : vector<5x128xbf16> to vector<1x5x128xbf16>
    tpu.vector_store %arg5[%c0_23, %c0_24, %c0_25], %42 {strides = array<i32>} : memref<1x5x128xbf16, #tpu.memory_space<vmem>>, vector<1x5x128xbf16>,
    return
  }
  func.func @transform_0(%arg0: i32, %arg1: i32) -> (i32, i32, i32) {
    %c0_i32 = arith.constant 0 : i32
    %c0_i32_0 = arith.constant 0 : i32
    return %arg0, %c0_i32, %arg1 : i32, i32, i32
  }
  func.func @transform_1(%arg0: i32, %arg1: i32) -> (i32, i32, i32) {
    %c1_i32 = arith.constant 1 : i32
    %0 = arith.addi %c1_i32, %arg1 : i32
    %c0_i32 = arith.constant 0 : i32
    %c0_i32_0 = arith.constant 0 : i32
    return %arg0, %c0_i32, %0 : i32, i32, i32
  }
  func.func @transform_2(%arg0: i32, %arg1: i32) -> (i32, i32, i32) {
    %c2_i32 = arith.constant 2 : i32
    %0 = arith.addi %c2_i32, %arg1 : i32
    %c0_i32 = arith.constant 0 : i32
    %c0_i32_0 = arith.constant 0 : i32
    return %arg0, %c0_i32, %0 : i32, i32, i32
  }
  func.func @transform_3(%arg0: i32, %arg1: i32) -> (i32, i32, i32) {
    %c0_i32 = arith.constant 0 : i32
    %c0_i32_0 = arith.constant 0 : i32
    return %arg0, %c0_i32, %arg1 : i32, i32, i32
  }
}

module attributes {stable_mosaic.version = 11 : i64} {
  func.func @_matmul_kernel(%arg0: i32, %arg1: i32, %arg2: i32, %arg3: memref<10x128xbf16, #tpu.memory_space<vmem>>, %arg4: memref<128x128xbf16, #tpu.memory_space<vmem>>, %arg5: memref<1x128xf32, #tpu.memory_space<vmem>>, %arg6: memref<10x128xf32, #tpu.memory_space<vmem>>, %arg7: memref<10x128xf32, #tpu.memory_space<vmem>>, %arg8: memref<10x128xf32, #tpu.memory_space<vmem>>) attributes {dimension_semantics = [#tpu.dimension_semantics<parallel>, #tpu.dimension_semantics<parallel>, #tpu.dimension_semantics<arbitrary>], iteration_bounds = array<i64: 1, 1, 1>, scalar_prefetch = 0 : i64, scratch_operands = 1 : i64, tpu.core_type = #tpu.core_type<tc>, window_params = [{transform_indices = @transform_0, window_bounds = array<i64: 10, 128>}, {transform_indices = @transform_1, window_bounds = array<i64: 128, 128>}, {transform_indices = @transform_2, window_bounds = array<i64: 1, 128>}, {transform_indices = @transform_3, window_bounds = array<i64: 10, 128>}, {transform_indices = @transform_4, window_bounds = array<i64: 10, 128>}]} {
    %c0_i32 = arith.constant 0 : i32
    %0 = arith.cmpi eq, %arg2, %c0_i32 : i32
    %1 = arith.extui %0 : i1 to i32
    %c0_i32_0 = arith.constant 0 : i32
    %2 = arith.cmpi ne, %1, %c0_i32_0 : i32
    scf.if %2 {
      %cst_10 = arith.constant 0.000000e+00 : f32
      %12 = vector.broadcast %cst_10 : f32 to vector<10x128xf32>
      %c0_11 = arith.constant 0 : index
      %c0_12 = arith.constant 0 : index
      %13 = vector.load %arg8[%c0_11, %c0_12] : memref<10x128xf32, #tpu.memory_space<vmem>>, vector<10x128xf32>
      tpu.vector_store %arg8[%c0_11, %c0_12], %12 {strides = array<i32>} : memref<10x128xf32, #tpu.memory_space<vmem>>, vector<10x128xf32>,
    } else {
    }
    %c0 = arith.constant 0 : index
    %c0_1 = arith.constant 0 : index
    %3 = vector.load %arg8[%c0, %c0_1] : memref<10x128xf32, #tpu.memory_space<vmem>>, vector<10x128xf32>
    %c0_2 = arith.constant 0 : index
    %c0_3 = arith.constant 0 : index
    %4 = vector.load %arg3[%c0_2, %c0_3] : memref<10x128xbf16, #tpu.memory_space<vmem>>, vector<10x128xbf16>
    %c0_4 = arith.constant 0 : index
    %c0_5 = arith.constant 0 : index
    %5 = vector.load %arg4[%c0_4, %c0_5] : memref<128x128xbf16, #tpu.memory_space<vmem>>, vector<128x128xbf16>
    %cst = arith.constant dense<0.000000e+00> : vector<10x128xf32>
    %6 = tpu.matmul %4, %5, %cst {dimension_numbers = #tpu.dot_dimension_numbers<[1], [0], [0], [1], [0, 0, 1, 1], [], []>} : vector<10x128xbf16>, vector<128x128xbf16>, vector<10x128xf32> -> vector<10x128xf32>
    %7 = arith.addf %3, %6 : vector<10x128xf32>
    %c0_6 = arith.constant 0 : index
    %c0_7 = arith.constant 0 : index
    %8 = vector.load %arg8[%c0_6, %c0_7] : memref<10x128xf32, #tpu.memory_space<vmem>>, vector<10x128xf32>
    tpu.vector_store %arg8[%c0_6, %c0_7], %7 {strides = array<i32>} : memref<10x128xf32, #tpu.memory_space<vmem>>, vector<10x128xf32>,
    %c0_i32_8 = arith.constant 0 : i32
    %9 = arith.cmpi eq, %arg2, %c0_i32_8 : i32
    %10 = arith.extui %9 : i1 to i32
    %c0_i32_9 = arith.constant 0 : i32
    %11 = arith.cmpi ne, %10, %c0_i32_9 : i32
    scf.if %11 {
      %c0_10 = arith.constant 0 : index
      %c0_11 = arith.constant 0 : index
      %12 = vector.load %arg8[%c0_10, %c0_11] : memref<10x128xf32, #tpu.memory_space<vmem>>, vector<10x128xf32>
      %c0_12 = arith.constant 0 : index
      %c0_13 = arith.constant 0 : index
      %13 = vector.load %arg5[%c0_12, %c0_13] : memref<1x128xf32, #tpu.memory_space<vmem>>, vector<1x128xf32>
      %14 = vector.broadcast %13 : vector<1x128xf32> to vector<10x128xf32>
      %15 = arith.addf %12, %14 : vector<10x128xf32>
      %c0_14 = arith.constant 0 : index
      %c0_15 = arith.constant 0 : index
      %16 = vector.load %arg6[%c0_14, %c0_15] : memref<10x128xf32, #tpu.memory_space<vmem>>, vector<10x128xf32>
      %17 = arith.addf %15, %16 : vector<10x128xf32>
      %c0_16 = arith.constant 0 : index
      %c0_17 = arith.constant 0 : index
      %18 = vector.load %arg7[%c0_16, %c0_17] : memref<10x128xf32, #tpu.memory_space<vmem>>, vector<10x128xf32>
      tpu.vector_store %arg7[%c0_16, %c0_17], %17 {strides = array<i32>} : memref<10x128xf32, #tpu.memory_space<vmem>>, vector<10x128xf32>,
    } else {
    }
    return
  }
  func.func @transform_0(%arg0: i32, %arg1: i32, %arg2: i32) -> (i32, i32) {
    %c0_i32 = arith.constant 0 : i32
    return %arg0, %arg2 : i32, i32
  }
  func.func @transform_1(%arg0: i32, %arg1: i32, %arg2: i32) -> (i32, i32) {
    %c0_i32 = arith.constant 0 : i32
    return %arg2, %arg1 : i32, i32
  }
  func.func @transform_2(%arg0: i32, %arg1: i32, %arg2: i32) -> (i32, i32) {
    %c0_i32 = arith.constant 0 : i32
    %c0_i32_0 = arith.constant 0 : i32
    return %c0_i32, %arg1 : i32, i32
  }
  func.func @transform_3(%arg0: i32, %arg1: i32, %arg2: i32) -> (i32, i32) {
    %c0_i32 = arith.constant 0 : i32
    return %arg0, %arg1 : i32, i32
  }
  func.func @transform_4(%arg0: i32, %arg1: i32, %arg2: i32) -> (i32, i32) {
    %c0_i32 = arith.constant 0 : i32
    return %arg0, %arg1 : i32, i32
  }
}

module attributes {stable_mosaic.version = 11 : i64} {
  func.func @_ln_matmul_kernel(%arg0: i32, %arg1: i32, %arg2: memref<10x128xf32, #tpu.memory_space<vmem>>, %arg3: memref<1x128xf32, #tpu.memory_space<vmem>>, %arg4: memref<1x128xf32, #tpu.memory_space<vmem>>, %arg5: memref<128x256xbf16, #tpu.memory_space<vmem>>, %arg6: memref<1x256xf32, #tpu.memory_space<vmem>>, %arg7: memref<10x256xbf16, #tpu.memory_space<vmem>>, %arg8: memref<10x128xbf16, #tpu.memory_space<vmem>>) attributes {dimension_semantics = [#tpu.dimension_semantics<parallel>, #tpu.dimension_semantics<arbitrary>], iteration_bounds = array<i64: 1, 1>, scalar_prefetch = 0 : i64, scratch_operands = 1 : i64, tpu.core_type = #tpu.core_type<tc>, window_params = [{transform_indices = @transform_0, window_bounds = array<i64: 10, 128>}, {pipeline_mode = #tpu.pipeline_mode<synchronous>, transform_indices = @transform_1, window_bounds = array<i64: 1, 128>}, {pipeline_mode = #tpu.pipeline_mode<synchronous>, transform_indices = @transform_2, window_bounds = array<i64: 1, 128>}, {transform_indices = @transform_3, window_bounds = array<i64: 128, 256>}, {transform_indices = @transform_4, window_bounds = array<i64: 1, 256>}, {transform_indices = @transform_5, window_bounds = array<i64: 10, 256>}]} {
    %c0_i32 = arith.constant 0 : i32
    %0 = arith.cmpi eq, %arg1, %c0_i32 : i32
    %1 = arith.extui %0 : i1 to i32
    %c0_i32_0 = arith.constant 0 : i32
    %2 = arith.cmpi ne, %1, %c0_i32_0 : i32
    scf.if %2 {
      %c0_10 = arith.constant 0 : index
      %c0_11 = arith.constant 0 : index
      %19 = vector.load %arg2[%c0_10, %c0_11] : memref<10x128xf32, #tpu.memory_space<vmem>>, vector<10x128xf32>
      %cst_12 = arith.constant dense<0.000000e+00> : vector<10xf32>
      %20 = vector.multi_reduction <add>, %19, %cst_12 [1] : vector<10x128xf32> to vector<10xf32>
      %21 = vector.shape_cast %20 : vector<10xf32> to vector<10x1xf32>
      %cst_13 = arith.constant 1.280000e+02 : f32
      %22 = vector.broadcast %cst_13 : f32 to vector<10x1xf32>
      %23 = arith.divf %21, %22 : vector<10x1xf32>
      %24 = vector.broadcast %23 : vector<10x1xf32> to vector<10x128xf32>
      %25 = arith.subf %19, %24 : vector<10x128xf32>
      %26 = arith.mulf %25, %25 : vector<10x128xf32>
      %cst_14 = arith.constant dense<0.000000e+00> : vector<10xf32>
      %27 = vector.multi_reduction <add>, %26, %cst_14 [1] : vector<10x128xf32> to vector<10xf32>
      %28 = vector.shape_cast %27 : vector<10xf32> to vector<10x1xf32>
      %cst_15 = arith.constant 1.280000e+02 : f32
      %29 = vector.broadcast %cst_15 : f32 to vector<10x1xf32>
      %30 = arith.divf %28, %29 : vector<10x1xf32>
      %31 = vector.broadcast %23 : vector<10x1xf32> to vector<10x128xf32>
      %32 = arith.subf %19, %31 : vector<10x128xf32>
      %cst_16 = arith.constant 9.99999974E-6 : f32
      %33 = vector.broadcast %cst_16 : f32 to vector<10x1xf32>
      %34 = arith.addf %30, %33 : vector<10x1xf32>
      %35 = math.rsqrt %34 : vector<10x1xf32>
      %36 = vector.broadcast %35 : vector<10x1xf32> to vector<10x128xf32>
      %37 = arith.mulf %32, %36 : vector<10x128xf32>
      %c0_17 = arith.constant 0 : index
      %c0_18 = arith.constant 0 : index
      %38 = vector.load %arg3[%c0_17, %c0_18] : memref<1x128xf32, #tpu.memory_space<vmem>>, vector<1x128xf32>
      %39 = vector.broadcast %38 : vector<1x128xf32> to vector<10x128xf32>
      %40 = arith.mulf %37, %39 : vector<10x128xf32>
      %c0_19 = arith.constant 0 : index
      %c0_20 = arith.constant 0 : index
      %41 = vector.load %arg4[%c0_19, %c0_20] : memref<1x128xf32, #tpu.memory_space<vmem>>, vector<1x128xf32>
      %42 = vector.broadcast %41 : vector<1x128xf32> to vector<10x128xf32>
      %43 = arith.addf %40, %42 : vector<10x128xf32>
      %44 = arith.truncf %43 : vector<10x128xf32> to vector<10x128xbf16>
      %c0_21 = arith.constant 0 : index
      %c0_22 = arith.constant 0 : index
      %45 = vector.load %arg8[%c0_21, %c0_22] : memref<10x128xbf16, #tpu.memory_space<vmem>>, vector<10x128xbf16>
      tpu.vector_store %arg8[%c0_21, %c0_22], %44 {strides = array<i32>} : memref<10x128xbf16, #tpu.memory_space<vmem>>, vector<10x128xbf16>,
    } else {
    }
    %c0 = arith.constant 0 : index
    %c0_1 = arith.constant 0 : index
    %3 = vector.load %arg8[%c0, %c0_1] : memref<10x128xbf16, #tpu.memory_space<vmem>>, vector<10x128xbf16>
    %c0_2 = arith.constant 0 : index
    %c0_3 = arith.constant 0 : index
    %4 = vector.load %arg5[%c0_2, %c0_3] : memref<128x256xbf16, #tpu.memory_space<vmem>>, vector<128x256xbf16>
    %cst = arith.constant dense<0.000000e+00> : vector<10x256xf32>
    %5 = tpu.matmul %3, %4, %cst {dimension_numbers = #tpu.dot_dimension_numbers<[1], [0], [0], [1], [0, 0, 1, 1], [], []>} : vector<10x128xbf16>, vector<128x256xbf16>, vector<10x256xf32> -> vector<10x256xf32>
    %c0_4 = arith.constant 0 : index
    %c0_5 = arith.constant 0 : index
    %6 = vector.load %arg6[%c0_4, %c0_5] : memref<1x256xf32, #tpu.memory_space<vmem>>, vector<1x256xf32>
    %7 = vector.broadcast %6 : vector<1x256xf32> to vector<10x256xf32>
    %8 = arith.addf %5, %7 : vector<10x256xf32>
    %9 = arith.truncf %8 : vector<10x256xf32> to vector<10x256xbf16>
    %cst_6 = arith.constant 1.703130e+00 : bf16
    %10 = vector.broadcast %cst_6 : bf16 to vector<10x256xbf16>
    %11 = arith.mulf %10, %9 : vector<10x256xbf16>
    %12 = arith.negf %11 : vector<10x256xbf16>
    %13 = math.exp %12 : vector<10x256xbf16>
    %cst_7 = arith.constant 1.000000e+00 : bf16
    %14 = vector.broadcast %cst_7 : bf16 to vector<10x256xbf16>
    %15 = arith.addf %14, %13 : vector<10x256xbf16>
    %16 = arith.divf %14, %15 : vector<10x256xbf16>
    %17 = arith.mulf %9, %16 : vector<10x256xbf16>
    %c0_8 = arith.constant 0 : index
    %c0_9 = arith.constant 0 : index
    %18 = vector.load %arg7[%c0_8, %c0_9] : memref<10x256xbf16, #tpu.memory_space<vmem>>, vector<10x256xbf16>
    tpu.vector_store %arg7[%c0_8, %c0_9], %17 {strides = array<i32>} : memref<10x256xbf16, #tpu.memory_space<vmem>>, vector<10x256xbf16>,
    return
  }
  func.func @transform_0(%arg0: i32, %arg1: i32) -> (i32, i32) {
    %c0_i32 = arith.constant 0 : i32
    %c0_i32_0 = arith.constant 0 : i32
    return %arg0, %c0_i32 : i32, i32
  }
  func.func @transform_1(%arg0: i32, %arg1: i32) -> (i32, i32) {
    %c0_i32 = arith.constant 0 : i32
    %c0_i32_0 = arith.constant 0 : i32
    %c0_i32_1 = arith.constant 0 : i32
    return %c0_i32, %c0_i32_0 : i32, i32
  }
  func.func @transform_2(%arg0: i32, %arg1: i32) -> (i32, i32) {
    %c0_i32 = arith.constant 0 : i32
    %c0_i32_0 = arith.constant 0 : i32
    %c0_i32_1 = arith.constant 0 : i32
    return %c0_i32, %c0_i32_0 : i32, i32
  }
  func.func @transform_3(%arg0: i32, %arg1: i32) -> (i32, i32) {
    %c0_i32 = arith.constant 0 : i32
    %c0_i32_0 = arith.constant 0 : i32
    return %c0_i32, %arg1 : i32, i32
  }
  func.func @transform_4(%arg0: i32, %arg1: i32) -> (i32, i32) {
    %c0_i32 = arith.constant 0 : i32
    %c0_i32_0 = arith.constant 0 : i32
    return %c0_i32, %arg1 : i32, i32
  }
  func.func @transform_5(%arg0: i32, %arg1: i32) -> (i32, i32) {
    %c0_i32 = arith.constant 0 : i32
    return %arg0, %arg1 : i32, i32
  }
}

module attributes {stable_mosaic.version = 11 : i64} {
  func.func @_matmul_kernel(%arg0: i32, %arg1: i32, %arg2: i32, %arg3: memref<10x256xbf16, #tpu.memory_space<vmem>>, %arg4: memref<256x128xbf16, #tpu.memory_space<vmem>>, %arg5: memref<1x128xf32, #tpu.memory_space<vmem>>, %arg6: memref<10x128xf32, #tpu.memory_space<vmem>>, %arg7: memref<10x128xf32, #tpu.memory_space<vmem>>, %arg8: memref<10x128xf32, #tpu.memory_space<vmem>>) attributes {dimension_semantics = [#tpu.dimension_semantics<parallel>, #tpu.dimension_semantics<parallel>, #tpu.dimension_semantics<arbitrary>], iteration_bounds = array<i64: 1, 1, 1>, scalar_prefetch = 0 : i64, scratch_operands = 1 : i64, tpu.core_type = #tpu.core_type<tc>, window_params = [{transform_indices = @transform_0, window_bounds = array<i64: 10, 256>}, {transform_indices = @transform_1, window_bounds = array<i64: 256, 128>}, {transform_indices = @transform_2, window_bounds = array<i64: 1, 128>}, {transform_indices = @transform_3, window_bounds = array<i64: 10, 128>}, {transform_indices = @transform_4, window_bounds = array<i64: 10, 128>}]} {
    %c0_i32 = arith.constant 0 : i32
    %0 = arith.cmpi eq, %arg2, %c0_i32 : i32
    %1 = arith.extui %0 : i1 to i32
    %c0_i32_0 = arith.constant 0 : i32
    %2 = arith.cmpi ne, %1, %c0_i32_0 : i32
    scf.if %2 {
      %cst_10 = arith.constant 0.000000e+00 : f32
      %12 = vector.broadcast %cst_10 : f32 to vector<10x128xf32>
      %c0_11 = arith.constant 0 : index
      %c0_12 = arith.constant 0 : index
      %13 = vector.load %arg8[%c0_11, %c0_12] : memref<10x128xf32, #tpu.memory_space<vmem>>, vector<10x128xf32>
      tpu.vector_store %arg8[%c0_11, %c0_12], %12 {strides = array<i32>} : memref<10x128xf32, #tpu.memory_space<vmem>>, vector<10x128xf32>,
    } else {
    }
    %c0 = arith.constant 0 : index
    %c0_1 = arith.constant 0 : index
    %3 = vector.load %arg8[%c0, %c0_1] : memref<10x128xf32, #tpu.memory_space<vmem>>, vector<10x128xf32>
    %c0_2 = arith.constant 0 : index
    %c0_3 = arith.constant 0 : index
    %4 = vector.load %arg3[%c0_2, %c0_3] : memref<10x256xbf16, #tpu.memory_space<vmem>>, vector<10x256xbf16>
    %c0_4 = arith.constant 0 : index
    %c0_5 = arith.constant 0 : index
    %5 = vector.load %arg4[%c0_4, %c0_5] : memref<256x128xbf16, #tpu.memory_space<vmem>>, vector<256x128xbf16>
    %cst = arith.constant dense<0.000000e+00> : vector<10x128xf32>
    %6 = tpu.matmul %4, %5, %cst {dimension_numbers = #tpu.dot_dimension_numbers<[1], [0], [0], [1], [0, 0, 1, 1], [], []>} : vector<10x256xbf16>, vector<256x128xbf16>, vector<10x128xf32> -> vector<10x128xf32>
    %7 = arith.addf %3, %6 : vector<10x128xf32>
    %c0_6 = arith.constant 0 : index
    %c0_7 = arith.constant 0 : index
    %8 = vector.load %arg8[%c0_6, %c0_7] : memref<10x128xf32, #tpu.memory_space<vmem>>, vector<10x128xf32>
    tpu.vector_store %arg8[%c0_6, %c0_7], %7 {strides = array<i32>} : memref<10x128xf32, #tpu.memory_space<vmem>>, vector<10x128xf32>,
    %c0_i32_8 = arith.constant 0 : i32
    %9 = arith.cmpi eq, %arg2, %c0_i32_8 : i32
    %10 = arith.extui %9 : i1 to i32
    %c0_i32_9 = arith.constant 0 : i32
    %11 = arith.cmpi ne, %10, %c0_i32_9 : i32
    scf.if %11 {
      %c0_10 = arith.constant 0 : index
      %c0_11 = arith.constant 0 : index
      %12 = vector.load %arg8[%c0_10, %c0_11] : memref<10x128xf32, #tpu.memory_space<vmem>>, vector<10x128xf32>
      %c0_12 = arith.constant 0 : index
      %c0_13 = arith.constant 0 : index
      %13 = vector.load %arg5[%c0_12, %c0_13] : memref<1x128xf32, #tpu.memory_space<vmem>>, vector<1x128xf32>
      %14 = vector.broadcast %13 : vector<1x128xf32> to vector<10x128xf32>
      %15 = arith.addf %12, %14 : vector<10x128xf32>
      %c0_14 = arith.constant 0 : index
      %c0_15 = arith.constant 0 : index
      %16 = vector.load %arg6[%c0_14, %c0_15] : memref<10x128xf32, #tpu.memory_space<vmem>>, vector<10x128xf32>
      %17 = arith.addf %15, %16 : vector<10x128xf32>
      %c0_16 = arith.constant 0 : index
      %c0_17 = arith.constant 0 : index
      %18 = vector.load %arg7[%c0_16, %c0_17] : memref<10x128xf32, #tpu.memory_space<vmem>>, vector<10x128xf32>
      tpu.vector_store %arg7[%c0_16, %c0_17], %17 {strides = array<i32>} : memref<10x128xf32, #tpu.memory_space<vmem>>, vector<10x128xf32>,
    } else {
    }
    return
  }
  func.func @transform_0(%arg0: i32, %arg1: i32, %arg2: i32) -> (i32, i32) {
    %c0_i32 = arith.constant 0 : i32
    return %arg0, %arg2 : i32, i32
  }
  func.func @transform_1(%arg0: i32, %arg1: i32, %arg2: i32) -> (i32, i32) {
    %c0_i32 = arith.constant 0 : i32
    return %arg2, %arg1 : i32, i32
  }
  func.func @transform_2(%arg0: i32, %arg1: i32, %arg2: i32) -> (i32, i32) {
    %c0_i32 = arith.constant 0 : i32
    %c0_i32_0 = arith.constant 0 : i32
    return %c0_i32, %arg1 : i32, i32
  }
  func.func @transform_3(%arg0: i32, %arg1: i32, %arg2: i32) -> (i32, i32) {
    %c0_i32 = arith.constant 0 : i32
    return %arg0, %arg1 : i32, i32
  }
  func.func @transform_4(%arg0: i32, %arg1: i32, %arg2: i32) -> (i32, i32) {
    %c0_i32 = arith.constant 0 : i32
    return %arg0, %arg1 : i32, i32
  }
}

module attributes {stable_mosaic.version = 11 : i64} {
  func.func @_layernorm_kernel(%arg0: i32, %arg1: memref<2x128xf32, #tpu.memory_space<vmem>>, %arg2: memref<1x128xf32, #tpu.memory_space<vmem>>, %arg3: memref<1x128xf32, #tpu.memory_space<vmem>>, %arg4: memref<2x128xf32, #tpu.memory_space<vmem>>) attributes {dimension_semantics = [#tpu.dimension_semantics<parallel>], iteration_bounds = array<i64: 1>, scalar_prefetch = 0 : i64, scratch_operands = 0 : i64, tpu.core_type = #tpu.core_type<tc>, window_params = [{transform_indices = @transform_0, window_bounds = array<i64: 2, 128>}, {pipeline_mode = #tpu.pipeline_mode<synchronous>, transform_indices = @transform_1, window_bounds = array<i64: 1, 128>}, {pipeline_mode = #tpu.pipeline_mode<synchronous>, transform_indices = @transform_2, window_bounds = array<i64: 1, 128>}, {transform_indices = @transform_3, window_bounds = array<i64: 2, 128>}]} {
    %c0 = arith.constant 0 : index
    %c0_0 = arith.constant 0 : index
    %0 = vector.load %arg1[%c0, %c0_0] : memref<2x128xf32, #tpu.memory_space<vmem>>, vector<2x128xf32>
    %cst = arith.constant dense<0.000000e+00> : vector<2xf32>
    %1 = vector.multi_reduction <add>, %0, %cst [1] : vector<2x128xf32> to vector<2xf32>
    %2 = vector.shape_cast %1 : vector<2xf32> to vector<2x1xf32>
    %cst_1 = arith.constant 1.280000e+02 : f32
    %3 = vector.broadcast %cst_1 : f32 to vector<2x1xf32>
    %4 = arith.divf %2, %3 : vector<2x1xf32>
    %5 = vector.broadcast %4 : vector<2x1xf32> to vector<2x128xf32>
    %6 = arith.subf %0, %5 : vector<2x128xf32>
    %7 = arith.mulf %6, %6 : vector<2x128xf32>
    %cst_2 = arith.constant dense<0.000000e+00> : vector<2xf32>
    %8 = vector.multi_reduction <add>, %7, %cst_2 [1] : vector<2x128xf32> to vector<2xf32>
    %9 = vector.shape_cast %8 : vector<2xf32> to vector<2x1xf32>
    %cst_3 = arith.constant 1.280000e+02 : f32
    %10 = vector.broadcast %cst_3 : f32 to vector<2x1xf32>
    %11 = arith.divf %9, %10 : vector<2x1xf32>
    %12 = vector.broadcast %4 : vector<2x1xf32> to vector<2x128xf32>
    %13 = arith.subf %0, %12 : vector<2x128xf32>
    %cst_4 = arith.constant 9.99999974E-6 : f32
    %14 = vector.broadcast %cst_4 : f32 to vector<2x1xf32>
    %15 = arith.addf %11, %14 : vector<2x1xf32>
    %16 = math.rsqrt %15 : vector<2x1xf32>
    %17 = vector.broadcast %16 : vector<2x1xf32> to vector<2x128xf32>
    %18 = arith.mulf %13, %17 : vector<2x128xf32>
    %c0_5 = arith.constant 0 : index
    %c0_6 = arith.constant 0 : index
    %19 = vector.load %arg2[%c0_5, %c0_6] : memref<1x128xf32, #tpu.memory_space<vmem>>, vector<1x128xf32>
    %20 = vector.broadcast %19 : vector<1x128xf32> to vector<2x128xf32>
    %21 = arith.mulf %18, %20 : vector<2x128xf32>
    %c0_7 = arith.constant 0 : index
    %c0_8 = arith.constant 0 : index
    %22 = vector.load %arg3[%c0_7, %c0_8] : memref<1x128xf32, #tpu.memory_space<vmem>>, vector<1x128xf32>
    %23 = vector.broadcast %22 : vector<1x128xf32> to vector<2x128xf32>
    %24 = arith.addf %21, %23 : vector<2x128xf32>
    %c0_9 = arith.constant 0 : index
    %c0_10 = arith.constant 0 : index
    %25 = vector.load %arg4[%c0_9, %c0_10] : memref<2x128xf32, #tpu.memory_space<vmem>>, vector<2x128xf32>
    tpu.vector_store %arg4[%c0_9, %c0_10], %24 {strides = array<i32>} : memref<2x128xf32, #tpu.memory_space<vmem>>, vector<2x128xf32>,
    return
  }
  func.func @transform_0(%arg0: i32) -> (i32, i32) {
    %c0_i32 = arith.constant 0 : i32
    %c0_i32_0 = arith.constant 0 : i32
    return %arg0, %c0_i32 : i32, i32
  }
  func.func @transform_1(%arg0: i32) -> (i32, i32) {
    %c0_i32 = arith.constant 0 : i32
    %c0_i32_0 = arith.constant 0 : i32
    %c0_i32_1 = arith.constant 0 : i32
    return %c0_i32, %c0_i32_0 : i32, i32
  }
  func.func @transform_2(%arg0: i32) -> (i32, i32) {
    %c0_i32 = arith.constant 0 : i32
    %c0_i32_0 = arith.constant 0 : i32
    %c0_i32_1 = arith.constant 0 : i32
    return %c0_i32, %c0_i32_0 : i32, i32
  }
  func.func @transform_3(%arg0: i32) -> (i32, i32) {
    %c0_i32 = arith.constant 0 : i32
    %c0_i32_0 = arith.constant 0 : i32
    return %arg0, %c0_i32 : i32, i32
  }
}

</mosaic_0001>

<llo_original>
// kernel: clip_vision_encoder.14
$region0: #{clip_vision_encoder.14}
  #allocation0 [shape = 'u32[]', space=smem, size = 0x4, offset = 0x4, fixed_abs, tag = 'smem constant byte address 0x4 - core index']
  #allocation1 [shape = 'u32[144,128]{1,0:T(1,128)}', space=vmem, size = 0x12000, scoped, tag = 'internal scratch']
  %s0 = inlined_call_operand.vmem [shape: f32[2,5,128], index: 0, kind: input, shape index: {}]
  %s1 = inlined_call_operand.vmem [shape: f32[5,128], index: 1, kind: input, shape index: {}]
  %s2 = inlined_call_operand.vmem [shape: f32[1,128], index: 2, kind: input, shape index: {}]
  %s3 = inlined_call_operand.vmem [shape: f32[1,128], index: 3, kind: input, shape index: {}]
  %s4 = inlined_call_operand.vmem [shape: f32[2,5,128], index: 4, kind: output, shape index: {}]
  %s5 = sld [smem:[#allocation0]]
  $region49: #{clip_vision_encoder.14} parent=0
    _
  %s7 = ssub.s32 1, %s5
  %s8 = scalar_select 0, %s7, %s5
  loop: start=0, step=1, limit=4
  $region2: #{clip_vision_encoder.14} parent=0 // loop_pre_header
    _
  $region3: #{clip_vision_encoder.14} parent=0 // loop_header
    %s10 = sphi 0, %s14
    %p11 = scmp.ge.s32.totalorder %s10, 4
    %s20 = sphi 0, %s22
    %s23 = sphi 0, %s20
    %s24 = sphi 0, %s23
    %s40 = sphi 0, %s24
    %s44 = sphi 0, %s44
    %s46 = sphi 0, %s44
    %s47 = sphi 0, %s46
    %s61 = sphi 0, %s47
    %s65 = sphi 0, %s65
    %s67 = sphi 0, %s65
    %s68 = sphi 0, %s67
    %s82 = sphi 0, %s68
    %s86 = sphi 0, %s86
    %s88 = sphi 0, %s86
    %s89 = sphi 0, %s88
    %s103 = sphi 0, %s89
    %s109 = sphi 0, %s111
    %s112 = sphi 0, %s109
    %s113 = sphi 0, %s112
    %s129 = sphi 0, %s113
  $region4: #{clip_vision_encoder.14} parent=0 // loop_header_branch
    %13 = sbr.rel (%p11) target = $region8
  $region5: #{clip_vision_encoder.14} parent=0 // loop_body
    %s15 = ssub.s32 %s10, 1
    %s16 = ssub.s32 %s10, 2
    %s17 = sadd.s32 %s10, 1
    %s18 = ssub.s32 %s10, %s17
    %p19 = scmp.eq.s32.totalorder %s18, 0
    %s21 = sadd.s32 %s20, 1
    %s22 = scalar_select %p19, %s20, %s21
    %p25 = pneg %p19
    %p26 = scmp.eq.s32.totalorder %s10, 1
    %p27 = por %p25, %p26
    %p28 = scmp.ne.s32.totalorder %s20, %s23
    %p29 = scmp.eq.s32.totalorder %s10, 0
    %p30 = por %p28, %p29
    %p31 = scmp.ne.s32.totalorder %s20, %s23
    %p32 = scmp.eq.s32.totalorder %s15, 1
    %p33 = por %p31, %p32
    %p34 = scmp.ne.s32.totalorder %s23, %s24
    %p35 = scmp.eq.s32.totalorder %s15, 0
    %p36 = por %p34, %p35
    %p37 = scmp.ne.s32.totalorder %s23, %s24
    %p38 = scmp.eq.s32.totalorder %s16, 1
    %p39 = por %p37, %p38
    %p41 = scmp.ne.s32.totalorder %s24, %s40
    %p42 = scmp.eq.s32.totalorder %s16, 0
    %p43 = por %p41, %p42
    %s45 = sadd.s32 %s44, 1
    %p48 = scmp.eq.s32.totalorder %s10, 1
    %p49 = scmp.ne.s32.totalorder %s44, %s46
    %p50 = scmp.eq.s32.totalorder %s10, 0
    %p51 = por %p49, %p50
    %p52 = scmp.ne.s32.totalorder %s44, %s46
    %p53 = scmp.eq.s32.totalorder %s15, 1
    %p54 = por %p52, %p53
    %p55 = scmp.ne.s32.totalorder %s46, %s47
    %p56 = scmp.eq.s32.totalorder %s15, 0
    %p57 = por %p55, %p56
    %p58 = scmp.ne.s32.totalorder %s46, %s47
    %p59 = scmp.eq.s32.totalorder %s16, 1
    %p60 = por %p58, %p59
    %p62 = scmp.ne.s32.totalorder %s47, %s61
    %p63 = scmp.eq.s32.totalorder %s16, 0
    %p64 = por %p62, %p63
    %s66 = sadd.s32 %s65, 1
    %p69 = scmp.eq.s32.totalorder %s10, 1
    %p70 = scmp.ne.s32.totalorder %s65, %s67
    %p71 = scmp.eq.s32.totalorder %s10, 0
    %p72 = por %p70, %p71
    %p73 = scmp.ne.s32.totalorder %s65, %s67
    %p74 = scmp.eq.s32.totalorder %s15, 1
    %p75 = por %p73, %p74
    %p76 = scmp.ne.s32.totalorder %s67, %s68
    %p77 = scmp.eq.s32.totalorder %s15, 0
    %p78 = por %p76, %p77
    %p79 = scmp.ne.s32.totalorder %s67, %s68
    %p80 = scmp.eq.s32.totalorder %s16, 1
    %p81 = por %p79, %p80
    %p83 = scmp.ne.s32.totalorder %s68, %s82
    %p84 = scmp.eq.s32.totalorder %s16, 0
    %p85 = por %p83, %p84
    %s87 = sadd.s32 %s86, 1
    %p90 = scmp.eq.s32.totalorder %s10, 1
    %p91 = scmp.ne.s32.totalorder %s86, %s88
    %p92 = scmp.eq.s32.totalorder %s10, 0
    %p93 = por %p91, %p92
    %p94 = scmp.ne.s32.totalorder %s86, %s88
    %p95 = scmp.eq.s32.totalorder %s15, 1
    %p96 = por %p94, %p95
    %p97 = scmp.ne.s32.totalorder %s88, %s89
    %p98 = scmp.eq.s32.totalorder %s15, 0
    %p99 = por %p97, %p98
    %p100 = scmp.ne.s32.totalorder %s88, %s89
    %p101 = scmp.eq.s32.totalorder %s16, 1
    %p102 = por %p100, %p101
    %p104 = scmp.ne.s32.totalorder %s89, %s103
    %p105 = scmp.eq.s32.totalorder %s16, 0
    %p106 = por %p104, %p105
    %s107 = ssub.s32 %s10, %s17
    %p108 = scmp.eq.s32.totalorder %s107, 0
    %s110 = sadd.s32 %s109, 1
    %s111 = scalar_select %p108, %s109, %s110
    %p114 = pneg %p108
    %p115 = scmp.eq.s32.totalorder %s10, 1
    %p116 = por %p114, %p115
    %p117 = scmp.ne.s32.totalorder %s109, %s112
    %p118 = scmp.eq.s32.totalorder %s10, 0
    %p119 = por %p117, %p118
    %p120 = scmp.ne.s32.totalorder %s109, %s112
    %p121 = scmp.eq.s32.totalorder %s15, 1
    %p122 = por %p120, %p121
    %p123 = scmp.ne.s32.totalorder %s112, %s113
    %p124 = scmp.eq.s32.totalorder %s15, 0
    %p125 = por %p123, %p124
    %p126 = scmp.ne.s32.totalorder %s112, %s113
    %p127 = scmp.eq.s32.totalorder %s16, 1
    %p128 = por %p126, %p127
    %p130 = scmp.ne.s32.totalorder %s113, %s129
    %p131 = scmp.eq.s32.totalorder %s16, 0
    %p132 = por %p130, %p131
    %p133 = scmp.le.s32.totalorder 1, %s10
    %p134 = scmp.lt.s32.totalorder %s10, 3
    %p135 = pnand %p133, %p134
    %p136 = pneg %p135
    // Predicated region
    $region9: #{clip_vision_encoder.14} parent=5 // pred_check
      _
    $region10: #{clip_vision_encoder.14} parent=5 // pred_check_branch
      %138 = sbr.rel (%p135) target = $region12
    $region11: #{clip_vision_encoder.14} parent=5 // pred_region
      %s139 = ssub.s32 %s10, 1
      // Predicated region
      $region13: #{clip_vision_encoder.14} parent=11 // pred_check
        %p140 = pneg %p57
      $region14: #{clip_vision_encoder.14} parent=11 // pred_check_branch
        %142 = sbr.rel (%p140) target = $region16
      $region15: #{clip_vision_encoder.14} parent=11 // pred_region
        _
      $region16: #{clip_vision_encoder.14} parent=11 // pred_fallthru
        _
      // Predicated region
      $region17: #{clip_vision_encoder.14} parent=11 // pred_check
        %p143 = pneg %p78
      $region18: #{clip_vision_encoder.14} parent=11 // pred_check_branch
        %145 = sbr.rel (%p143) target = $region20
      $region19: #{clip_vision_encoder.14} parent=11 // pred_region
        _
      $region20: #{clip_vision_encoder.14} parent=11 // pred_fallthru
        _
      // Predicated region
      $region21: #{clip_vision_encoder.14} parent=11 // pred_check
        %p146 = pneg %p99
      $region22: #{clip_vision_encoder.14} parent=11 // pred_check_branch
        %148 = sbr.rel (%p146) target = $region24
      $region23: #{clip_vision_encoder.14} parent=11 // pred_region
        _
      $region24: #{clip_vision_encoder.14} parent=11 // pred_fallthru
        _
    $region12: #{clip_vision_encoder.14} parent=5 // pred_fallthru
      _
    %p149 = scmp.lt.s32.totalorder %s10, 2
    // Predicated region
    $region25: #{clip_vision_encoder.14} parent=5 // pred_check
      %p150 = pneg %p149
    $region26: #{clip_vision_encoder.14} parent=5 // pred_check_branch
      %152 = sbr.rel (%p150) target = $region28
    $region27: #{clip_vision_encoder.14} parent=5 // pred_region
      // Predicated region
      $region29: #{clip_vision_encoder.14} parent=27 // pred_check
        %p153 = pneg %p30
      $region30: #{clip_vision_encoder.14} parent=27 // pred_check_branch
        %155 = sbr.rel (%p153) target = $region32
      $region31: #{clip_vision_encoder.14} parent=27 // pred_region
        %p156 = scmp.lt.s32.totalorder %s10, 1
        %s157 = scalar_select %p156, %s10, 1
        %s158 = smul.addr %s157, 8
        %s159 = scalar_lea.vmem %s0, %s158
      $region32: #{clip_vision_encoder.14} parent=27 // pred_fallthru
        _
    $region28: #{clip_vision_encoder.14} parent=5 // pred_fallthru
      _
    %p160 = scmp.le.s32.totalorder 1, %s10
    %p161 = scmp.lt.s32.totalorder %s10, 3
    %p162 = pnand %p160, %p161
    %p163 = pneg %p162
    // Predicated region
    $region33: #{clip_vision_encoder.14} parent=5 // pred_check
      _
    $region34: #{clip_vision_encoder.14} parent=5 // pred_check_branch
      %165 = sbr.rel (%p162) target = $region36
    $region35: #{clip_vision_encoder.14} parent=5 // pred_region
      %s166 = ssub.s32 %s10, 1
      %p167 = scmp.lt.s32.totalorder %s15, 1
      %s168 = scalar_select %p167, %s15, 1
      %s169 = smul.addr %s168, 8
      %s170 = scalar_lea.vmem %s0, %s169
      %p171 = pneg %p36
      %p172 = pneg %p33
      %p173 = pneg %p57
      %p174 = pneg %p54
      %p175 = pneg %p78
      %p176 = pneg %p75
      %p177 = pneg %p99
      %p178 = pneg %p96
      %p179 = pneg %p125
      %p180 = pneg %p122
      %p181 = scmp.lt.s32.totalorder %s15, 1
      %s182 = scalar_select %p181, %s15, 1
      %s183 = smul.addr %s182, 8
      %s184 = scalar_lea.vmem %s4, %s183
      %p185 = scmp.lt.s32.totalorder %s15, 1
      %s186 = scalar_select %p185, %s15, 1
      %s187 = smul.addr %s186, 8
      %s188 = scalar_lea.vmem %s0, %s187
      %p189 = scmp.lt.s32.totalorder %s15, 1
      %s190 = scalar_select %p189, %s15, 1
      %s191 = smul.addr %s190, 8
      %s192 = scalar_lea.vmem %s4, %s191
      %v193 = vld [vmem:[%s188] sm:$0x1f]
      %v194 = vld [vmem:[%s1] sm:$0x1f]
      %v195 = vadd.f32 %v193, %v194
      %vm196 = vcmask 1044480
      %v197 = vsel %vm196, %v195, 0.0
      %198 = vadd.xlane.f32.xlu0 %v197
      %v199 = vpop.xlane.xlu0 %198
      %v200 = vrcp.pop 128.0
      %v201 = vmul.f32 %v199, %v200
      %v202 = vsub.f32 %v195, %v201
      %v203 = vmul.f32 %v202, %v202
      %v204 = vsel %vm196, %v203, 0.0
      %205 = vadd.xlane.f32.xlu0 %v204
      %v206 = vpop.xlane.xlu0 %205
      %v207 = vmul.f32 %v206, %v200
      %v208 = vadd.f32 %v207, 1e-05
      %v209 = vrsqrt.pop %v208
      %v210 = vmul.f32 %v202, %v209
      %v211 = vld [vmem:[%s2] sm:$0x1]
      %v213 = vlaneseq
      %v214 = vshrl.u32 %v213, 7
      %v215 = vsub.s32 0, %v214
      %v216 = vrot.slane %v211, %v215
      %v218 = vmul.f32 %v210, %v216
      %v219 = vld [vmem:[%s3] sm:$0x1]
      %v221 = vlaneseq
      %v222 = vshrl.u32 %v221, 7
      %v223 = vsub.s32 0, %v222
      %v224 = vrot.slane %v219, %v223
      %v226 = vadd.f32 %v218, %v224
      %227 = vst [vmem:[%s192] sm:$0x1f] %v226
      %p228 = scmp.lt.s32.totalorder %s15, 1
      %s229 = scalar_select %p228, %s15, 1
      %s230 = smul.addr %s229, 8
      %s231 = scalar_lea.vmem %s4, %s230
      // Predicated region
      $region37: #{clip_vision_encoder.14} parent=35 // pred_check
        %p232 = pneg %p122
      $region38: #{clip_vision_encoder.14} parent=35 // pred_check_branch
        %234 = sbr.rel (%p232) target = $region40
      $region39: #{clip_vision_encoder.14} parent=35 // pred_region
        _
      $region40: #{clip_vision_encoder.14} parent=35 // pred_fallthru
        _
    $region36: #{clip_vision_encoder.14} parent=5 // pred_fallthru
      _
    %p235 = scmp.le.s32.totalorder 2, %s10
    // Predicated region
    $region41: #{clip_vision_encoder.14} parent=5 // pred_check
      %p236 = pneg %p235
    $region42: #{clip_vision_encoder.14} parent=5 // pred_check_branch
      %238 = sbr.rel (%p236) target = $region44
    $region43: #{clip_vision_encoder.14} parent=5 // pred_region
      %s239 = ssub.s32 %s10, 2
      // Predicated region
      $region45: #{clip_vision_encoder.14} parent=43 // pred_check
        %p240 = pneg %p128
      $region46: #{clip_vision_encoder.14} parent=43 // pred_check_branch
        %242 = sbr.rel (%p240) target = $region48
      $region47: #{clip_vision_encoder.14} parent=43 // pred_region
        %p243 = scmp.lt.s32.totalorder %s16, 1
        %s244 = scalar_select %p243, %s16, 1
        %s245 = smul.addr %s244, 8
        %s246 = scalar_lea.vmem %s4, %s245
      $region48: #{clip_vision_encoder.14} parent=43 // pred_fallthru
        _
    $region44: #{clip_vision_encoder.14} parent=5 // pred_fallthru
      _
  $region6: #{clip_vision_encoder.14} parent=0 // loop_footer
    %s14 = sadd.s32 1, %s10
  $region7: #{clip_vision_encoder.14} parent=0 // loop_footer_branch
    %9 = sbr.rel target = $region3
  $region8: #{clip_vision_encoder.14} parent=0 // loop_exit
    _

// kernel: clip_vision_encoder.13
$region0: #{clip_vision_encoder.13}
  #allocation0 [shape = 'u32[]', space=smem, size = 0x4, offset = 0x4, fixed_abs, tag = 'smem constant byte address 0x4 - core index']
  #allocation1 [shape = 'u32[144,128]{1,0:T(1,128)}', space=vmem, size = 0x12000, scoped, tag = 'internal scratch']
  #allocation2 [shape = 'f32[8,128]{1,0:T(8,128)}', space=vmem, size = 0x1000, scoped, tag = 'scratch operand']
  %s0 = inlined_call_operand.vmem [shape: f32[8,256], index: 0, kind: input, shape index: {}]
  %s1 = inlined_call_operand.vmem [shape: bf16[256,128], index: 1, kind: input, shape index: {}]
  %s2 = inlined_call_operand.vmem [shape: f32[1,128], index: 2, kind: input, shape index: {}]
  %s3 = inlined_call_operand.vmem [shape: f32[8,128], index: 3, kind: output, shape index: {}]
  %s4 = sld [smem:[#allocation0]]
  $region30: #{clip_vision_encoder.13} parent=0
    _
  %s6 = ssub.s32 1, %s4
  %s7 = scalar_select 0, %s6, %s4
  // Predicated region
  $region2: #{clip_vision_encoder.13} parent=0 // pred_check
    _
  $region3: #{clip_vision_encoder.13} parent=0 // pred_check_branch
    %9 = sbr.rel (0) target = $region5
  $region4: #{clip_vision_encoder.13} parent=0 // pred_region
    _
  $region5: #{clip_vision_encoder.13} parent=0 // pred_fallthru
    _
  // Predicated region
  $region6: #{clip_vision_encoder.13} parent=0 // pred_check
    _
  $region7: #{clip_vision_encoder.13} parent=0 // pred_check_branch
    %11 = sbr.rel (0) target = $region9
  $region8: #{clip_vision_encoder.13} parent=0 // pred_region
    _
  $region9: #{clip_vision_encoder.13} parent=0 // pred_fallthru
    _
  // Predicated region
  $region10: #{clip_vision_encoder.13} parent=0 // pred_check
    _
  $region11: #{clip_vision_encoder.13} parent=0 // pred_check_branch
    %13 = sbr.rel (0) target = $region13
  $region12: #{clip_vision_encoder.13} parent=0 // pred_region
    _
  $region13: #{clip_vision_encoder.13} parent=0 // pred_fallthru
    _
  %p15 = scmp.eq.s32.totalorder 0, 0
  // Predicated region
  $region14: #{clip_vision_encoder.13} parent=0 // pred_check
    %p16 = pneg %p15
  $region15: #{clip_vision_encoder.13} parent=0 // pred_check_branch
    %18 = sbr.rel (%p16) target = $region17
  $region16: #{clip_vision_encoder.13} parent=0 // pred_region
    %19 = vst [vmem:[#allocation2] sm:$0xff] 0.0
  $region17: #{clip_vision_encoder.13} parent=0 // pred_fallthru
    _
  %v20 = vld [vmem:[#allocation2] sm:$0xff]
  %v21 = vld [vmem:[%s0] sm:$0xff]
  %v22 = vld [vmem:[%s0 + $0x8] sm:$0xff]
  %v23 = vpack.c.bf16 %v21, %v21
  %v24 = vpack.c.bf16 %v22, %v22
  %v25 = vld [vmem:[%s1] sm:$0xf]
  %v26 = vld [vmem:[%s1 + $0x4] sm:$0xf]
  %v27 = vld [vmem:[%s1 + $0x8] sm:$0xf]
  %v28 = vld [vmem:[%s1 + $0xc] sm:$0xf]
  %v29 = vld [vmem:[%s1 + $0x10] sm:$0xf]
  %v30 = vld [vmem:[%s1 + $0x14] sm:$0xf]
  %v31 = vld [vmem:[%s1 + $0x18] sm:$0xf]
  %v32 = vld [vmem:[%s1 + $0x1c] sm:$0xf]
  %v33 = vld [vmem:[%s1 + $0x20] sm:$0xf]
  %v34 = vld [vmem:[%s1 + $0x24] sm:$0xf]
  %v35 = vld [vmem:[%s1 + $0x28] sm:$0xf]
  %v36 = vld [vmem:[%s1 + $0x2c] sm:$0xf]
  %v37 = vld [vmem:[%s1 + $0x30] sm:$0xf]
  %v38 = vld [vmem:[%s1 + $0x34] sm:$0xf]
  %v39 = vld [vmem:[%s1 + $0x38] sm:$0xf]
  %v40 = vld [vmem:[%s1 + $0x3c] sm:$0xf]
  %v41 = vld [vmem:[%s1 + $0x40] sm:$0xf]
  %v42 = vld [vmem:[%s1 + $0x44] sm:$0xf]
  %v43 = vld [vmem:[%s1 + $0x48] sm:$0xf]
  %v44 = vld [vmem:[%s1 + $0x4c] sm:$0xf]
  %v45 = vld [vmem:[%s1 + $0x50] sm:$0xf]
  %v46 = vld [vmem:[%s1 + $0x54] sm:$0xf]
  %v47 = vld [vmem:[%s1 + $0x58] sm:$0xf]
  %v48 = vld [vmem:[%s1 + $0x5c] sm:$0xf]
  %v49 = vld [vmem:[%s1 + $0x60] sm:$0xf]
  %v50 = vld [vmem:[%s1 + $0x64] sm:$0xf]
  %v51 = vld [vmem:[%s1 + $0x68] sm:$0xf]
  %v52 = vld [vmem:[%s1 + $0x6c] sm:$0xf]
  %v53 = vld [vmem:[%s1 + $0x70] sm:$0xf]
  %v54 = vld [vmem:[%s1 + $0x74] sm:$0xf]
  %v55 = vld [vmem:[%s1 + $0x78] sm:$0xf]
  %v56 = vld [vmem:[%s1 + $0x7c] sm:$0xf]
  %v89 = vunpack.c.l.b16 %v25
  %v90 = vunpack.c.l.b16 %v26
  %v91 = vunpack.c.l.b16 %v27
  %v92 = vunpack.c.l.b16 %v28
  %v93 = vunpack.c.l.b16 %v29
  %v94 = vunpack.c.l.b16 %v30
  %v95 = vunpack.c.l.b16 %v31
  %v96 = vunpack.c.l.b16 %v32
  %v97 = vunpack.c.l.b16 %v33
  %v98 = vunpack.c.l.b16 %v34
  %v99 = vunpack.c.l.b16 %v35
  %v100 = vunpack.c.l.b16 %v36
  %v101 = vunpack.c.l.b16 %v37
  %v102 = vunpack.c.l.b16 %v38
  %v103 = vunpack.c.l.b16 %v39
  %v104 = vunpack.c.l.b16 %v40
  %v105 = vunpack.c.l.b16 %v41
  %v106 = vunpack.c.l.b16 %v42
  %v107 = vunpack.c.l.b16 %v43
  %v108 = vunpack.c.l.b16 %v44
  %v109 = vunpack.c.l.b16 %v45
  %v110 = vunpack.c.l.b16 %v46
  %v111 = vunpack.c.l.b16 %v47
  %v112 = vunpack.c.l.b16 %v48
  %v113 = vunpack.c.l.b16 %v49
  %v114 = vunpack.c.l.b16 %v50
  %v115 = vunpack.c.l.b16 %v51
  %v116 = vunpack.c.l.b16 %v52
  %v117 = vunpack.c.l.b16 %v53
  %v118 = vunpack.c.l.b16 %v54
  %v119 = vunpack.c.l.b16 %v55
  %v120 = vunpack.c.l.b16 %v56
  %v121 = vpack.c.b16 %v90, %v89
  %v122 = vpack.c.b16 %v92, %v91
  %v123 = vpack.c.b16 %v94, %v93
  %v124 = vpack.c.b16 %v96, %v95
  %v125 = vpack.c.b16 %v98, %v97
  %v126 = vpack.c.b16 %v100, %v99
  %v127 = vpack.c.b16 %v102, %v101
  %v128 = vpack.c.b16 %v104, %v103
  %v129 = vpack.c.b16 %v106, %v105
  %v130 = vpack.c.b16 %v108, %v107
  %v131 = vpack.c.b16 %v110, %v109
  %v132 = vpack.c.b16 %v112, %v111
  %v133 = vpack.c.b16 %v114, %v113
  %v134 = vpack.c.b16 %v116, %v115
  %v135 = vpack.c.b16 %v118, %v117
  %v136 = vpack.c.b16 %v120, %v119
  %153 = vmatprep.subr.bf16.mxu0 0
  %154 = vmatpush1.bf16.msra.mxu0 %v128
  %155 = vmatprep.subr.bf16.mxu0 0
  %156 = vmatpush1.bf16.msra.mxu0 %v127
  %157 = vmatprep.subr.bf16.mxu0 0
  %158 = vmatpush1.bf16.msra.mxu0 %v126
  %159 = vmatprep.subr.bf16.mxu0 0
  %160 = vmatpush1.bf16.msra.mxu0 %v125
  %161 = vmatprep.subr.bf16.mxu0 0
  %162 = vmatpush1.bf16.msra.mxu0 %v124
  %163 = vmatprep.subr.bf16.mxu0 0
  %164 = vmatpush1.bf16.msra.mxu0 %v123
  %165 = vmatprep.subr.bf16.mxu0 0
  %166 = vmatpush1.bf16.msra.mxu0 %v122
  %167 = vmatprep.subr.bf16.mxu0 0
  %168 = vmatpush1.bf16.msra.mxu0 %v121
  %169 = vmatprep.subr.bf16.mxu0 0
  %170 = vmatpush2.bf16.msra.mxu0 %v136
  %171 = vmatprep.subr.bf16.mxu0 0
  %172 = vmatpush2.bf16.msra.mxu0 %v135
  %173 = vmatprep.subr.bf16.mxu0 0
  %174 = vmatpush2.bf16.msra.mxu0 %v134
  %175 = vmatprep.subr.bf16.mxu0 0
  %176 = vmatpush2.bf16.msra.mxu0 %v133
  %177 = vmatprep.subr.bf16.mxu0 0
  %178 = vmatpush2.bf16.msra.mxu0 %v132
  %179 = vmatprep.subr.bf16.mxu0 0
  %180 = vmatpush2.bf16.msra.mxu0 %v131
  %181 = vmatprep.subr.bf16.mxu0 0
  %182 = vmatpush2.bf16.msra.mxu0 %v130
  %183 = vmatprep.subr.bf16.mxu0 0
  %184 = vmatpush2.bf16.msra.mxu0 %v129
  %185 = vmatprep.mubr.bf16.mxu0 %v24
  %186 = vmatmul.mubr.bf16.gmra.mxu0 %v23
  %v187 = vpop.f32.mrf.mxu0
  %v188 = vadd.f32 0.0, %v187
  %v189 = vpop.f32.mrf.mxu0
  %v190 = vpop.f32.mrf.mxu0
  %v191 = vpop.f32.mrf.mxu0
  %192 = vdwg.mxu0
  %v193 = vadd.f32 %v20, %v188
  %194 = vst [vmem:[#allocation2] sm:$0xff] %v193
  // Predicated region
  $region18: #{clip_vision_encoder.13} parent=0 // pred_check
    %p195 = pneg %p15
  $region19: #{clip_vision_encoder.13} parent=0 // pred_check_branch
    %197 = sbr.rel (%p195) target = $region21
  $region20: #{clip_vision_encoder.13} parent=0 // pred_region
    %v198 = vld [vmem:[#allocation2] sm:$0xff]
    %v199 = vld [vmem:[%s2] sm:$0x1]
    %v201 = vlaneseq
    %v202 = vshrl.u32 %v201, 7
    %v203 = vsub.s32 0, %v202
    %v204 = vrot.slane %v199, %v203
    %v206 = vadd.f32 %v198, %v204
    %207 = vst [vmem:[%s3] sm:$0xff] %v206
  $region21: #{clip_vision_encoder.13} parent=0 // pred_fallthru
    _
  // Predicated region
  $region22: #{clip_vision_encoder.13} parent=0 // pred_check
    _
  $region23: #{clip_vision_encoder.13} parent=0 // pred_check_branch
    %209 = sbr.rel (0) target = $region25
  $region24: #{clip_vision_encoder.13} parent=0 // pred_region
    _
  $region25: #{clip_vision_encoder.13} parent=0 // pred_fallthru
    _
  // Predicated region
  $region26: #{clip_vision_encoder.13} parent=0 // pred_check
    _
  $region27: #{clip_vision_encoder.13} parent=0 // pred_check_branch
    %211 = sbr.rel (0) target = $region29
  $region28: #{clip_vision_encoder.13} parent=0 // pred_region
    _
  $region29: #{clip_vision_encoder.13} parent=0 // pred_fallthru
    _

// kernel: clip_vision_encoder.15
$region0: #{clip_vision_encoder.15}
  #allocation0 [shape = 'u32[]', space=smem, size = 0x4, offset = 0x4, fixed_abs, tag = 'smem constant byte address 0x4 - core index']
  #allocation1 [shape = 'u32[144,128]{1,0:T(1,128)}', space=vmem, size = 0x12000, scoped, tag = 'internal scratch']
  #allocation2 [shape = 'bf16[10,128]{1,0:T(8,128)(2,1)}', space=vmem, size = 0x1000, scoped, tag = 'scratch operand']
  %s0 = inlined_call_operand.vmem [shape: f32[10,128], index: 0, kind: input, shape index: {}]
  %s1 = inlined_call_operand.vmem [shape: f32[1,128], index: 1, kind: input, shape index: {}]
  %s2 = inlined_call_operand.vmem [shape: f32[1,128], index: 2, kind: input, shape index: {}]
  %s3 = inlined_call_operand.vmem [shape: bf16[128,384], index: 3, kind: input, shape index: {}]
  %s4 = inlined_call_operand.vmem [shape: f32[1,384], index: 4, kind: input, shape index: {}]
  %s5 = inlined_call_operand.vmem [shape: bf16[10,384], index: 5, kind: output, shape index: {}]
  %s6 = sld [smem:[#allocation0]]
  $region135: #{clip_vision_encoder.15} parent=0
    _
  %s8 = ssub.s32 1, %s6
  %s9 = scalar_select 0, %s8, %s6
  $region1: #{clip_vision_encoder.15} parent=0
    #allocation3 [shape = 'u8[65536]{0}', space=vmem, size = 0x10000, scoped, tag = 'input window, operand 3']
    #allocation4 [shape = 'u8[8192]{0}', space=vmem, size = 0x2000, scoped, tag = 'output window, operand 0']
    loop: start=0, step=1, limit=5
    $region2: #{clip_vision_encoder.15} parent=1 // loop_pre_header
      _
    $region3: #{clip_vision_encoder.15} parent=1 // loop_header
      %s11 = sphi 0, %s15
      %p12 = scmp.ge.s32.totalorder %s11, 5
      %s18 = sphi 0, %s30
      %s19 = sphi 0, %s26
      %s20 = sphi 0, %s18
      %s21 = sphi 0, %s19
      %s22 = sphi 0, %s20
      %s23 = sphi 0, %s21
      %s33 = sphi 0, %s35
      %s36 = sphi 0, %s33
      %s37 = sphi 0, %s36
      %s53 = sphi 0, %s37
      %s57 = sphi 0, %s57
      %s59 = sphi 0, %s57
      %s60 = sphi 0, %s59
      %s74 = sphi 0, %s60
      %s78 = sphi 0, %s78
      %s80 = sphi 0, %s78
      %s81 = sphi 0, %s80
      %s95 = sphi 0, %s81
      %s101 = sphi 0, %s103
      %s104 = sphi 0, %s101
      %s105 = sphi 0, %s104
      %s121 = sphi 0, %s105
      %s127 = sphi 0, %s129
      %s130 = sphi 0, %s127
      %s131 = sphi 0, %s130
      %s147 = sphi 0, %s131
      %s155 = sphi 0, %s157
      %s158 = sphi 0, %s155
      %s159 = sphi 0, %s158
      %s175 = sphi 0, %s159
    $region4: #{clip_vision_encoder.15} parent=1 // loop_header_branch
      %14 = sbr.rel (%p12) target = $region8
    $region5: #{clip_vision_encoder.15} parent=1 // loop_body
      %s16 = ssub.s32 %s11, 1
      %s17 = ssub.s32 %s11, 2
      %s24 = sadd.s32 1, %s19
      %p25 = scmp.ge.s32.totalorder %s24, 3
      %s26 = scalar_select %p25, 0, %s24
      %s27 = sadd.s32 1, %s18
      %s28 = scalar_select %p25, %s27, %s18
      %p29 = scmp.ge.s32.totalorder %s28, 1
      %s30 = scalar_select %p29, 0, %s28
      %s31 = ssub.s32 %s18, %s30
      %p32 = scmp.eq.s32.totalorder %s31, 0
      %s34 = sadd.s32 %s33, 1
      %s35 = scalar_select %p32, %s33, %s34
      %p38 = pneg %p32
      %p39 = scmp.eq.s32.totalorder %s11, 2
      %p40 = por %p38, %p39
      %p41 = scmp.ne.s32.totalorder %s33, %s36
      %p42 = scmp.eq.s32.totalorder %s11, 0
      %p43 = por %p41, %p42
      %p44 = scmp.ne.s32.totalorder %s33, %s36
      %p45 = scmp.eq.s32.totalorder %s16, 2
      %p46 = por %p44, %p45
      %p47 = scmp.ne.s32.totalorder %s36, %s37
      %p48 = scmp.eq.s32.totalorder %s16, 0
      %p49 = por %p47, %p48
      %p50 = scmp.ne.s32.totalorder %s36, %s37
      %p51 = scmp.eq.s32.totalorder %s17, 2
      %p52 = por %p50, %p51
      %p54 = scmp.ne.s32.totalorder %s37, %s53
      %p55 = scmp.eq.s32.totalorder %s17, 0
      %p56 = por %p54, %p55
      %s58 = sadd.s32 %s57, 1
      %p61 = scmp.eq.s32.totalorder %s11, 2
      %p62 = scmp.ne.s32.totalorder %s57, %s59
      %p63 = scmp.eq.s32.totalorder %s11, 0
      %p64 = por %p62, %p63
      %p65 = scmp.ne.s32.totalorder %s57, %s59
      %p66 = scmp.eq.s32.totalorder %s16, 2
      %p67 = por %p65, %p66
      %p68 = scmp.ne.s32.totalorder %s59, %s60
      %p69 = scmp.eq.s32.totalorder %s16, 0
      %p70 = por %p68, %p69
      %p71 = scmp.ne.s32.totalorder %s59, %s60
      %p72 = scmp.eq.s32.totalorder %s17, 2
      %p73 = por %p71, %p72
      %p75 = scmp.ne.s32.totalorder %s60, %s74
      %p76 = scmp.eq.s32.totalorder %s17, 0
      %p77 = por %p75, %p76
      %s79 = sadd.s32 %s78, 1
      %p82 = scmp.eq.s32.totalorder %s11, 2
      %p83 = scmp.ne.s32.totalorder %s78, %s80
      %p84 = scmp.eq.s32.totalorder %s11, 0
      %p85 = por %p83, %p84
      %p86 = scmp.ne.s32.totalorder %s78, %s80
      %p87 = scmp.eq.s32.totalorder %s16, 2
      %p88 = por %p86, %p87
      %p89 = scmp.ne.s32.totalorder %s80, %s81
      %p90 = scmp.eq.s32.totalorder %s16, 0
      %p91 = por %p89, %p90
      %p92 = scmp.ne.s32.totalorder %s80, %s81
      %p93 = scmp.eq.s32.totalorder %s17, 2
      %p94 = por %p92, %p93
      %p96 = scmp.ne.s32.totalorder %s81, %s95
      %p97 = scmp.eq.s32.totalorder %s17, 0
      %p98 = por %p96, %p97
      %s99 = ssub.s32 %s19, %s26
      %p100 = scmp.eq.s32.totalorder %s99, 0
      %s102 = sadd.s32 %s101, 1
      %s103 = scalar_select %p100, %s101, %s102
      %p106 = pneg %p100
      %p107 = scmp.eq.s32.totalorder %s11, 2
      %p108 = por %p106, %p107
      %p109 = scmp.ne.s32.totalorder %s101, %s104
      %p110 = scmp.eq.s32.totalorder %s11, 0
      %p111 = por %p109, %p110
      %p112 = scmp.ne.s32.totalorder %s101, %s104
      %p113 = scmp.eq.s32.totalorder %s16, 2
      %p114 = por %p112, %p113
      %p115 = scmp.ne.s32.totalorder %s104, %s105
      %p116 = scmp.eq.s32.totalorder %s16, 0
      %p117 = por %p115, %p116
      %p118 = scmp.ne.s32.totalorder %s104, %s105
      %p119 = scmp.eq.s32.totalorder %s17, 2
      %p120 = por %p118, %p119
      %p122 = scmp.ne.s32.totalorder %s105, %s121
      %p123 = scmp.eq.s32.totalorder %s17, 0
      %p124 = por %p122, %p123
      %s125 = ssub.s32 %s19, %s26
      %p126 = scmp.eq.s32.totalorder %s125, 0
      %s128 = sadd.s32 %s127, 1
      %s129 = scalar_select %p126, %s127, %s128
      %p132 = pneg %p126
      %p133 = scmp.eq.s32.totalorder %s11, 2
      %p134 = por %p132, %p133
      %p135 = scmp.ne.s32.totalorder %s127, %s130
      %p136 = scmp.eq.s32.totalorder %s11, 0
      %p137 = por %p135, %p136
      %p138 = scmp.ne.s32.totalorder %s127, %s130
      %p139 = scmp.eq.s32.totalorder %s16, 2
      %p140 = por %p138, %p139
      %p141 = scmp.ne.s32.totalorder %s130, %s131
      %p142 = scmp.eq.s32.totalorder %s16, 0
      %p143 = por %p141, %p142
      %p144 = scmp.ne.s32.totalorder %s130, %s131
      %p145 = scmp.eq.s32.totalorder %s17, 2
      %p146 = por %p144, %p145
      %p148 = scmp.ne.s32.totalorder %s131, %s147
      %p149 = scmp.eq.s32.totalorder %s17, 0
      %p150 = por %p148, %p149
      %s151 = ssub.s32 %s18, %s30
      %s152 = ssub.s32 %s19, %s26
      %s153 = sor.u32 %s151, %s152
      %p154 = scmp.eq.s32.totalorder %s153, 0
      %s156 = sadd.s32 %s155, 1
      %s157 = scalar_select %p154, %s155, %s156
      %p160 = pneg %p154
      %p161 = scmp.eq.s32.totalorder %s11, 2
      %p162 = por %p160, %p161
      %p163 = scmp.ne.s32.totalorder %s155, %s158
      %p164 = scmp.eq.s32.totalorder %s11, 0
      %p165 = por %p163, %p164
      %p166 = scmp.ne.s32.totalorder %s155, %s158
      %p167 = scmp.eq.s32.totalorder %s16, 2
      %p168 = por %p166, %p167
      %p169 = scmp.ne.s32.totalorder %s158, %s159
      %p170 = scmp.eq.s32.totalorder %s16, 0
      %p171 = por %p169, %p170
      %p172 = scmp.ne.s32.totalorder %s158, %s159
      %p173 = scmp.eq.s32.totalorder %s17, 2
      %p174 = por %p172, %p173
      %p176 = scmp.ne.s32.totalorder %s159, %s175
      %p177 = scmp.eq.s32.totalorder %s17, 0
      %p178 = por %p176, %p177
      %p179 = scmp.le.s32.totalorder 1, %s11
      %p180 = scmp.lt.s32.totalorder %s11, 4
      %p181 = pnand %p179, %p180
      %p182 = pneg %p181
      // Predicated region
      $region9: #{clip_vision_encoder.15} parent=5 // pred_check
        _
      $region10: #{clip_vision_encoder.15} parent=5 // pred_check_branch
        %184 = sbr.rel (%p181) target = $region12
      $region11: #{clip_vision_encoder.15} parent=5 // pred_region
        %s185 = ssub.s32 %s11, 1
        // Predicated region
        $region13: #{clip_vision_encoder.15} parent=11 // pred_check
          %p186 = pneg %p49
        $region14: #{clip_vision_encoder.15} parent=11 // pred_check_branch
          %188 = sbr.rel (%p186) target = $region16
        $region15: #{clip_vision_encoder.15} parent=11 // pred_region
          %s189 = smul.u32 2, %s20
          %p190 = scmp.lt.s32.totalorder %s189, 1
          %s191 = scalar_select %p190, %s189, 1
          %s192 = smul.addr %s191, 8
          %s193 = scalar_lea.vmem %s0, %s192
          %s194 = smul.u32 2, %s20
        $region16: #{clip_vision_encoder.15} parent=11 // pred_fallthru
          _
        // Predicated region
        $region17: #{clip_vision_encoder.15} parent=11 // pred_check
          %p195 = pneg %p70
        $region18: #{clip_vision_encoder.15} parent=11 // pred_check_branch
          %197 = sbr.rel (%p195) target = $region20
        $region19: #{clip_vision_encoder.15} parent=11 // pred_region
          _
        $region20: #{clip_vision_encoder.15} parent=11 // pred_fallthru
          _
        // Predicated region
        $region21: #{clip_vision_encoder.15} parent=11 // pred_check
          %p198 = pneg %p91
        $region22: #{clip_vision_encoder.15} parent=11 // pred_check_branch
          %200 = sbr.rel (%p198) target = $region24
        $region23: #{clip_vision_encoder.15} parent=11 // pred_region
          _
        $region24: #{clip_vision_encoder.15} parent=11 // pred_fallthru
          _
      $region12: #{clip_vision_encoder.15} parent=5 // pred_fallthru
        _
      %p201 = scmp.lt.s32.totalorder %s11, 3
      // Predicated region
      $region25: #{clip_vision_encoder.15} parent=5 // pred_check
        %p202 = pneg %p201
      $region26: #{clip_vision_encoder.15} parent=5 // pred_check_branch
        %204 = sbr.rel (%p202) target = $region28
      $region27: #{clip_vision_encoder.15} parent=5 // pred_region
        // Predicated region
        $region29: #{clip_vision_encoder.15} parent=27 // pred_check
          %p205 = pneg %p111
        $region30: #{clip_vision_encoder.15} parent=27 // pred_check_branch
          %207 = sbr.rel (%p205) target = $region32
        $region31: #{clip_vision_encoder.15} parent=27 // pred_region
          %s208 = sand.u32 %s101, 1
          %s209 = sand.u32 %s101, 1
          %s210 = smul.addr %s209, 64
          %s211 = scalar_lea.vmem [#allocation3], %s210
          %s212 = smul.addr %s19, 4
          %s213 = scalar_lea.vmem %s3, %s212
          // Predicated region
          $region33: #{clip_vision_encoder.15} parent=31 // pred_check
            _
          $region34: #{clip_vision_encoder.15} parent=31 // pred_check_branch
            %215 = sbr.rel (0) target = $region36
          $region35: #{clip_vision_encoder.15} parent=31 // pred_region
            // Predicated region
            $region37: #{clip_vision_encoder.15} parent=35 // pred_check
              _
            $region38: #{clip_vision_encoder.15} parent=35 // pred_check_branch
              %217 = sbr.rel target = $region40
            $region39: #{clip_vision_encoder.15} parent=35 // pred_region
              // Predicated region
              $region52: #{clip_vision_encoder.15} parent=39 // pred_check
                _
              $region53: #{clip_vision_encoder.15} parent=39 // pred_check_branch
                %263 = sbr.rel (0) target = $region55
              $region54: #{clip_vision_encoder.15} parent=39 // pred_region
                loop: start=0, step=1, limit=1
                $region56: #{clip_vision_encoder.15} parent=54 // loop_pre_header
                  _
                $region57: #{clip_vision_encoder.15} parent=54 // loop_header
                  %s265 = sphi 0, %s269
                  %p266 = scmp.ge.s32.totalorder %s265, 1
                  %s270 = sphi %s213, %s213
                  %s271 = sphi %s211, %s211
                $region58: #{clip_vision_encoder.15} parent=54 // loop_header_branch
                  %268 = sbr.rel (%p266) target = $region62
                $region59: #{clip_vision_encoder.15} parent=54 // loop_body
                  _
                $region60: #{clip_vision_encoder.15} parent=54 // loop_footer
                  %s269 = sadd.s32 1, %s265
                $region61: #{clip_vision_encoder.15} parent=54 // loop_footer_branch
                  %264 = sbr.rel target = $region57
                $region62: #{clip_vision_encoder.15} parent=54 // loop_exit
                  _
                %s273 = ssub.s32 16, 1
                loop: start=0, step=1, limit=1
                $region63: #{clip_vision_encoder.15} parent=54 // loop_pre_header
                  _
                $region64: #{clip_vision_encoder.15} parent=54 // loop_header
                  %s275 = sphi 0, %s279
                  %p276 = scmp.ge.s32.totalorder %s275, 1
                  %s280 = sphi %s213, %s213
                  %s281 = sphi %s211, %s211
                $region65: #{clip_vision_encoder.15} parent=54 // loop_header_branch
                  %278 = sbr.rel (%p276) target = $region69
                $region66: #{clip_vision_encoder.15} parent=54 // loop_body
                  %v282 = vld [vmem:[%s280] sm:%s273]
                  %283 = vst [vmem:[%s281] sm:%s273] %v282
                  %v284 = vld [vmem:[%s280 + $0xc] sm:%s273]
                  %285 = vst [vmem:[%s281 + $0x4] sm:%s273] %v284
                  %v286 = vld [vmem:[%s280 + $0x18] sm:%s273]
                  %287 = vst [vmem:[%s281 + $0x8] sm:%s273] %v286
                  %v288 = vld [vmem:[%s280 + $0x24] sm:%s273]
                  %289 = vst [vmem:[%s281 + $0xc] sm:%s273] %v288
                  %v290 = vld [vmem:[%s280 + $0x30] sm:%s273]
                  %291 = vst [vmem:[%s281 + $0x10] sm:%s273] %v290
                  %v292 = vld [vmem:[%s280 + $0x3c] sm:%s273]
                  %293 = vst [vmem:[%s281 + $0x14] sm:%s273] %v292
                  %v294 = vld [vmem:[%s280 + $0x48] sm:%s273]
                  %295 = vst [vmem:[%s281 + $0x18] sm:%s273] %v294
                  %v296 = vld [vmem:[%s280 + $0x54] sm:%s273]
                  %297 = vst [vmem:[%s281 + $0x1c] sm:%s273] %v296
                  %v298 = vld [vmem:[%s280 + $0x60] sm:%s273]
                  %299 = vst [vmem:[%s281 + $0x20] sm:%s273] %v298
                  %v300 = vld [vmem:[%s280 + $0x6c] sm:%s273]
                  %301 = vst [vmem:[%s281 + $0x24] sm:%s273] %v300
                  %v302 = vld [vmem:[%s280 + $0x78] sm:%s273]
                  %303 = vst [vmem:[%s281 + $0x28] sm:%s273] %v302
                  %v304 = vld [vmem:[%s280 + $0x84] sm:%s273]
                  %305 = vst [vmem:[%s281 + $0x2c] sm:%s273] %v304
                  %v306 = vld [vmem:[%s280 + $0x90] sm:%s273]
                  %307 = vst [vmem:[%s281 + $0x30] sm:%s273] %v306
                  %v308 = vld [vmem:[%s280 + $0x9c] sm:%s273]
                  %309 = vst [vmem:[%s281 + $0x34] sm:%s273] %v308
                  %v310 = vld [vmem:[%s280 + $0xa8] sm:%s273]
                  %311 = vst [vmem:[%s281 + $0x38] sm:%s273] %v310
                  %v312 = vld [vmem:[%s280 + $0xb4] sm:%s273]
                  %313 = vst [vmem:[%s281 + $0x3c] sm:%s273] %v312
                $region67: #{clip_vision_encoder.15} parent=54 // loop_footer
                  %s279 = sadd.s32 1, %s275
                $region68: #{clip_vision_encoder.15} parent=54 // loop_footer_branch
                  %274 = sbr.rel target = $region64
                $region69: #{clip_vision_encoder.15} parent=54 // loop_exit
                  _
              $region55: #{clip_vision_encoder.15} parent=39 // pred_fallthru
                _
            $region40: #{clip_vision_encoder.15} parent=35 // pred_fallthru
              _
            // Predicated region
            $region41: #{clip_vision_encoder.15} parent=35 // pred_check
              _
            $region42: #{clip_vision_encoder.15} parent=35 // pred_check_branch
              %219 = sbr.rel (0) target = $region44
            $region43: #{clip_vision_encoder.15} parent=35 // pred_region
              %s221 = ssub.s32 16, 1
              loop: start=0, step=1, limit=1
              $region45: #{clip_vision_encoder.15} parent=43 // loop_pre_header
                _
              $region46: #{clip_vision_encoder.15} parent=43 // loop_header
                %s223 = sphi 0, %s227
                %p224 = scmp.ge.s32.totalorder %s223, 1
                %s228 = sphi %s213, %s213
                %s229 = sphi %s211, %s211
              $region47: #{clip_vision_encoder.15} parent=43 // loop_header_branch
                %226 = sbr.rel (%p224) target = $region51
              $region48: #{clip_vision_encoder.15} parent=43 // loop_body
                %v230 = vld [vmem:[%s228] sm:%s221]
                %231 = vst [vmem:[%s229] sm:%s221] %v230
                %v232 = vld [vmem:[%s228 + $0xc] sm:%s221]
                %233 = vst [vmem:[%s229 + $0x4] sm:%s221] %v232
                %v234 = vld [vmem:[%s228 + $0x18] sm:%s221]
                %235 = vst [vmem:[%s229 + $0x8] sm:%s221] %v234
                %v236 = vld [vmem:[%s228 + $0x24] sm:%s221]
                %237 = vst [vmem:[%s229 + $0xc] sm:%s221] %v236
                %v238 = vld [vmem:[%s228 + $0x30] sm:%s221]
                %239 = vst [vmem:[%s229 + $0x10] sm:%s221] %v238
                %v240 = vld [vmem:[%s228 + $0x3c] sm:%s221]
                %241 = vst [vmem:[%s229 + $0x14] sm:%s221] %v240
                %v242 = vld [vmem:[%s228 + $0x48] sm:%s221]
                %243 = vst [vmem:[%s229 + $0x18] sm:%s221] %v242
                %v244 = vld [vmem:[%s228 + $0x54] sm:%s221]
                %245 = vst [vmem:[%s229 + $0x1c] sm:%s221] %v244
                %v246 = vld [vmem:[%s228 + $0x60] sm:%s221]
                %247 = vst [vmem:[%s229 + $0x20] sm:%s221] %v246
                %v248 = vld [vmem:[%s228 + $0x6c] sm:%s221]
                %249 = vst [vmem:[%s229 + $0x24] sm:%s221] %v248
                %v250 = vld [vmem:[%s228 + $0x78] sm:%s221]
                %251 = vst [vmem:[%s229 + $0x28] sm:%s221] %v250
                %v252 = vld [vmem:[%s228 + $0x84] sm:%s221]
                %253 = vst [vmem:[%s229 + $0x2c] sm:%s221] %v252
                %v254 = vld [vmem:[%s228 + $0x90] sm:%s221]
                %255 = vst [vmem:[%s229 + $0x30] sm:%s221] %v254
                %v256 = vld [vmem:[%s228 + $0x9c] sm:%s221]
                %257 = vst [vmem:[%s229 + $0x34] sm:%s221] %v256
                %v258 = vld [vmem:[%s228 + $0xa8] sm:%s221]
                %259 = vst [vmem:[%s229 + $0x38] sm:%s221] %v258
                %v260 = vld [vmem:[%s228 + $0xb4] sm:%s221]
                %261 = vst [vmem:[%s229 + $0x3c] sm:%s221] %v260
              $region49: #{clip_vision_encoder.15} parent=43 // loop_footer
                %s227 = sadd.s32 1, %s223
              $region50: #{clip_vision_encoder.15} parent=43 // loop_footer_branch
                %222 = sbr.rel target = $region46
              $region51: #{clip_vision_encoder.15} parent=43 // loop_exit
                _
            $region44: #{clip_vision_encoder.15} parent=35 // pred_fallthru
              _
          $region36: #{clip_vision_encoder.15} parent=31 // pred_fallthru
            _
          %314 = vnop
        $region32: #{clip_vision_encoder.15} parent=27 // pred_fallthru
          _
        // Predicated region
        $region70: #{clip_vision_encoder.15} parent=27 // pred_check
          %p315 = pneg %p137
        $region71: #{clip_vision_encoder.15} parent=27 // pred_check_branch
          %317 = sbr.rel (%p315) target = $region73
        $region72: #{clip_vision_encoder.15} parent=27 // pred_region
          %p318 = scmp.lt.s32.totalorder %s19, 2
          %s319 = scalar_select %p318, %s19, 2
          %s320 = scalar_lea.vmem %s4, %s319
        $region73: #{clip_vision_encoder.15} parent=27 // pred_fallthru
          _
      $region28: #{clip_vision_encoder.15} parent=5 // pred_fallthru
        _
      %p321 = scmp.le.s32.totalorder 1, %s11
      %p322 = scmp.lt.s32.totalorder %s11, 4
      %p323 = pnand %p321, %p322
      %p324 = pneg %p323
      // Predicated region
      $region74: #{clip_vision_encoder.15} parent=5 // pred_check
        _
      $region75: #{clip_vision_encoder.15} parent=5 // pred_check_branch
        %326 = sbr.rel (%p323) target = $region77
      $region76: #{clip_vision_encoder.15} parent=5 // pred_region
        %s327 = ssub.s32 %s11, 1
        %s328 = sand.u32 %s104, 1
        %s329 = sand.u32 %s104, 1
        %s330 = smul.addr %s329, 64
        %s331 = scalar_lea.vmem [#allocation3], %s330
        // Predicated region
        $region78: #{clip_vision_encoder.15} parent=76 // pred_check
          %p332 = pneg %p117
        $region79: #{clip_vision_encoder.15} parent=76 // pred_check_branch
          %334 = sbr.rel (%p332) target = $region81
        $region80: #{clip_vision_encoder.15} parent=76 // pred_region
          _
        $region81: #{clip_vision_encoder.15} parent=76 // pred_fallthru
          _
        %s335 = smul.u32 2, %s20
        %p336 = scmp.lt.s32.totalorder %s335, 1
        %s337 = scalar_select %p336, %s335, 1
        %s338 = smul.addr %s337, 8
        %s339 = scalar_lea.vmem %s0, %s338
        %p340 = pneg %p49
        %p341 = pneg %p46
        %p342 = pneg %p70
        %p343 = pneg %p67
        %p344 = pneg %p91
        %p345 = pneg %p88
        %s346 = sand.u32 %s104, 1
        %s347 = sand.u32 %s104, 1
        %s348 = smul.addr %s347, 64
        %s349 = scalar_lea.vmem [#allocation3], %s348
        %p350 = pneg %p117
        %p351 = pneg %p114
        %p352 = scmp.lt.s32.totalorder %s21, 2
        %s353 = scalar_select %p352, %s21, 2
        %s354 = scalar_lea.vmem %s4, %s353
        %p355 = pneg %p143
        %p356 = pneg %p140
        %p357 = pneg %p171
        %p358 = pneg %p168
        %s359 = sand.u32 %s158, 1
        %s360 = sand.u32 %s158, 1
        %s361 = smul.addr %s360, 8
        %s362 = scalar_lea.vmem [#allocation4], %s361
        %s363 = smul.u32 2, %s20
        %p364 = scmp.lt.s32.totalorder %s363, 1
        %s365 = scalar_select %p364, %s363, 1
        %s366 = smul.addr %s365, 8
        %s367 = scalar_lea.vmem %s0, %s366
        %s368 = smul.u32 2, %s20
        %p369 = scmp.lt.s32.totalorder %s21, 2
        %s370 = scalar_select %p369, %s21, 2
        %s371 = scalar_lea.vmem %s4, %s370
        %s372 = smul.u32 2, %s20
        %p374 = scmp.eq.s32.totalorder %s21, 0
        // Predicated region
        $region82: #{clip_vision_encoder.15} parent=76 // pred_check
          %p375 = pneg %p374
        $region83: #{clip_vision_encoder.15} parent=76 // pred_check_branch
          %377 = sbr.rel (%p375) target = $region85
        $region84: #{clip_vision_encoder.15} parent=76 // pred_region
          %v378 = vld [vmem:[%s367] sm:$0xff]
          %v379 = vld [vmem:[%s367 + $0x8] sm:$0x3]
          %380 = vadd.xlane.f32.xlu0 %v378
          %v381 = vpop.xlane.xlu0 %380
          %vm382 = vcmask 1041408
          %v383 = vsel %vm382, %v379, 0.0
          %384 = vadd.xlane.f32.xlu0 %v383
          %v385 = vpop.xlane.xlu0 %384
          %v386 = vrcp.pop 128.0
          %v387 = vmul.f32 %v381, %v386
          %v388 = vmul.f32 %v385, %v386
          %v389 = vsub.f32 %v378, %v387
          %v390 = vsub.f32 %v379, %v388
          %v391 = vmul.f32 %v389, %v389
          %v392 = vmul.f32 %v390, %v390
          %393 = vadd.xlane.f32.xlu0 %v391
          %v394 = vpop.xlane.xlu0 %393
          %v395 = vsel %vm382, %v392, 0.0
          %396 = vadd.xlane.f32.xlu0 %v395
          %v397 = vpop.xlane.xlu0 %396
          %v398 = vmul.f32 %v394, %v386
          %v399 = vmul.f32 %v397, %v386
          %v400 = vadd.f32 %v398, 1e-05
          %v401 = vadd.f32 %v399, 1e-05
          %v402 = vrsqrt.pop %v400
          %v403 = vrsqrt.pop %v401
          %v404 = vmul.f32 %v389, %v402
          %v405 = vmul.f32 %v390, %v403
          %v406 = vld [vmem:[%s1] sm:$0x1]
          %v408 = vlaneseq
          %v409 = vshrl.u32 %v408, 7
          %v410 = vsub.s32 0, %v409
          %v411 = vrot.slane %v406, %v410
          %v413 = vmul.f32 %v404, %v411
          %v414 = vmul.f32 %v405, %v411
          %v415 = vld [vmem:[%s2] sm:$0x1]
          %v417 = vlaneseq
          %v418 = vshrl.u32 %v417, 7
          %v419 = vsub.s32 0, %v418
          %v420 = vrot.slane %v415, %v419
          %v422 = vadd.f32 %v413, %v420
          %v423 = vadd.f32 %v414, %v420
          %v424 = vpack.c.bf16 %v423, %v422
          %v426 = vunpack.c.l.b16 %v424
          %v427 = vunpack.c.h.b16 %v424
          %v428 = vpack.c.b16 %v426, %v426
          %v429 = vpack.c.b16 %v427, %v427
          %432 = vst [vmem:[#allocation2] sm:$0xf] %v428
          %433 = vst [vmem:[#allocation2 + $0x4] sm:$0x1] %v429
        $region85: #{clip_vision_encoder.15} parent=76 // pred_fallthru
          _
        %v434 = vld [vmem:[#allocation2] sm:$0xf]
        %v435 = vld [vmem:[#allocation2 + $0x4] sm:$0x1]
        %v436 = vld [vmem:[%s331] sm:$0xf]
        %v437 = vld [vmem:[%s331 + $0x4] sm:$0xf]
        %v438 = vld [vmem:[%s331 + $0x8] sm:$0xf]
        %v439 = vld [vmem:[%s331 + $0xc] sm:$0xf]
        %v440 = vld [vmem:[%s331 + $0x10] sm:$0xf]
        %v441 = vld [vmem:[%s331 + $0x14] sm:$0xf]
        %v442 = vld [vmem:[%s331 + $0x18] sm:$0xf]
        %v443 = vld [vmem:[%s331 + $0x1c] sm:$0xf]
        %v444 = vld [vmem:[%s331 + $0x20] sm:$0xf]
        %v445 = vld [vmem:[%s331 + $0x24] sm:$0xf]
        %v446 = vld [vmem:[%s331 + $0x28] sm:$0xf]
        %v447 = vld [vmem:[%s331 + $0x2c] sm:$0xf]
        %v448 = vld [vmem:[%s331 + $0x30] sm:$0xf]
        %v449 = vld [vmem:[%s331 + $0x34] sm:$0xf]
        %v450 = vld [vmem:[%s331 + $0x38] sm:$0xf]
        %v451 = vld [vmem:[%s331 + $0x3c] sm:$0xf]
        %v452 = vld [vmem:[%s371] sm:$0x1]
        %v454 = vlaneseq
        %v455 = vshrl.u32 %v454, 7
        %v456 = vsub.s32 0, %v455
        %v457 = vrot.slane %v452, %v456
        %v461 = vunpack.c.l.b16 %v434
        %v462 = vunpack.c.l.b16 %v435
        %v463 = vpack.c.b16 %v462, %v461
        %v481 = vunpack.c.l.b16 %v436
        %v482 = vunpack.c.l.b16 %v437
        %v483 = vunpack.c.l.b16 %v438
        %v484 = vunpack.c.l.b16 %v439
        %v485 = vunpack.c.l.b16 %v440
        %v486 = vunpack.c.l.b16 %v441
        %v487 = vunpack.c.l.b16 %v442
        %v488 = vunpack.c.l.b16 %v443
        %v489 = vunpack.c.l.b16 %v444
        %v490 = vunpack.c.l.b16 %v445
        %v491 = vunpack.c.l.b16 %v446
        %v492 = vunpack.c.l.b16 %v447
        %v493 = vunpack.c.l.b16 %v448
        %v494 = vunpack.c.l.b16 %v449
        %v495 = vunpack.c.l.b16 %v450
        %v496 = vunpack.c.l.b16 %v451
        %v497 = vpack.c.b16 %v482, %v481
        %v498 = vpack.c.b16 %v484, %v483
        %v499 = vpack.c.b16 %v486, %v485
        %v500 = vpack.c.b16 %v488, %v487
        %v501 = vpack.c.b16 %v490, %v489
        %v502 = vpack.c.b16 %v492, %v491
        %v503 = vpack.c.b16 %v494, %v493
        %v504 = vpack.c.b16 %v496, %v495
        %513 = vmatprep.subr.bf16.mxu0 0
        %514 = vmatpush1.bf16.msra.mxu0 %v504
        %515 = vmatprep.subr.bf16.mxu0 0
        %516 = vmatpush1.bf16.msra.mxu0 %v503
        %517 = vmatprep.subr.bf16.mxu0 0
        %518 = vmatpush1.bf16.msra.mxu0 %v502
        %519 = vmatprep.subr.bf16.mxu0 0
        %520 = vmatpush1.bf16.msra.mxu0 %v501
        %521 = vmatprep.subr.bf16.mxu0 0
        %522 = vmatpush1.bf16.msra.mxu0 %v500
        %523 = vmatprep.subr.bf16.mxu0 0
        %524 = vmatpush1.bf16.msra.mxu0 %v499
        %525 = vmatprep.subr.bf16.mxu0 0
        %526 = vmatpush1.bf16.msra.mxu0 %v498
        %527 = vmatprep.subr.bf16.mxu0 0
        %528 = vmatpush1.bf16.msra.mxu0 %v497
        %529 = vmatprep.subr.bf16.mxu0 0
        %530 = vmatpush2.bf16.msra.mxu0 0
        %531 = vmatprep.subr.bf16.mxu0 0
        %532 = vmatpush2.bf16.msra.mxu0 0
        %533 = vmatprep.subr.bf16.mxu0 0
        %534 = vmatpush2.bf16.msra.mxu0 0
        %535 = vmatprep.subr.bf16.mxu0 0
        %536 = vmatpush2.bf16.msra.mxu0 0
        %537 = vmatprep.subr.bf16.mxu0 0
        %538 = vmatpush2.bf16.msra.mxu0 0
        %539 = vmatprep.subr.bf16.mxu0 0
        %540 = vmatpush2.bf16.msra.mxu0 0
        %541 = vmatprep.subr.bf16.mxu0 0
        %542 = vmatpush2.bf16.msra.mxu0 0
        %543 = vmatprep.subr.bf16.mxu0 0
        %544 = vmatpush2.bf16.msra.mxu0 0
        %545 = vmatprep.mubr.bf16.mxu0 0
        %546 = vmatmul.mubr.bf16.gmra.mxu0 %v463
        %v547 = vpop.f32.mrf.mxu0
        %v548 = vadd.f32 %v457, %v547
        %v549 = vpop.f32.mrf.mxu0
        %v550 = vpop.f32.mrf.mxu0
        %v551 = vadd.f32 %v457, %v550
        %v552 = vpop.f32.mrf.mxu0
        %553 = vdwg.mxu0
        %v554 = vpack.c.bf16 %v551, %v548
        %v556 = vunpack.c.l.b16 %v554
        %v557 = vunpack.c.h.b16 %v554
        %v558 = vpack.c.b16 %v556, %v556
        %v559 = vpack.c.b16 %v557, %v557
        %562 = vst [vmem:[%s362] sm:$0xf] %v558
        %563 = vst [vmem:[%s362 + $0x4] sm:$0x1] %v559
        %s564 = sand.u32 %s158, 1
        %s565 = sand.u32 %s158, 1
        %s566 = smul.addr %s565, 8
        %s567 = scalar_lea.vmem [#allocation4], %s566
        // Predicated region
        $region86: #{clip_vision_encoder.15} parent=76 // pred_check
          %p568 = pneg %p168
        $region87: #{clip_vision_encoder.15} parent=76 // pred_check_branch
          %570 = sbr.rel (%p568) target = $region89
        $region88: #{clip_vision_encoder.15} parent=76 // pred_region
          %s571 = smul.u32 2, %s20
          %s572 = smul.addr %s571, 3
          %s573 = sadd.s32 %s21, %s572
          %s574 = smul.addr %s573, 4
          %s575 = scalar_lea.vmem %s5, %s574
          // Predicated region
          $region90: #{clip_vision_encoder.15} parent=88 // pred_check
            _
          $region91: #{clip_vision_encoder.15} parent=88 // pred_check_branch
            %577 = sbr.rel (0) target = $region93
          $region92: #{clip_vision_encoder.15} parent=88 // pred_region
            // Predicated region
            $region94: #{clip_vision_encoder.15} parent=92 // pred_check
              _
            $region95: #{clip_vision_encoder.15} parent=92 // pred_check_branch
              %579 = sbr.rel target = $region97
            $region96: #{clip_vision_encoder.15} parent=92 // pred_region
              // Predicated region
              $region109: #{clip_vision_encoder.15} parent=96 // pred_check
                _
              $region110: #{clip_vision_encoder.15} parent=96 // pred_check_branch
                %597 = sbr.rel (0) target = $region112
              $region111: #{clip_vision_encoder.15} parent=96 // pred_region
                loop: start=0, step=1, limit=1
                $region113: #{clip_vision_encoder.15} parent=111 // loop_pre_header
                  _
                $region114: #{clip_vision_encoder.15} parent=111 // loop_header
                  %s599 = sphi 0, %s603
                  %p600 = scmp.ge.s32.totalorder %s599, 1
                  %s604 = sphi %s567, %s567
                  %s605 = sphi %s575, %s575
                $region115: #{clip_vision_encoder.15} parent=111 // loop_header_branch
                  %602 = sbr.rel (%p600) target = $region119
                $region116: #{clip_vision_encoder.15} parent=111 // loop_body
                  _
                $region117: #{clip_vision_encoder.15} parent=111 // loop_footer
                  %s603 = sadd.s32 1, %s599
                $region118: #{clip_vision_encoder.15} parent=111 // loop_footer_branch
                  %598 = sbr.rel target = $region114
                $region119: #{clip_vision_encoder.15} parent=111 // loop_exit
                  _
                %s607 = ssub.s32 16, 1
                loop: start=0, step=1, limit=1
                $region120: #{clip_vision_encoder.15} parent=111 // loop_pre_header
                  _
                $region121: #{clip_vision_encoder.15} parent=111 // loop_header
                  %s609 = sphi 0, %s613
                  %p610 = scmp.ge.s32.totalorder %s609, 1
                  %s614 = sphi %s567, %s567
                  %s615 = sphi %s575, %s575
                $region122: #{clip_vision_encoder.15} parent=111 // loop_header_branch
                  %612 = sbr.rel (%p610) target = $region126
                $region123: #{clip_vision_encoder.15} parent=111 // loop_body
                  %v616 = vld [vmem:[%s614] sm:%s607]
                  %617 = vst [vmem:[%s615] sm:%s607] %v616
                  %v618 = vld [vmem:[%s614 + $0x4] sm:%s607]
                  %619 = vst [vmem:[%s615 + $0xc] sm:%s607] %v618
                $region124: #{clip_vision_encoder.15} parent=111 // loop_footer
                  %s613 = sadd.s32 1, %s609
                $region125: #{clip_vision_encoder.15} parent=111 // loop_footer_branch
                  %608 = sbr.rel target = $region121
                $region126: #{clip_vision_encoder.15} parent=111 // loop_exit
                  _
              $region112: #{clip_vision_encoder.15} parent=96 // pred_fallthru
                _
            $region97: #{clip_vision_encoder.15} parent=92 // pred_fallthru
              _
            // Predicated region
            $region98: #{clip_vision_encoder.15} parent=92 // pred_check
              _
            $region99: #{clip_vision_encoder.15} parent=92 // pred_check_branch
              %581 = sbr.rel (0) target = $region101
            $region100: #{clip_vision_encoder.15} parent=92 // pred_region
              %s583 = ssub.s32 16, 1
              loop: start=0, step=1, limit=1
              $region102: #{clip_vision_encoder.15} parent=100 // loop_pre_header
                _
              $region103: #{clip_vision_encoder.15} parent=100 // loop_header
                %s585 = sphi 0, %s589
                %p586 = scmp.ge.s32.totalorder %s585, 1
                %s590 = sphi %s567, %s567
                %s591 = sphi %s575, %s575
              $region104: #{clip_vision_encoder.15} parent=100 // loop_header_branch
                %588 = sbr.rel (%p586) target = $region108
              $region105: #{clip_vision_encoder.15} parent=100 // loop_body
                %v592 = vld [vmem:[%s590] sm:%s583]
                %593 = vst [vmem:[%s591] sm:%s583] %v592
                %v594 = vld [vmem:[%s590 + $0x4] sm:%s583]
                %595 = vst [vmem:[%s591 + $0xc] sm:%s583] %v594
              $region106: #{clip_vision_encoder.15} parent=100 // loop_footer
                %s589 = sadd.s32 1, %s585
              $region107: #{clip_vision_encoder.15} parent=100 // loop_footer_branch
                %584 = sbr.rel target = $region103
              $region108: #{clip_vision_encoder.15} parent=100 // loop_exit
                _
            $region101: #{clip_vision_encoder.15} parent=92 // pred_fallthru
              _
          $region93: #{clip_vision_encoder.15} parent=88 // pred_fallthru
            _
          %620 = vnop
        $region89: #{clip_vision_encoder.15} parent=76 // pred_fallthru
          _
      $region77: #{clip_vision_encoder.15} parent=5 // pred_fallthru
        _
      %p621 = scmp.le.s32.totalorder 2, %s11
      // Predicated region
      $region127: #{clip_vision_encoder.15} parent=5 // pred_check
        %p622 = pneg %p621
      $region128: #{clip_vision_encoder.15} parent=5 // pred_check_branch
        %624 = sbr.rel (%p622) target = $region130
      $region129: #{clip_vision_encoder.15} parent=5 // pred_region
        %s625 = ssub.s32 %s11, 2
        // Predicated region
        $region131: #{clip_vision_encoder.15} parent=129 // pred_check
          %p626 = pneg %p174
        $region132: #{clip_vision_encoder.15} parent=129 // pred_check_branch
          %628 = sbr.rel (%p626) target = $region134
        $region133: #{clip_vision_encoder.15} parent=129 // pred_region
          %s629 = sand.u32 %s159, 1
          %s630 = sand.u32 %s159, 1
          %s631 = smul.addr %s630, 8
          %s632 = scalar_lea.vmem [#allocation4], %s631
        $region134: #{clip_vision_encoder.15} parent=129 // pred_fallthru
          _
      $region130: #{clip_vision_encoder.15} parent=5 // pred_fallthru
        _
    $region6: #{clip_vision_encoder.15} parent=1 // loop_footer
      %s15 = sadd.s32 1, %s11
    $region7: #{clip_vision_encoder.15} parent=1 // loop_footer_branch
      %10 = sbr.rel target = $region3
    $region8: #{clip_vision_encoder.15} parent=1 // loop_exit
      _

// kernel: clip_vision_encoder.16
$region0: #{clip_vision_encoder.16}
  #allocation0 [shape = 'u32[]', space=smem, size = 0x4, offset = 0x4, fixed_abs, tag = 'smem constant byte address 0x4 - core index']
  #allocation1 [shape = 'u32[144,128]{1,0:T(1,128)}', space=vmem, size = 0x12000, scoped, tag = 'internal scratch']
  %s0 = inlined_call_operand.vmem [shape: bf16[2,5,384], index: 0, kind: input, shape index: {}, may-alias: {0,1,2}]
  %s1 = inlined_call_operand.vmem [shape: bf16[2,5,384], index: 1, kind: input, shape index: {}, may-alias: {0,1,2}]
  %s2 = inlined_call_operand.vmem [shape: bf16[2,5,384], index: 2, kind: input, shape index: {}, may-alias: {0,1,2}]
  %s3 = inlined_call_operand.vmem [shape: bf16[2,5,128], index: 3, kind: output, shape index: {}]
  %s4 = sld [smem:[#allocation0]]
  $region45: #{clip_vision_encoder.16} parent=0
    _
  %s6 = ssub.s32 1, %s4
  %s7 = scalar_select 0, %s6, %s4
  loop: start=0, step=1, limit=4
  $region2: #{clip_vision_encoder.16} parent=0 // loop_pre_header
    _
  $region3: #{clip_vision_encoder.16} parent=0 // loop_header
    %s9 = sphi 0, %s13
    %p10 = scmp.ge.s32.totalorder %s9, 4
    %s16 = sphi 0, %s28
    %s17 = sphi 0, %s24
    %s18 = sphi 0, %s16
    %s19 = sphi 0, %s17
    %s20 = sphi 0, %s18
    %s21 = sphi 0, %s19
    %s33 = sphi 0, %s35
    %s36 = sphi 0, %s33
    %s37 = sphi 0, %s36
    %s53 = sphi 0, %s37
    %s63 = sphi 0, %s65
    %s66 = sphi 0, %s63
    %s67 = sphi 0, %s66
    %s83 = sphi 0, %s67
    %s93 = sphi 0, %s95
    %s96 = sphi 0, %s93
    %s97 = sphi 0, %s96
    %s113 = sphi 0, %s97
    %s121 = sphi 0, %s123
    %s124 = sphi 0, %s121
    %s125 = sphi 0, %s124
    %s141 = sphi 0, %s125
  $region4: #{clip_vision_encoder.16} parent=0 // loop_header_branch
    %12 = sbr.rel (%p10) target = $region8
  $region5: #{clip_vision_encoder.16} parent=0 // loop_body
    %s14 = ssub.s32 %s9, 1
    %s15 = ssub.s32 %s9, 2
    %s22 = sadd.s32 1, %s17
    %p23 = scmp.ge.s32.totalorder %s22, 1
    %s24 = scalar_select %p23, 0, %s22
    %s25 = sadd.s32 1, %s16
    %s26 = scalar_select %p23, %s25, %s16
    %p27 = scmp.ge.s32.totalorder %s26, 2
    %s28 = scalar_select %p27, 0, %s26
    %s29 = ssub.s32 %s16, %s28
    %s30 = ssub.s32 %s17, %s24
    %s31 = sor.u32 %s29, %s30
    %p32 = scmp.eq.s32.totalorder %s31, 0
    %s34 = sadd.s32 %s33, 1
    %s35 = scalar_select %p32, %s33, %s34
    %p38 = pneg %p32
    %p39 = scmp.eq.s32.totalorder %s9, 1
    %p40 = por %p38, %p39
    %p41 = scmp.ne.s32.totalorder %s33, %s36
    %p42 = scmp.eq.s32.totalorder %s9, 0
    %p43 = por %p41, %p42
    %p44 = scmp.ne.s32.totalorder %s33, %s36
    %p45 = scmp.eq.s32.totalorder %s14, 1
    %p46 = por %p44, %p45
    %p47 = scmp.ne.s32.totalorder %s36, %s37
    %p48 = scmp.eq.s32.totalorder %s14, 0
    %p49 = por %p47, %p48
    %p50 = scmp.ne.s32.totalorder %s36, %s37
    %p51 = scmp.eq.s32.totalorder %s15, 1
    %p52 = por %p50, %p51
    %p54 = scmp.ne.s32.totalorder %s37, %s53
    %p55 = scmp.eq.s32.totalorder %s15, 0
    %p56 = por %p54, %p55
    %s57 = sadd.s32 %s17, 1
    %s58 = sadd.s32 %s24, 1
    %s59 = ssub.s32 %s16, %s28
    %s60 = ssub.s32 %s57, %s58
    %s61 = sor.u32 %s59, %s60
    %p62 = scmp.eq.s32.totalorder %s61, 0
    %s64 = sadd.s32 %s63, 1
    %s65 = scalar_select %p62, %s63, %s64
    %p68 = pneg %p62
    %p69 = scmp.eq.s32.totalorder %s9, 1
    %p70 = por %p68, %p69
    %p71 = scmp.ne.s32.totalorder %s63, %s66
    %p72 = scmp.eq.s32.totalorder %s9, 0
    %p73 = por %p71, %p72
    %p74 = scmp.ne.s32.totalorder %s63, %s66
    %p75 = scmp.eq.s32.totalorder %s14, 1
    %p76 = por %p74, %p75
    %p77 = scmp.ne.s32.totalorder %s66, %s67
    %p78 = scmp.eq.s32.totalorder %s14, 0
    %p79 = por %p77, %p78
    %p80 = scmp.ne.s32.totalorder %s66, %s67
    %p81 = scmp.eq.s32.totalorder %s15, 1
    %p82 = por %p80, %p81
    %p84 = scmp.ne.s32.totalorder %s67, %s83
    %p85 = scmp.eq.s32.totalorder %s15, 0
    %p86 = por %p84, %p85
    %s87 = sadd.s32 %s17, 2
    %s88 = sadd.s32 %s24, 2
    %s89 = ssub.s32 %s16, %s28
    %s90 = ssub.s32 %s87, %s88
    %s91 = sor.u32 %s89, %s90
    %p92 = scmp.eq.s32.totalorder %s91, 0
    %s94 = sadd.s32 %s93, 1
    %s95 = scalar_select %p92, %s93, %s94
    %p98 = pneg %p92
    %p99 = scmp.eq.s32.totalorder %s9, 1
    %p100 = por %p98, %p99
    %p101 = scmp.ne.s32.totalorder %s93, %s96
    %p102 = scmp.eq.s32.totalorder %s9, 0
    %p103 = por %p101, %p102
    %p104 = scmp.ne.s32.totalorder %s93, %s96
    %p105 = scmp.eq.s32.totalorder %s14, 1
    %p106 = por %p104, %p105
    %p107 = scmp.ne.s32.totalorder %s96, %s97
    %p108 = scmp.eq.s32.totalorder %s14, 0
    %p109 = por %p107, %p108
    %p110 = scmp.ne.s32.totalorder %s96, %s97
    %p111 = scmp.eq.s32.totalorder %s15, 1
    %p112 = por %p110, %p111
    %p114 = scmp.ne.s32.totalorder %s97, %s113
    %p115 = scmp.eq.s32.totalorder %s15, 0
    %p116 = por %p114, %p115
    %s117 = ssub.s32 %s16, %s28
    %s118 = ssub.s32 %s17, %s24
    %s119 = sor.u32 %s117, %s118
    %p120 = scmp.eq.s32.totalorder %s119, 0
    %s122 = sadd.s32 %s121, 1
    %s123 = scalar_select %p120, %s121, %s122
    %p126 = pneg %p120
    %p127 = scmp.eq.s32.totalorder %s9, 1
    %p128 = por %p126, %p127
    %p129 = scmp.ne.s32.totalorder %s121, %s124
    %p130 = scmp.eq.s32.totalorder %s9, 0
    %p131 = por %p129, %p130
    %p132 = scmp.ne.s32.totalorder %s121, %s124
    %p133 = scmp.eq.s32.totalorder %s14, 1
    %p134 = por %p132, %p133
    %p135 = scmp.ne.s32.totalorder %s124, %s125
    %p136 = scmp.eq.s32.totalorder %s14, 0
    %p137 = por %p135, %p136
    %p138 = scmp.ne.s32.totalorder %s124, %s125
    %p139 = scmp.eq.s32.totalorder %s15, 1
    %p140 = por %p138, %p139
    %p142 = scmp.ne.s32.totalorder %s125, %s141
    %p143 = scmp.eq.s32.totalorder %s15, 0
    %p144 = por %p142, %p143
    %p145 = scmp.le.s32.totalorder 1, %s9
    %p146 = scmp.lt.s32.totalorder %s9, 3
    %p147 = pnand %p145, %p146
    %p148 = pneg %p147
    // Predicated region
    $region9: #{clip_vision_encoder.16} parent=5 // pred_check
      _
    $region10: #{clip_vision_encoder.16} parent=5 // pred_check_branch
      %150 = sbr.rel (%p147) target = $region12
    $region11: #{clip_vision_encoder.16} parent=5 // pred_region
      %s151 = ssub.s32 %s9, 1
    $region12: #{clip_vision_encoder.16} parent=5 // pred_fallthru
      _
    %p152 = scmp.lt.s32.totalorder %s9, 2
    // Predicated region
    $region13: #{clip_vision_encoder.16} parent=5 // pred_check
      %p153 = pneg %p152
    $region14: #{clip_vision_encoder.16} parent=5 // pred_check_branch
      %155 = sbr.rel (%p153) target = $region16
    $region15: #{clip_vision_encoder.16} parent=5 // pred_region
      // Predicated region
      $region17: #{clip_vision_encoder.16} parent=15 // pred_check
        %p156 = pneg %p43
      $region18: #{clip_vision_encoder.16} parent=15 // pred_check_branch
        %158 = sbr.rel (%p156) target = $region20
      $region19: #{clip_vision_encoder.16} parent=15 // pred_region
        %p159 = scmp.lt.s32.totalorder %s16, 1
        %s160 = scalar_select %p159, %s16, 1
        %p161 = scmp.lt.s32.totalorder %s17, 2
        %s162 = scalar_select %p161, %s17, 2
        %s163 = smul.addr %s160, 3
        %s164 = sadd.s32 %s162, %s163
        %s165 = smul.addr %s164, 4
        %s166 = scalar_lea.vmem %s0, %s165
      $region20: #{clip_vision_encoder.16} parent=15 // pred_fallthru
        _
      // Predicated region
      $region21: #{clip_vision_encoder.16} parent=15 // pred_check
        %p167 = pneg %p73
      $region22: #{clip_vision_encoder.16} parent=15 // pred_check_branch
        %169 = sbr.rel (%p167) target = $region24
      $region23: #{clip_vision_encoder.16} parent=15 // pred_region
        %s170 = sadd.s32 %s17, 1
        %p171 = scmp.lt.s32.totalorder %s16, 1
        %s172 = scalar_select %p171, %s16, 1
        %p173 = scmp.lt.s32.totalorder %s170, 2
        %s174 = scalar_select %p173, %s170, 2
        %s175 = smul.addr %s172, 3
        %s176 = sadd.s32 %s174, %s175
        %s177 = smul.addr %s176, 4
        %s178 = scalar_lea.vmem %s1, %s177
        %s179 = sadd.s32 %s17, 1
      $region24: #{clip_vision_encoder.16} parent=15 // pred_fallthru
        _
      // Predicated region
      $region25: #{clip_vision_encoder.16} parent=15 // pred_check
        %p180 = pneg %p103
      $region26: #{clip_vision_encoder.16} parent=15 // pred_check_branch
        %182 = sbr.rel (%p180) target = $region28
      $region27: #{clip_vision_encoder.16} parent=15 // pred_region
        %s183 = sadd.s32 %s17, 2
        %p184 = scmp.lt.s32.totalorder %s16, 1
        %s185 = scalar_select %p184, %s16, 1
        %p186 = scmp.lt.s32.totalorder %s183, 2
        %s187 = scalar_select %p186, %s183, 2
        %s188 = smul.addr %s185, 3
        %s189 = sadd.s32 %s187, %s188
        %s190 = smul.addr %s189, 4
        %s191 = scalar_lea.vmem %s2, %s190
        %s192 = sadd.s32 %s17, 2
      $region28: #{clip_vision_encoder.16} parent=15 // pred_fallthru
        _
    $region16: #{clip_vision_encoder.16} parent=5 // pred_fallthru
      _
    %p193 = scmp.le.s32.totalorder 1, %s9
    %p194 = scmp.lt.s32.totalorder %s9, 3
    %p195 = pnand %p193, %p194
    %p196 = pneg %p195
    // Predicated region
    $region29: #{clip_vision_encoder.16} parent=5 // pred_check
      _
    $region30: #{clip_vision_encoder.16} parent=5 // pred_check_branch
      %198 = sbr.rel (%p195) target = $region32
    $region31: #{clip_vision_encoder.16} parent=5 // pred_region
      %s199 = ssub.s32 %s9, 1
      %p200 = scmp.lt.s32.totalorder %s18, 1
      %s201 = scalar_select %p200, %s18, 1
      %p202 = scmp.lt.s32.totalorder %s19, 2
      %s203 = scalar_select %p202, %s19, 2
      %s204 = smul.addr %s201, 3
      %s205 = sadd.s32 %s203, %s204
      %s206 = smul.addr %s205, 4
      %s207 = scalar_lea.vmem %s0, %s206
      %p208 = pneg %p49
      %p209 = pneg %p46
      %s210 = sadd.s32 %s19, 1
      %p211 = scmp.lt.s32.totalorder %s18, 1
      %s212 = scalar_select %p211, %s18, 1
      %p213 = scmp.lt.s32.totalorder %s210, 2
      %s214 = scalar_select %p213, %s210, 2
      %s215 = smul.addr %s212, 3
      %s216 = sadd.s32 %s214, %s215
      %s217 = smul.addr %s216, 4
      %s218 = scalar_lea.vmem %s1, %s217
      %p219 = pneg %p79
      %p220 = pneg %p76
      %s221 = sadd.s32 %s19, 2
      %p222 = scmp.lt.s32.totalorder %s18, 1
      %s223 = scalar_select %p222, %s18, 1
      %p224 = scmp.lt.s32.totalorder %s221, 2
      %s225 = scalar_select %p224, %s221, 2
      %s226 = smul.addr %s223, 3
      %s227 = sadd.s32 %s225, %s226
      %s228 = smul.addr %s227, 4
      %s229 = scalar_lea.vmem %s2, %s228
      %p230 = pneg %p109
      %p231 = pneg %p106
      %p232 = pneg %p137
      %p233 = pneg %p134
      %p234 = scmp.lt.s32.totalorder %s18, 1
      %s235 = scalar_select %p234, %s18, 1
      %p236 = scmp.lt.s32.totalorder %s19, 0
      %s237 = scalar_select %p236, %s19, 0
      %s238 = sadd.s32 %s237, %s235
      %s239 = smul.addr %s238, 4
      %s240 = scalar_lea.vmem %s3, %s239
      %p241 = scmp.lt.s32.totalorder %s18, 1
      %s242 = scalar_select %p241, %s18, 1
      %p243 = scmp.lt.s32.totalorder %s19, 2
      %s244 = scalar_select %p243, %s19, 2
      %s245 = smul.addr %s242, 3
      %s246 = sadd.s32 %s244, %s245
      %s247 = smul.addr %s246, 4
      %s248 = scalar_lea.vmem %s0, %s247
      %s249 = sadd.s32 %s19, 1
      %p250 = scmp.lt.s32.totalorder %s18, 1
      %s251 = scalar_select %p250, %s18, 1
      %p252 = scmp.lt.s32.totalorder %s249, 2
      %s253 = scalar_select %p252, %s249, 2
      %s254 = smul.addr %s251, 3
      %s255 = sadd.s32 %s253, %s254
      %s256 = smul.addr %s255, 4
      %s257 = scalar_lea.vmem %s1, %s256
      %s258 = sadd.s32 %s19, 1
      %s259 = sadd.s32 %s19, 2
      %p260 = scmp.lt.s32.totalorder %s18, 1
      %s261 = scalar_select %p260, %s18, 1
      %p262 = scmp.lt.s32.totalorder %s259, 2
      %s263 = scalar_select %p262, %s259, 2
      %s264 = smul.addr %s261, 3
      %s265 = sadd.s32 %s263, %s264
      %s266 = smul.addr %s265, 4
      %s267 = scalar_lea.vmem %s2, %s266
      %s268 = sadd.s32 %s19, 2
      %p269 = scmp.lt.s32.totalorder %s18, 1
      %s270 = scalar_select %p269, %s18, 1
      %p271 = scmp.lt.s32.totalorder %s19, 0
      %s272 = scalar_select %p271, %s19, 0
      %s273 = sadd.s32 %s272, %s270
      %s274 = smul.addr %s273, 4
      %s275 = scalar_lea.vmem %s3, %s274
      %v277 = vld [vmem:[%s248] sm:$0x7]
      %v278 = vld [vmem:[%s257] sm:$0x7]
      %vm279 = vcmask 523264
      %v281 = vsel %vm279, %v277, 0
      %v284 = vsel %vm279, %v278, 0
      %286 = vmatprep.subr.bf16.mxu0 0
      %287 = vmatpush1.bf16.xpose.msra.mxu0 0
      %288 = vmatprep.subr.bf16.mxu0 0
      %289 = vmatpush1.bf16.xpose.msra.mxu0 0
      %290 = vmatprep.subr.bf16.mxu0 0
      %291 = vmatpush1.bf16.xpose.msra.mxu0 0
      %292 = vmatprep.subr.bf16.mxu0 0
      %293 = vmatpush1.bf16.xpose.msra.mxu0 0
      %294 = vmatprep.subr.bf16.mxu0 0
      %295 = vmatpush1.bf16.xpose.msra.mxu0 0
      %296 = vmatprep.subr.bf16.mxu0 0
      %297 = vmatpush1.bf16.xpose.msra.mxu0 0
      %298 = vmatprep.subr.bf16.mxu0 0
      %299 = vmatpush1.bf16.xpose.msra.mxu0 0
      %300 = vmatprep.subr.bf16.mxu0 0
      %301 = vmatpush1.bf16.xpose.msra.mxu0 %v284
      %302 = vmatprep.subr.bf16.mxu0 0
      %303 = vmatpush2.bf16.xpose.msra.mxu0 0
      %304 = vmatprep.subr.bf16.mxu0 0
      %305 = vmatpush2.bf16.xpose.msra.mxu0 0
      %306 = vmatprep.subr.bf16.mxu0 0
      %307 = vmatpush2.bf16.xpose.msra.mxu0 0
      %308 = vmatprep.subr.bf16.mxu0 0
      %309 = vmatpush2.bf16.xpose.msra.mxu0 0
      %310 = vmatprep.subr.bf16.mxu0 0
      %311 = vmatpush2.bf16.xpose.msra.mxu0 0
      %312 = vmatprep.subr.bf16.mxu0 0
      %313 = vmatpush2.bf16.xpose.msra.mxu0 0
      %314 = vmatprep.subr.bf16.mxu0 0
      %315 = vmatpush2.bf16.xpose.msra.mxu0 0
      %316 = vmatprep.subr.bf16.mxu0 0
      %317 = vmatpush2.bf16.xpose.msra.mxu0 0
      %318 = vmatprep.mubr.bf16.mxu0 0
      %319 = vmatmul.mubr.bf16.gmra.mxu0 %v281
      %v320 = vpop.f32.mrf.mxu0
      %v321 = vadd.f32 0.0, %v320
      %v322 = vpop.f32.mrf.mxu0
      %v323 = vpop.f32.mrf.mxu0
      %v324 = vpop.f32.mrf.mxu0
      %325 = vdwg.mxu0
      %vm326 = vcmask 36864
      %v327 = vsel %vm326, %v321, -inf
      %328 = vmax.xlane.f32.xlu0 %v327
      %v329 = vpop.xlane.xlu0 %328
      %v330 = vsub.f32 %v321, %v329
      %v331 = vmul.f32 %v330, 1.442695
      %v332 = vpow.pop %v331
      %v333 = vsel %vm326, %v332, 0.0
      %334 = vadd.xlane.f32.xlu0 %v333
      %v335 = vpop.xlane.xlu0 %334
      %v336 = vrcp.pop %v335
      %v337 = vmul.f32 %v332, %v336
      %v338 = vpack.c.bf16 %v337, %v337
      %v339 = vld [vmem:[%s267] sm:$0x7]
      %vm340 = vcmask 39936
      %v342 = vsel %vm340, %v338, 0
      %vm344 = vcmask 1041408
      %vm345 = vcmask 1042432
      %v346 = vsel %vm344, 4294967295, 65535
      %v347 = vsel %vm345, %v346, 0
      %v349 = vand.u32 %v339, %v347
      %351 = vmatprep.subr.bf16.mxu0 0
      %352 = vmatpush1.bf16.msra.mxu0 0
      %353 = vmatprep.subr.bf16.mxu0 0
      %354 = vmatpush1.bf16.msra.mxu0 0
      %355 = vmatprep.subr.bf16.mxu0 0
      %356 = vmatpush1.bf16.msra.mxu0 0
      %357 = vmatprep.subr.bf16.mxu0 0
      %358 = vmatpush1.bf16.msra.mxu0 0
      %359 = vmatprep.subr.bf16.mxu0 0
      %360 = vmatpush1.bf16.msra.mxu0 0
      %361 = vmatprep.subr.bf16.mxu0 0
      %362 = vmatpush1.bf16.msra.mxu0 0
      %363 = vmatprep.subr.bf16.mxu0 0
      %364 = vmatpush1.bf16.msra.mxu0 0
      %365 = vmatprep.subr.bf16.mxu0 0
      %366 = vmatpush1.bf16.msra.mxu0 %v349
      %367 = vmatprep.subr.bf16.mxu0 0
      %368 = vmatpush2.bf16.msra.mxu0 0
      %369 = vmatprep.subr.bf16.mxu0 0
      %370 = vmatpush2.bf16.msra.mxu0 0
      %371 = vmatprep.subr.bf16.mxu0 0
      %372 = vmatpush2.bf16.msra.mxu0 0
      %373 = vmatprep.subr.bf16.mxu0 0
      %374 = vmatpush2.bf16.msra.mxu0 0
      %375 = vmatprep.subr.bf16.mxu0 0
      %376 = vmatpush2.bf16.msra.mxu0 0
      %377 = vmatprep.subr.bf16.mxu0 0
      %378 = vmatpush2.bf16.msra.mxu0 0
      %379 = vmatprep.subr.bf16.mxu0 0
      %380 = vmatpush2.bf16.msra.mxu0 0
      %381 = vmatprep.subr.bf16.mxu0 0
      %382 = vmatpush2.bf16.msra.mxu0 0
      %383 = vmatprep.mubr.bf16.mxu0 0
      %384 = vmatmul.mubr.bf16.gmra.mxu0 %v342
      %v385 = vpop.f32.mrf.mxu0
      %v386 = vadd.f32 0.0, %v385
      %v387 = vpop.f32.mrf.mxu0
      %v388 = vpop.f32.mrf.mxu0
      %v389 = vpop.f32.mrf.mxu0
      %390 = vdwg.mxu0
      %v392 = vunpack.c.l.b16 %v277
      %v393 = vpack.c.b16 %v392, %v392
      %394 = vrot.lane.b32.xlu0 %v393, 64
      %v395 = vpop.permute.xlu0 %394
      %v397 = vunpack.c.l.b16 %v278
      %v398 = vpack.c.b16 %v397, %v397
      %399 = vrot.lane.b32.xlu0 %v398, 64
      %v400 = vpop.permute.xlu0 %399
      %v402 = vsel %vm279, %v395, 0
      %v405 = vsel %vm279, %v400, 0
      %407 = vmatprep.subr.bf16.mxu0 0
      %408 = vmatpush1.bf16.xpose.msra.mxu0 0
      %409 = vmatprep.subr.bf16.mxu0 0
      %410 = vmatpush1.bf16.xpose.msra.mxu0 0
      %411 = vmatprep.subr.bf16.mxu0 0
      %412 = vmatpush1.bf16.xpose.msra.mxu0 0
      %413 = vmatprep.subr.bf16.mxu0 0
      %414 = vmatpush1.bf16.xpose.msra.mxu0 0
      %415 = vmatprep.subr.bf16.mxu0 0
      %416 = vmatpush1.bf16.xpose.msra.mxu0 0
      %417 = vmatprep.subr.bf16.mxu0 0
      %418 = vmatpush1.bf16.xpose.msra.mxu0 0
      %419 = vmatprep.subr.bf16.mxu0 0
      %420 = vmatpush1.bf16.xpose.msra.mxu0 0
      %421 = vmatprep.subr.bf16.mxu0 0
      %422 = vmatpush1.bf16.xpose.msra.mxu0 %v405
      %423 = vmatprep.subr.bf16.mxu0 0
      %424 = vmatpush2.bf16.xpose.msra.mxu0 0
      %425 = vmatprep.subr.bf16.mxu0 0
      %426 = vmatpush2.bf16.xpose.msra.mxu0 0
      %427 = vmatprep.subr.bf16.mxu0 0
      %428 = vmatpush2.bf16.xpose.msra.mxu0 0
      %429 = vmatprep.subr.bf16.mxu0 0
      %430 = vmatpush2.bf16.xpose.msra.mxu0 0
      %431 = vmatprep.subr.bf16.mxu0 0
      %432 = vmatpush2.bf16.xpose.msra.mxu0 0
      %433 = vmatprep.subr.bf16.mxu0 0
      %434 = vmatpush2.bf16.xpose.msra.mxu0 0
      %435 = vmatprep.subr.bf16.mxu0 0
      %436 = vmatpush2.bf16.xpose.msra.mxu0 0
      %437 = vmatprep.subr.bf16.mxu0 0
      %438 = vmatpush2.bf16.xpose.msra.mxu0 0
      %439 = vmatprep.mubr.bf16.mxu0 0
      %440 = vmatmul.mubr.bf16.gmra.mxu0 %v402
      %v441 = vpop.f32.mrf.mxu0
      %v442 = vadd.f32 0.0, %v441
      %v443 = vpop.f32.mrf.mxu0
      %v444 = vpop.f32.mrf.mxu0
      %v445 = vpop.f32.mrf.mxu0
      %446 = vdwg.mxu0
      %v447 = vsel %vm326, %v442, -inf
      %448 = vmax.xlane.f32.xlu0 %v447
      %v449 = vpop.xlane.xlu0 %448
      %v450 = vsub.f32 %v442, %v449
      %v451 = vmul.f32 %v450, 1.442695
      %v452 = vpow.pop %v451
      %v453 = vsel %vm326, %v452, 0.0
      %454 = vadd.xlane.f32.xlu0 %v453
      %v455 = vpop.xlane.xlu0 %454
      %v456 = vrcp.pop %v455
      %v457 = vmul.f32 %v452, %v456
      %v458 = vpack.c.bf16 %v457, %v457
      %v460 = vunpack.c.l.b16 %v339
      %v461 = vpack.c.b16 %v460, %v460
      %462 = vrot.lane.b32.xlu0 %v461, 64
      %v463 = vpop.permute.xlu0 %462
      %v465 = vsel %vm340, %v458, 0
      %v468 = vand.u32 %v463, %v347
      %470 = vmatprep.subr.bf16.mxu0 0
      %471 = vmatpush1.bf16.msra.mxu0 0
      %472 = vmatprep.subr.bf16.mxu0 0
      %473 = vmatpush1.bf16.msra.mxu0 0
      %474 = vmatprep.subr.bf16.mxu0 0
      %475 = vmatpush1.bf16.msra.mxu0 0
      %476 = vmatprep.subr.bf16.mxu0 0
      %477 = vmatpush1.bf16.msra.mxu0 0
      %478 = vmatprep.subr.bf16.mxu0 0
      %479 = vmatpush1.bf16.msra.mxu0 0
      %480 = vmatprep.subr.bf16.mxu0 0
      %481 = vmatpush1.bf16.msra.mxu0 0
      %482 = vmatprep.subr.bf16.mxu0 0
      %483 = vmatpush1.bf16.msra.mxu0 0
      %484 = vmatprep.subr.bf16.mxu0 0
      %485 = vmatpush1.bf16.msra.mxu0 %v468
      %486 = vmatprep.subr.bf16.mxu0 0
      %487 = vmatpush2.bf16.msra.mxu0 0
      %488 = vmatprep.subr.bf16.mxu0 0
      %489 = vmatpush2.bf16.msra.mxu0 0
      %490 = vmatprep.subr.bf16.mxu0 0
      %491 = vmatpush2.bf16.msra.mxu0 0
      %492 = vmatprep.subr.bf16.mxu0 0
      %493 = vmatpush2.bf16.msra.mxu0 0
      %494 = vmatprep.subr.bf16.mxu0 0
      %495 = vmatpush2.bf16.msra.mxu0 0
      %496 = vmatprep.subr.bf16.mxu0 0
      %497 = vmatpush2.bf16.msra.mxu0 0
      %498 = vmatprep.subr.bf16.mxu0 0
      %499 = vmatpush2.bf16.msra.mxu0 0
      %500 = vmatprep.subr.bf16.mxu0 0
      %501 = vmatpush2.bf16.msra.mxu0 0
      %502 = vmatprep.mubr.bf16.mxu0 0
      %503 = vmatmul.mubr.bf16.gmra.mxu0 %v465
      %v504 = vpop.f32.mrf.mxu0
      %v505 = vadd.f32 0.0, %v504
      %v506 = vpop.f32.mrf.mxu0
      %v507 = vpop.f32.mrf.mxu0
      %v508 = vpop.f32.mrf.mxu0
      %509 = vdwg.mxu0
      %511 = vrot.lane.b32.xlu0 %v505, 64
      %v512 = vpop.permute.xlu0 %511
      %v514 = vsel %vm279, %v386, %v512
      %v515 = vpack.c.bf16 %v514, %v514
      %vm516 = vcmask 1042432
      %vm517 = vsmask.f32 2304
      %vm518 = vmand %vm516, %vm517
      %v519 = vld [vmem:[%s275] sm:$0x7]
      %v520 = vsel %vm518, %v515, %v519
      %521 = vst [vmem:[%s275] sm:$0x7] %v520
      %p522 = scmp.lt.s32.totalorder %s18, 1
      %s523 = scalar_select %p522, %s18, 1
      %p524 = scmp.lt.s32.totalorder %s19, 0
      %s525 = scalar_select %p524, %s19, 0
      %s526 = sadd.s32 %s525, %s523
      %s527 = smul.addr %s526, 4
      %s528 = scalar_lea.vmem %s3, %s527
      // Predicated region
      $region33: #{clip_vision_encoder.16} parent=31 // pred_check
        %p529 = pneg %p134
      $region34: #{clip_vision_encoder.16} parent=31 // pred_check_branch
        %531 = sbr.rel (%p529) target = $region36
      $region35: #{clip_vision_encoder.16} parent=31 // pred_region
        _
      $region36: #{clip_vision_encoder.16} parent=31 // pred_fallthru
        _
    $region32: #{clip_vision_encoder.16} parent=5 // pred_fallthru
      _
    %p532 = scmp.le.s32.totalorder 2, %s9
    // Predicated region
    $region37: #{clip_vision_encoder.16} parent=5 // pred_check
      %p533 = pneg %p532
    $region38: #{clip_vision_encoder.16} parent=5 // pred_check_branch
      %535 = sbr.rel (%p533) target = $region40
    $region39: #{clip_vision_encoder.16} parent=5 // pred_region
      %s536 = ssub.s32 %s9, 2
      // Predicated region
      $region41: #{clip_vision_encoder.16} parent=39 // pred_check
        %p537 = pneg %p140
      $region42: #{clip_vision_encoder.16} parent=39 // pred_check_branch
        %539 = sbr.rel (%p537) target = $region44
      $region43: #{clip_vision_encoder.16} parent=39 // pred_region
        %p540 = scmp.lt.s32.totalorder %s20, 1
        %s541 = scalar_select %p540, %s20, 1
        %p542 = scmp.lt.s32.totalorder %s21, 0
        %s543 = scalar_select %p542, %s21, 0
        %s544 = sadd.s32 %s543, %s541
        %s545 = smul.addr %s544, 4
        %s546 = scalar_lea.vmem %s3, %s545
      $region44: #{clip_vision_encoder.16} parent=39 // pred_fallthru
        _
    $region40: #{clip_vision_encoder.16} parent=5 // pred_fallthru
      _
  $region6: #{clip_vision_encoder.16} parent=0 // loop_footer
    %s13 = sadd.s32 1, %s9
  $region7: #{clip_vision_encoder.16} parent=0 // loop_footer_branch
    %8 = sbr.rel target = $region3
  $region8: #{clip_vision_encoder.16} parent=0 // loop_exit
    _

// kernel: clip_vision_encoder.17
$region0: #{clip_vision_encoder.17}
  #allocation0 [shape = 'u32[]', space=smem, size = 0x4, offset = 0x4, fixed_abs, tag = 'smem constant byte address 0x4 - core index']
  #allocation1 [shape = 'u32[144,128]{1,0:T(1,128)}', space=vmem, size = 0x12000, scoped, tag = 'internal scratch']
  #allocation2 [shape = 'f32[10,128]{1,0:T(8,128)}', space=vmem, size = 0x2000, scoped, tag = 'scratch operand']
  %s0 = inlined_call_operand.vmem [shape: bf16[10,128], index: 0, kind: input, shape index: {}]
  %s1 = inlined_call_operand.vmem [shape: bf16[128,128], index: 1, kind: input, shape index: {}]
  %s2 = inlined_call_operand.vmem [shape: f32[1,128], index: 2, kind: input, shape index: {}]
  %s3 = inlined_call_operand.vmem [shape: f32[10,128], index: 3, kind: input, shape index: {}]
  %s4 = inlined_call_operand.vmem [shape: f32[10,128], index: 4, kind: output, shape index: {}]
  %s5 = sld [smem:[#allocation0]]
  $region34: #{clip_vision_encoder.17} parent=0
    _
  %s7 = ssub.s32 1, %s5
  %s8 = scalar_select 0, %s7, %s5
  // Predicated region
  $region2: #{clip_vision_encoder.17} parent=0 // pred_check
    _
  $region3: #{clip_vision_encoder.17} parent=0 // pred_check_branch
    %10 = sbr.rel (0) target = $region5
  $region4: #{clip_vision_encoder.17} parent=0 // pred_region
    _
  $region5: #{clip_vision_encoder.17} parent=0 // pred_fallthru
    _
  // Predicated region
  $region6: #{clip_vision_encoder.17} parent=0 // pred_check
    _
  $region7: #{clip_vision_encoder.17} parent=0 // pred_check_branch
    %12 = sbr.rel (0) target = $region9
  $region8: #{clip_vision_encoder.17} parent=0 // pred_region
    _
  $region9: #{clip_vision_encoder.17} parent=0 // pred_fallthru
    _
  // Predicated region
  $region10: #{clip_vision_encoder.17} parent=0 // pred_check
    _
  $region11: #{clip_vision_encoder.17} parent=0 // pred_check_branch
    %14 = sbr.rel (0) target = $region13
  $region12: #{clip_vision_encoder.17} parent=0 // pred_region
    _
  $region13: #{clip_vision_encoder.17} parent=0 // pred_fallthru
    _
  // Predicated region
  $region14: #{clip_vision_encoder.17} parent=0 // pred_check
    _
  $region15: #{clip_vision_encoder.17} parent=0 // pred_check_branch
    %16 = sbr.rel (0) target = $region17
  $region16: #{clip_vision_encoder.17} parent=0 // pred_region
    _
  $region17: #{clip_vision_encoder.17} parent=0 // pred_fallthru
    _
  %p18 = scmp.eq.s32.totalorder 0, 0
  // Predicated region
  $region18: #{clip_vision_encoder.17} parent=0 // pred_check
    %p19 = pneg %p18
  $region19: #{clip_vision_encoder.17} parent=0 // pred_check_branch
    %21 = sbr.rel (%p19) target = $region21
  $region20: #{clip_vision_encoder.17} parent=0 // pred_region
    %22 = vst [vmem:[#allocation2] sm:$0xff] 0.0
    %23 = vst [vmem:[#allocation2 + $0x8] sm:$0x3] 0.0
  $region21: #{clip_vision_encoder.17} parent=0 // pred_fallthru
    _
  %v24 = vld [vmem:[#allocation2] sm:$0xff]
  %v25 = vld [vmem:[#allocation2 + $0x8] sm:$0x3]
  %v26 = vld [vmem:[%s0] sm:$0xf]
  %v27 = vld [vmem:[%s0 + $0x4] sm:$0x1]
  %v28 = vld [vmem:[%s1] sm:$0xf]
  %v29 = vld [vmem:[%s1 + $0x4] sm:$0xf]
  %v30 = vld [vmem:[%s1 + $0x8] sm:$0xf]
  %v31 = vld [vmem:[%s1 + $0xc] sm:$0xf]
  %v32 = vld [vmem:[%s1 + $0x10] sm:$0xf]
  %v33 = vld [vmem:[%s1 + $0x14] sm:$0xf]
  %v34 = vld [vmem:[%s1 + $0x18] sm:$0xf]
  %v35 = vld [vmem:[%s1 + $0x1c] sm:$0xf]
  %v36 = vld [vmem:[%s1 + $0x20] sm:$0xf]
  %v37 = vld [vmem:[%s1 + $0x24] sm:$0xf]
  %v38 = vld [vmem:[%s1 + $0x28] sm:$0xf]
  %v39 = vld [vmem:[%s1 + $0x2c] sm:$0xf]
  %v40 = vld [vmem:[%s1 + $0x30] sm:$0xf]
  %v41 = vld [vmem:[%s1 + $0x34] sm:$0xf]
  %v42 = vld [vmem:[%s1 + $0x38] sm:$0xf]
  %v43 = vld [vmem:[%s1 + $0x3c] sm:$0xf]
  %v46 = vunpack.c.l.b16 %v26
  %v47 = vunpack.c.l.b16 %v27
  %v48 = vpack.c.b16 %v47, %v46
  %v66 = vunpack.c.l.b16 %v28
  %v67 = vunpack.c.l.b16 %v29
  %v68 = vunpack.c.l.b16 %v30
  %v69 = vunpack.c.l.b16 %v31
  %v70 = vunpack.c.l.b16 %v32
  %v71 = vunpack.c.l.b16 %v33
  %v72 = vunpack.c.l.b16 %v34
  %v73 = vunpack.c.l.b16 %v35
  %v74 = vunpack.c.l.b16 %v36
  %v75 = vunpack.c.l.b16 %v37
  %v76 = vunpack.c.l.b16 %v38
  %v77 = vunpack.c.l.b16 %v39
  %v78 = vunpack.c.l.b16 %v40
  %v79 = vunpack.c.l.b16 %v41
  %v80 = vunpack.c.l.b16 %v42
  %v81 = vunpack.c.l.b16 %v43
  %v82 = vpack.c.b16 %v67, %v66
  %v83 = vpack.c.b16 %v69, %v68
  %v84 = vpack.c.b16 %v71, %v70
  %v85 = vpack.c.b16 %v73, %v72
  %v86 = vpack.c.b16 %v75, %v74
  %v87 = vpack.c.b16 %v77, %v76
  %v88 = vpack.c.b16 %v79, %v78
  %v89 = vpack.c.b16 %v81, %v80
  %98 = vmatprep.subr.bf16.mxu0 0
  %99 = vmatpush1.bf16.msra.mxu0 %v89
  %100 = vmatprep.subr.bf16.mxu0 0
  %101 = vmatpush1.bf16.msra.mxu0 %v88
  %102 = vmatprep.subr.bf16.mxu0 0
  %103 = vmatpush1.bf16.msra.mxu0 %v87
  %104 = vmatprep.subr.bf16.mxu0 0
  %105 = vmatpush1.bf16.msra.mxu0 %v86
  %106 = vmatprep.subr.bf16.mxu0 0
  %107 = vmatpush1.bf16.msra.mxu0 %v85
  %108 = vmatprep.subr.bf16.mxu0 0
  %109 = vmatpush1.bf16.msra.mxu0 %v84
  %110 = vmatprep.subr.bf16.mxu0 0
  %111 = vmatpush1.bf16.msra.mxu0 %v83
  %112 = vmatprep.subr.bf16.mxu0 0
  %113 = vmatpush1.bf16.msra.mxu0 %v82
  %114 = vmatprep.subr.bf16.mxu0 0
  %115 = vmatpush2.bf16.msra.mxu0 0
  %116 = vmatprep.subr.bf16.mxu0 0
  %117 = vmatpush2.bf16.msra.mxu0 0
  %118 = vmatprep.subr.bf16.mxu0 0
  %119 = vmatpush2.bf16.msra.mxu0 0
  %120 = vmatprep.subr.bf16.mxu0 0
  %121 = vmatpush2.bf16.msra.mxu0 0
  %122 = vmatprep.subr.bf16.mxu0 0
  %123 = vmatpush2.bf16.msra.mxu0 0
  %124 = vmatprep.subr.bf16.mxu0 0
  %125 = vmatpush2.bf16.msra.mxu0 0
  %126 = vmatprep.subr.bf16.mxu0 0
  %127 = vmatpush2.bf16.msra.mxu0 0
  %128 = vmatprep.subr.bf16.mxu0 0
  %129 = vmatpush2.bf16.msra.mxu0 0
  %130 = vmatprep.mubr.bf16.mxu0 0
  %131 = vmatmul.mubr.bf16.gmra.mxu0 %v48
  %v132 = vpop.f32.mrf.mxu0
  %v133 = vadd.f32 0.0, %v132
  %v134 = vpop.f32.mrf.mxu0
  %v135 = vpop.f32.mrf.mxu0
  %v136 = vadd.f32 0.0, %v135
  %v137 = vpop.f32.mrf.mxu0
  %138 = vdwg.mxu0
  %v139 = vadd.f32 %v24, %v133
  %v140 = vadd.f32 %v25, %v136
  %141 = vst [vmem:[#allocation2] sm:$0xff] %v139
  %142 = vst [vmem:[#allocation2 + $0x8] sm:$0x3] %v140
  // Predicated region
  $region22: #{clip_vision_encoder.17} parent=0 // pred_check
    %p143 = pneg %p18
  $region23: #{clip_vision_encoder.17} parent=0 // pred_check_branch
    %145 = sbr.rel (%p143) target = $region25
  $region24: #{clip_vision_encoder.17} parent=0 // pred_region
    %v146 = vld [vmem:[#allocation2] sm:$0xff]
    %v147 = vld [vmem:[#allocation2 + $0x8] sm:$0x3]
    %v148 = vld [vmem:[%s2] sm:$0x1]
    %v150 = vlaneseq
    %v151 = vshrl.u32 %v150, 7
    %v152 = vsub.s32 0, %v151
    %v153 = vrot.slane %v148, %v152
    %v155 = vadd.f32 %v146, %v153
    %v156 = vadd.f32 %v147, %v153
    %v157 = vld [vmem:[%s3] sm:$0xff]
    %v158 = vld [vmem:[%s3 + $0x8] sm:$0x3]
    %v159 = vadd.f32 %v155, %v157
    %v160 = vadd.f32 %v156, %v158
    %161 = vst [vmem:[%s4] sm:$0xff] %v159
    %162 = vst [vmem:[%s4 + $0x8] sm:$0x3] %v160
  $region25: #{clip_vision_encoder.17} parent=0 // pred_fallthru
    _
  // Predicated region
  $region26: #{clip_vision_encoder.17} parent=0 // pred_check
    _
  $region27: #{clip_vision_encoder.17} parent=0 // pred_check_branch
    %164 = sbr.rel (0) target = $region29
  $region28: #{clip_vision_encoder.17} parent=0 // pred_region
    _
  $region29: #{clip_vision_encoder.17} parent=0 // pred_fallthru
    _
  // Predicated region
  $region30: #{clip_vision_encoder.17} parent=0 // pred_check
    _
  $region31: #{clip_vision_encoder.17} parent=0 // pred_check_branch
    %166 = sbr.rel (0) target = $region33
  $region32: #{clip_vision_encoder.17} parent=0 // pred_region
    _
  $region33: #{clip_vision_encoder.17} parent=0 // pred_fallthru
    _

// kernel: clip_vision_encoder.18
$region0: #{clip_vision_encoder.18}
  #allocation0 [shape = 'u32[]', space=smem, size = 0x4, offset = 0x4, fixed_abs, tag = 'smem constant byte address 0x4 - core index']
  #allocation1 [shape = 'u32[144,128]{1,0:T(1,128)}', space=vmem, size = 0x12000, scoped, tag = 'internal scratch']
  #allocation2 [shape = 'bf16[10,128]{1,0:T(8,128)(2,1)}', space=vmem, size = 0x1000, scoped, tag = 'scratch operand']
  %s0 = inlined_call_operand.vmem [shape: f32[10,128], index: 0, kind: input, shape index: {}]
  %s1 = inlined_call_operand.vmem [shape: f32[1,128], index: 1, kind: input, shape index: {}]
  %s2 = inlined_call_operand.vmem [shape: f32[1,128], index: 2, kind: input, shape index: {}]
  %s3 = inlined_call_operand.vmem [shape: bf16[128,256], index: 3, kind: input, shape index: {}]
  %s4 = inlined_call_operand.vmem [shape: f32[1,256], index: 4, kind: input, shape index: {}]
  %s5 = inlined_call_operand.vmem [shape: bf16[10,256], index: 5, kind: output, shape index: {}]
  %s6 = sld [smem:[#allocation0]]
  $region34: #{clip_vision_encoder.18} parent=0
    _
  %s8 = ssub.s32 1, %s6
  %s9 = scalar_select 0, %s8, %s6
  // Predicated region
  $region2: #{clip_vision_encoder.18} parent=0 // pred_check
    _
  $region3: #{clip_vision_encoder.18} parent=0 // pred_check_branch
    %11 = sbr.rel (0) target = $region5
  $region4: #{clip_vision_encoder.18} parent=0 // pred_region
    _
  $region5: #{clip_vision_encoder.18} parent=0 // pred_fallthru
    _
  // Predicated region
  $region6: #{clip_vision_encoder.18} parent=0 // pred_check
    _
  $region7: #{clip_vision_encoder.18} parent=0 // pred_check_branch
    %13 = sbr.rel (0) target = $region9
  $region8: #{clip_vision_encoder.18} parent=0 // pred_region
    _
  $region9: #{clip_vision_encoder.18} parent=0 // pred_fallthru
    _
  // Predicated region
  $region10: #{clip_vision_encoder.18} parent=0 // pred_check
    _
  $region11: #{clip_vision_encoder.18} parent=0 // pred_check_branch
    %15 = sbr.rel (0) target = $region13
  $region12: #{clip_vision_encoder.18} parent=0 // pred_region
    _
  $region13: #{clip_vision_encoder.18} parent=0 // pred_fallthru
    _
  // Predicated region
  $region14: #{clip_vision_encoder.18} parent=0 // pred_check
    _
  $region15: #{clip_vision_encoder.18} parent=0 // pred_check_branch
    %17 = sbr.rel (0) target = $region17
  $region16: #{clip_vision_encoder.18} parent=0 // pred_region
    _
  $region17: #{clip_vision_encoder.18} parent=0 // pred_fallthru
    _
  // Predicated region
  $region18: #{clip_vision_encoder.18} parent=0 // pred_check
    _
  $region19: #{clip_vision_encoder.18} parent=0 // pred_check_branch
    %19 = sbr.rel (0) target = $region21
  $region20: #{clip_vision_encoder.18} parent=0 // pred_region
    _
  $region21: #{clip_vision_encoder.18} parent=0 // pred_fallthru
    _
  %p23 = scmp.eq.s32.totalorder 0, 0
  // Predicated region
  $region22: #{clip_vision_encoder.18} parent=0 // pred_check
    %p24 = pneg %p23
  $region23: #{clip_vision_encoder.18} parent=0 // pred_check_branch
    %26 = sbr.rel (%p24) target = $region25
  $region24: #{clip_vision_encoder.18} parent=0 // pred_region
    %v27 = vld [vmem:[%s0] sm:$0xff]
    %v28 = vld [vmem:[%s0 + $0x8] sm:$0x3]
    %29 = vadd.xlane.f32.xlu0 %v27
    %v30 = vpop.xlane.xlu0 %29
    %vm31 = vcmask 1041408
    %v32 = vsel %vm31, %v28, 0.0
    %33 = vadd.xlane.f32.xlu0 %v32
    %v34 = vpop.xlane.xlu0 %33
    %v35 = vrcp.pop 128.0
    %v36 = vmul.f32 %v30, %v35
    %v37 = vmul.f32 %v34, %v35
    %v38 = vsub.f32 %v27, %v36
    %v39 = vsub.f32 %v28, %v37
    %v40 = vmul.f32 %v38, %v38
    %v41 = vmul.f32 %v39, %v39
    %42 = vadd.xlane.f32.xlu0 %v40
    %v43 = vpop.xlane.xlu0 %42
    %v44 = vsel %vm31, %v41, 0.0
    %45 = vadd.xlane.f32.xlu0 %v44
    %v46 = vpop.xlane.xlu0 %45
    %v47 = vmul.f32 %v43, %v35
    %v48 = vmul.f32 %v46, %v35
    %v49 = vadd.f32 %v47, 1e-05
    %v50 = vadd.f32 %v48, 1e-05
    %v51 = vrsqrt.pop %v49
    %v52 = vrsqrt.pop %v50
    %v53 = vmul.f32 %v38, %v51
    %v54 = vmul.f32 %v39, %v52
    %v55 = vld [vmem:[%s1] sm:$0x1]
    %v57 = vlaneseq
    %v58 = vshrl.u32 %v57, 7
    %v59 = vsub.s32 0, %v58
    %v60 = vrot.slane %v55, %v59
    %v62 = vmul.f32 %v53, %v60
    %v63 = vmul.f32 %v54, %v60
    %v64 = vld [vmem:[%s2] sm:$0x1]
    %v66 = vlaneseq
    %v67 = vshrl.u32 %v66, 7
    %v68 = vsub.s32 0, %v67
    %v69 = vrot.slane %v64, %v68
    %v71 = vadd.f32 %v62, %v69
    %v72 = vadd.f32 %v63, %v69
    %v73 = vpack.c.bf16 %v72, %v71
    %v75 = vunpack.c.l.b16 %v73
    %v76 = vunpack.c.h.b16 %v73
    %v77 = vpack.c.b16 %v75, %v75
    %v78 = vpack.c.b16 %v76, %v76
    %81 = vst [vmem:[#allocation2] sm:$0xf] %v77
    %82 = vst [vmem:[#allocation2 + $0x4] sm:$0x1] %v78
  $region25: #{clip_vision_encoder.18} parent=0 // pred_fallthru
    _
  %v83 = vld [vmem:[#allocation2] sm:$0xf]
  %v84 = vld [vmem:[#allocation2 + $0x4] sm:$0x1]
  %v85 = vld [vmem:[%s3] sm:$0xff]
  %v86 = vld [vmem:[%s3 + $0x8] sm:$0xff]
  %v87 = vld [vmem:[%s3 + $0x10] sm:$0xff]
  %v88 = vld [vmem:[%s3 + $0x18] sm:$0xff]
  %v89 = vld [vmem:[%s3 + $0x20] sm:$0xff]
  %v90 = vld [vmem:[%s3 + $0x28] sm:$0xff]
  %v91 = vld [vmem:[%s3 + $0x30] sm:$0xff]
  %v92 = vld [vmem:[%s3 + $0x38] sm:$0xff]
  %v93 = vld [vmem:[%s3 + $0x40] sm:$0xff]
  %v94 = vld [vmem:[%s3 + $0x48] sm:$0xff]
  %v95 = vld [vmem:[%s3 + $0x50] sm:$0xff]
  %v96 = vld [vmem:[%s3 + $0x58] sm:$0xff]
  %v97 = vld [vmem:[%s3 + $0x60] sm:$0xff]
  %v98 = vld [vmem:[%s3 + $0x68] sm:$0xff]
  %v99 = vld [vmem:[%s3 + $0x70] sm:$0xff]
  %v100 = vld [vmem:[%s3 + $0x78] sm:$0xff]
  %v101 = vld [vmem:[%s4] sm:$0x3]
  %v103 = vlaneseq
  %v104 = vshrl.u32 %v103, 7
  %v105 = vsub.s32 0, %v104
  %v106 = vrot.slane %v101, %v105
  %v107 = vlaneseq
  %v108 = vshrl.u32 %v107, 7
  %v109 = vsub.s32 1, %v108
  %v110 = vrot.slane %v101, %v109
  %v115 = vunpack.c.l.b16 %v83
  %v116 = vunpack.c.l.b16 %v84
  %v117 = vpack.c.b16 %v116, %v115
  %v135 = vunpack.c.l.b16 %v85
  %v136 = vunpack.c.h.b16 %v85
  %v137 = vunpack.c.l.b16 %v86
  %v138 = vunpack.c.h.b16 %v86
  %v139 = vunpack.c.l.b16 %v87
  %v140 = vunpack.c.h.b16 %v87
  %v141 = vunpack.c.l.b16 %v88
  %v142 = vunpack.c.h.b16 %v88
  %v143 = vunpack.c.l.b16 %v89
  %v144 = vunpack.c.h.b16 %v89
  %v145 = vunpack.c.l.b16 %v90
  %v146 = vunpack.c.h.b16 %v90
  %v147 = vunpack.c.l.b16 %v91
  %v148 = vunpack.c.h.b16 %v91
  %v149 = vunpack.c.l.b16 %v92
  %v150 = vunpack.c.h.b16 %v92
  %v151 = vunpack.c.l.b16 %v93
  %v152 = vunpack.c.h.b16 %v93
  %v153 = vunpack.c.l.b16 %v94
  %v154 = vunpack.c.h.b16 %v94
  %v155 = vunpack.c.l.b16 %v95
  %v156 = vunpack.c.h.b16 %v95
  %v157 = vunpack.c.l.b16 %v96
  %v158 = vunpack.c.h.b16 %v96
  %v159 = vunpack.c.l.b16 %v97
  %v160 = vunpack.c.h.b16 %v97
  %v161 = vunpack.c.l.b16 %v98
  %v162 = vunpack.c.h.b16 %v98
  %v163 = vunpack.c.l.b16 %v99
  %v164 = vunpack.c.h.b16 %v99
  %v165 = vunpack.c.l.b16 %v100
  %v166 = vunpack.c.h.b16 %v100
  %v167 = vpack.c.b16 %v137, %v135
  %v168 = vpack.c.b16 %v138, %v136
  %v169 = vpack.c.b16 %v141, %v139
  %v170 = vpack.c.b16 %v142, %v140
  %v171 = vpack.c.b16 %v145, %v143
  %v172 = vpack.c.b16 %v146, %v144
  %v173 = vpack.c.b16 %v149, %v147
  %v174 = vpack.c.b16 %v150, %v148
  %v175 = vpack.c.b16 %v153, %v151
  %v176 = vpack.c.b16 %v154, %v152
  %v177 = vpack.c.b16 %v157, %v155
  %v178 = vpack.c.b16 %v158, %v156
  %v179 = vpack.c.b16 %v161, %v159
  %v180 = vpack.c.b16 %v162, %v160
  %v181 = vpack.c.b16 %v165, %v163
  %v182 = vpack.c.b16 %v166, %v164
  %199 = vmatprep.subr.bf16.mxu0 %v182
  %200 = vmatpush1.bf16.msra.mxu0 %v181
  %201 = vmatprep.subr.bf16.mxu0 %v180
  %202 = vmatpush1.bf16.msra.mxu0 %v179
  %203 = vmatprep.subr.bf16.mxu0 %v178
  %204 = vmatpush1.bf16.msra.mxu0 %v177
  %205 = vmatprep.subr.bf16.mxu0 %v176
  %206 = vmatpush1.bf16.msra.mxu0 %v175
  %207 = vmatprep.subr.bf16.mxu0 %v174
  %208 = vmatpush1.bf16.msra.mxu0 %v173
  %209 = vmatprep.subr.bf16.mxu0 %v172
  %210 = vmatpush1.bf16.msra.mxu0 %v171
  %211 = vmatprep.subr.bf16.mxu0 %v170
  %212 = vmatpush1.bf16.msra.mxu0 %v169
  %213 = vmatprep.subr.bf16.mxu0 %v168
  %214 = vmatpush1.bf16.msra.mxu0 %v167
  %215 = vmatprep.subr.bf16.mxu0 0
  %216 = vmatpush2.bf16.msra.mxu0 0
  %217 = vmatprep.subr.bf16.mxu0 0
  %218 = vmatpush2.bf16.msra.mxu0 0
  %219 = vmatprep.subr.bf16.mxu0 0
  %220 = vmatpush2.bf16.msra.mxu0 0
  %221 = vmatprep.subr.bf16.mxu0 0
  %222 = vmatpush2.bf16.msra.mxu0 0
  %223 = vmatprep.subr.bf16.mxu0 0
  %224 = vmatpush2.bf16.msra.mxu0 0
  %225 = vmatprep.subr.bf16.mxu0 0
  %226 = vmatpush2.bf16.msra.mxu0 0
  %227 = vmatprep.subr.bf16.mxu0 0
  %228 = vmatpush2.bf16.msra.mxu0 0
  %229 = vmatprep.subr.bf16.mxu0 0
  %230 = vmatpush2.bf16.msra.mxu0 0
  %231 = vmatprep.mubr.bf16.mxu0 0
  %232 = vmatmul.mubr.bf16.gmra.mxu0 %v117
  %v233 = vpop.f32.mrf.mxu0
  %v234 = vadd.f32 %v106, %v233
  %v235 = vpop.f32.mrf.mxu0
  %v236 = vadd.f32 %v110, %v235
  %v237 = vpop.f32.mrf.mxu0
  %v238 = vadd.f32 %v106, %v237
  %v239 = vpop.f32.mrf.mxu0
  %v240 = vadd.f32 %v110, %v239
  %241 = vdwg.mxu0
  %v242 = vpack.c.bf16 %v238, %v234
  %v243 = vpack.c.bf16 %v240, %v236
  %v244 = vmul.bf16 %v242, 1071267802
  %v245 = vmul.bf16 %v243, 1071267802
  %v246 = vxor.u32 %v244, 2147516416
  %v247 = vxor.u32 %v245, 2147516416
  %v249 = vmul.bf16 %v246, 1069105081
  %v250 = vpow.bf16.pop %v249
  %v252 = vmul.bf16 %v247, 1069105081
  %v253 = vpow.bf16.pop %v252
  %v254 = vadd.bf16 %v250, 1065369472
  %v255 = vadd.bf16 %v253, 1065369472
  %v256 = vrcp.bf16.pop %v254
  %v257 = vmul.bf16 1065369472, %v256
  %v258 = vrcp.bf16.pop %v255
  %v259 = vmul.bf16 1065369472, %v258
  %v260 = vmul.bf16 %v242, %v257
  %v261 = vmul.bf16 %v243, %v259
  %v264 = vunpack.c.l.b16 %v260
  %v265 = vunpack.c.l.b16 %v261
  %v266 = vunpack.c.h.b16 %v260
  %v267 = vunpack.c.h.b16 %v261
  %v268 = vpack.c.b16 %v265, %v264
  %v269 = vpack.c.b16 %v267, %v266
  %272 = vst [vmem:[%s5] sm:$0xff] %v268
  %273 = vst [vmem:[%s5 + $0x8] sm:$0x11] %v269
  // Predicated region
  $region26: #{clip_vision_encoder.18} parent=0 // pred_check
    _
  $region27: #{clip_vision_encoder.18} parent=0 // pred_check_branch
    %275 = sbr.rel (0) target = $region29
  $region28: #{clip_vision_encoder.18} parent=0 // pred_region
    _
  $region29: #{clip_vision_encoder.18} parent=0 // pred_fallthru
    _
  // Predicated region
  $region30: #{clip_vision_encoder.18} parent=0 // pred_check
    _
  $region31: #{clip_vision_encoder.18} parent=0 // pred_check_branch
    %277 = sbr.rel (0) target = $region33
  $region32: #{clip_vision_encoder.18} parent=0 // pred_region
    _
  $region33: #{clip_vision_encoder.18} parent=0 // pred_fallthru
    _

// kernel: clip_vision_encoder.19
$region0: #{clip_vision_encoder.19}
  #allocation0 [shape = 'u32[]', space=smem, size = 0x4, offset = 0x4, fixed_abs, tag = 'smem constant byte address 0x4 - core index']
  #allocation1 [shape = 'u32[144,128]{1,0:T(1,128)}', space=vmem, size = 0x12000, scoped, tag = 'internal scratch']
  #allocation2 [shape = 'f32[10,128]{1,0:T(8,128)}', space=vmem, size = 0x2000, scoped, tag = 'scratch operand']
  %s0 = inlined_call_operand.vmem [shape: bf16[10,256], index: 0, kind: input, shape index: {}]
  %s1 = inlined_call_operand.vmem [shape: bf16[256,128], index: 1, kind: input, shape index: {}]
  %s2 = inlined_call_operand.vmem [shape: f32[1,128], index: 2, kind: input, shape index: {}]
  %s3 = inlined_call_operand.vmem [shape: f32[10,128], index: 3, kind: input, shape index: {}]
  %s4 = inlined_call_operand.vmem [shape: f32[10,128], index: 4, kind: output, shape index: {}]
  %s5 = sld [smem:[#allocation0]]
  $region34: #{clip_vision_encoder.19} parent=0
    _
  %s7 = ssub.s32 1, %s5
  %s8 = scalar_select 0, %s7, %s5
  // Predicated region
  $region2: #{clip_vision_encoder.19} parent=0 // pred_check
    _
  $region3: #{clip_vision_encoder.19} parent=0 // pred_check_branch
    %10 = sbr.rel (0) target = $region5
  $region4: #{clip_vision_encoder.19} parent=0 // pred_region
    _
  $region5: #{clip_vision_encoder.19} parent=0 // pred_fallthru
    _
  // Predicated region
  $region6: #{clip_vision_encoder.19} parent=0 // pred_check
    _
  $region7: #{clip_vision_encoder.19} parent=0 // pred_check_branch
    %12 = sbr.rel (0) target = $region9
  $region8: #{clip_vision_encoder.19} parent=0 // pred_region
    _
  $region9: #{clip_vision_encoder.19} parent=0 // pred_fallthru
    _
  // Predicated region
  $region10: #{clip_vision_encoder.19} parent=0 // pred_check
    _
  $region11: #{clip_vision_encoder.19} parent=0 // pred_check_branch
    %14 = sbr.rel (0) target = $region13
  $region12: #{clip_vision_encoder.19} parent=0 // pred_region
    _
  $region13: #{clip_vision_encoder.19} parent=0 // pred_fallthru
    _
  // Predicated region
  $region14: #{clip_vision_encoder.19} parent=0 // pred_check
    _
  $region15: #{clip_vision_encoder.19} parent=0 // pred_check_branch
    %16 = sbr.rel (0) target = $region17
  $region16: #{clip_vision_encoder.19} parent=0 // pred_region
    _
  $region17: #{clip_vision_encoder.19} parent=0 // pred_fallthru
    _
  %p18 = scmp.eq.s32.totalorder 0, 0
  // Predicated region
  $region18: #{clip_vision_encoder.19} parent=0 // pred_check
    %p19 = pneg %p18
  $region19: #{clip_vision_encoder.19} parent=0 // pred_check_branch
    %21 = sbr.rel (%p19) target = $region21
  $region20: #{clip_vision_encoder.19} parent=0 // pred_region
    %22 = vst [vmem:[#allocation2] sm:$0xff] 0.0
    %23 = vst [vmem:[#allocation2 + $0x8] sm:$0x3] 0.0
  $region21: #{clip_vision_encoder.19} parent=0 // pred_fallthru
    _
  %v24 = vld [vmem:[#allocation2] sm:$0xff]
  %v25 = vld [vmem:[#allocation2 + $0x8] sm:$0x3]
  %v26 = vld [vmem:[%s0] sm:$0xff]
  %v27 = vld [vmem:[%s0 + $0x8] sm:$0x11]
  %v28 = vld [vmem:[%s1] sm:$0xf]
  %v29 = vld [vmem:[%s1 + $0x4] sm:$0xf]
  %v30 = vld [vmem:[%s1 + $0x8] sm:$0xf]
  %v31 = vld [vmem:[%s1 + $0xc] sm:$0xf]
  %v32 = vld [vmem:[%s1 + $0x10] sm:$0xf]
  %v33 = vld [vmem:[%s1 + $0x14] sm:$0xf]
  %v34 = vld [vmem:[%s1 + $0x18] sm:$0xf]
  %v35 = vld [vmem:[%s1 + $0x1c] sm:$0xf]
  %v36 = vld [vmem:[%s1 + $0x20] sm:$0xf]
  %v37 = vld [vmem:[%s1 + $0x24] sm:$0xf]
  %v38 = vld [vmem:[%s1 + $0x28] sm:$0xf]
  %v39 = vld [vmem:[%s1 + $0x2c] sm:$0xf]
  %v40 = vld [vmem:[%s1 + $0x30] sm:$0xf]
  %v41 = vld [vmem:[%s1 + $0x34] sm:$0xf]
  %v42 = vld [vmem:[%s1 + $0x38] sm:$0xf]
  %v43 = vld [vmem:[%s1 + $0x3c] sm:$0xf]
  %v44 = vld [vmem:[%s1 + $0x40] sm:$0xf]
  %v45 = vld [vmem:[%s1 + $0x44] sm:$0xf]
  %v46 = vld [vmem:[%s1 + $0x48] sm:$0xf]
  %v47 = vld [vmem:[%s1 + $0x4c] sm:$0xf]
  %v48 = vld [vmem:[%s1 + $0x50] sm:$0xf]
  %v49 = vld [vmem:[%s1 + $0x54] sm:$0xf]
  %v50 = vld [vmem:[%s1 + $0x58] sm:$0xf]
  %v51 = vld [vmem:[%s1 + $0x5c] sm:$0xf]
  %v52 = vld [vmem:[%s1 + $0x60] sm:$0xf]
  %v53 = vld [vmem:[%s1 + $0x64] sm:$0xf]
  %v54 = vld [vmem:[%s1 + $0x68] sm:$0xf]
  %v55 = vld [vmem:[%s1 + $0x6c] sm:$0xf]
  %v56 = vld [vmem:[%s1 + $0x70] sm:$0xf]
  %v57 = vld [vmem:[%s1 + $0x74] sm:$0xf]
  %v58 = vld [vmem:[%s1 + $0x78] sm:$0xf]
  %v59 = vld [vmem:[%s1 + $0x7c] sm:$0xf]
  %v62 = vunpack.c.l.b16 %v26
  %v63 = vunpack.c.h.b16 %v26
  %v64 = vunpack.c.l.b16 %v27
  %v65 = vunpack.c.h.b16 %v27
  %v66 = vpack.c.b16 %v64, %v62
  %v67 = vpack.c.b16 %v65, %v63
  %v102 = vunpack.c.l.b16 %v28
  %v103 = vunpack.c.l.b16 %v29
  %v104 = vunpack.c.l.b16 %v30
  %v105 = vunpack.c.l.b16 %v31
  %v106 = vunpack.c.l.b16 %v32
  %v107 = vunpack.c.l.b16 %v33
  %v108 = vunpack.c.l.b16 %v34
  %v109 = vunpack.c.l.b16 %v35
  %v110 = vunpack.c.l.b16 %v36
  %v111 = vunpack.c.l.b16 %v37
  %v112 = vunpack.c.l.b16 %v38
  %v113 = vunpack.c.l.b16 %v39
  %v114 = vunpack.c.l.b16 %v40
  %v115 = vunpack.c.l.b16 %v41
  %v116 = vunpack.c.l.b16 %v42
  %v117 = vunpack.c.l.b16 %v43
  %v118 = vunpack.c.l.b16 %v44
  %v119 = vunpack.c.l.b16 %v45
  %v120 = vunpack.c.l.b16 %v46
  %v121 = vunpack.c.l.b16 %v47
  %v122 = vunpack.c.l.b16 %v48
  %v123 = vunpack.c.l.b16 %v49
  %v124 = vunpack.c.l.b16 %v50
  %v125 = vunpack.c.l.b16 %v51
  %v126 = vunpack.c.l.b16 %v52
  %v127 = vunpack.c.l.b16 %v53
  %v128 = vunpack.c.l.b16 %v54
  %v129 = vunpack.c.l.b16 %v55
  %v130 = vunpack.c.l.b16 %v56
  %v131 = vunpack.c.l.b16 %v57
  %v132 = vunpack.c.l.b16 %v58
  %v133 = vunpack.c.l.b16 %v59
  %v134 = vpack.c.b16 %v103, %v102
  %v135 = vpack.c.b16 %v105, %v104
  %v136 = vpack.c.b16 %v107, %v106
  %v137 = vpack.c.b16 %v109, %v108
  %v138 = vpack.c.b16 %v111, %v110
  %v139 = vpack.c.b16 %v113, %v112
  %v140 = vpack.c.b16 %v115, %v114
  %v141 = vpack.c.b16 %v117, %v116
  %v142 = vpack.c.b16 %v119, %v118
  %v143 = vpack.c.b16 %v121, %v120
  %v144 = vpack.c.b16 %v123, %v122
  %v145 = vpack.c.b16 %v125, %v124
  %v146 = vpack.c.b16 %v127, %v126
  %v147 = vpack.c.b16 %v129, %v128
  %v148 = vpack.c.b16 %v131, %v130
  %v149 = vpack.c.b16 %v133, %v132
  %166 = vmatprep.subr.bf16.mxu0 0
  %167 = vmatpush1.bf16.msra.mxu0 %v141
  %168 = vmatprep.subr.bf16.mxu0 0
  %169 = vmatpush1.bf16.msra.mxu0 %v140
  %170 = vmatprep.subr.bf16.mxu0 0
  %171 = vmatpush1.bf16.msra.mxu0 %v139
  %172 = vmatprep.subr.bf16.mxu0 0
  %173 = vmatpush1.bf16.msra.mxu0 %v138
  %174 = vmatprep.subr.bf16.mxu0 0
  %175 = vmatpush1.bf16.msra.mxu0 %v137
  %176 = vmatprep.subr.bf16.mxu0 0
  %177 = vmatpush1.bf16.msra.mxu0 %v136
  %178 = vmatprep.subr.bf16.mxu0 0
  %179 = vmatpush1.bf16.msra.mxu0 %v135
  %180 = vmatprep.subr.bf16.mxu0 0
  %181 = vmatpush1.bf16.msra.mxu0 %v134
  %182 = vmatprep.subr.bf16.mxu0 0
  %183 = vmatpush2.bf16.msra.mxu0 %v149
  %184 = vmatprep.subr.bf16.mxu0 0
  %185 = vmatpush2.bf16.msra.mxu0 %v148
  %186 = vmatprep.subr.bf16.mxu0 0
  %187 = vmatpush2.bf16.msra.mxu0 %v147
  %188 = vmatprep.subr.bf16.mxu0 0
  %189 = vmatpush2.bf16.msra.mxu0 %v146
  %190 = vmatprep.subr.bf16.mxu0 0
  %191 = vmatpush2.bf16.msra.mxu0 %v145
  %192 = vmatprep.subr.bf16.mxu0 0
  %193 = vmatpush2.bf16.msra.mxu0 %v144
  %194 = vmatprep.subr.bf16.mxu0 0
  %195 = vmatpush2.bf16.msra.mxu0 %v143
  %196 = vmatprep.subr.bf16.mxu0 0
  %197 = vmatpush2.bf16.msra.mxu0 %v142
  %198 = vmatprep.mubr.bf16.mxu0 %v67
  %199 = vmatmul.mubr.bf16.gmra.mxu0 %v66
  %v200 = vpop.f32.mrf.mxu0
  %v201 = vadd.f32 0.0, %v200
  %v202 = vpop.f32.mrf.mxu0
  %v203 = vpop.f32.mrf.mxu0
  %v204 = vadd.f32 0.0, %v203
  %v205 = vpop.f32.mrf.mxu0
  %206 = vdwg.mxu0
  %v207 = vadd.f32 %v24, %v201
  %v208 = vadd.f32 %v25, %v204
  %209 = vst [vmem:[#allocation2] sm:$0xff] %v207
  %210 = vst [vmem:[#allocation2 + $0x8] sm:$0x3] %v208
  // Predicated region
  $region22: #{clip_vision_encoder.19} parent=0 // pred_check
    %p211 = pneg %p18
  $region23: #{clip_vision_encoder.19} parent=0 // pred_check_branch
    %213 = sbr.rel (%p211) target = $region25
  $region24: #{clip_vision_encoder.19} parent=0 // pred_region
    %v214 = vld [vmem:[#allocation2] sm:$0xff]
    %v215 = vld [vmem:[#allocation2 + $0x8] sm:$0x3]
    %v216 = vld [vmem:[%s2] sm:$0x1]
    %v218 = vlaneseq
    %v219 = vshrl.u32 %v218, 7
    %v220 = vsub.s32 0, %v219
    %v221 = vrot.slane %v216, %v220
    %v223 = vadd.f32 %v214, %v221
    %v224 = vadd.f32 %v215, %v221
    %v225 = vld [vmem:[%s3] sm:$0xff]
    %v226 = vld [vmem:[%s3 + $0x8] sm:$0x3]
    %v227 = vadd.f32 %v223, %v225
    %v228 = vadd.f32 %v224, %v226
    %229 = vst [vmem:[%s4] sm:$0xff] %v227
    %230 = vst [vmem:[%s4 + $0x8] sm:$0x3] %v228
  $region25: #{clip_vision_encoder.19} parent=0 // pred_fallthru
    _
  // Predicated region
  $region26: #{clip_vision_encoder.19} parent=0 // pred_check
    _
  $region27: #{clip_vision_encoder.19} parent=0 // pred_check_branch
    %232 = sbr.rel (0) target = $region29
  $region28: #{clip_vision_encoder.19} parent=0 // pred_region
    _
  $region29: #{clip_vision_encoder.19} parent=0 // pred_fallthru
    _
  // Predicated region
  $region30: #{clip_vision_encoder.19} parent=0 // pred_check
    _
  $region31: #{clip_vision_encoder.19} parent=0 // pred_check_branch
    %234 = sbr.rel (0) target = $region33
  $region32: #{clip_vision_encoder.19} parent=0 // pred_region
    _
  $region33: #{clip_vision_encoder.19} parent=0 // pred_fallthru
    _

// kernel: clip_vision_encoder.25
$region0: #{clip_vision_encoder.25}
  #allocation0 [shape = 'u32[]', space=smem, size = 0x4, offset = 0x4, fixed_abs, tag = 'smem constant byte address 0x4 - core index']
  #allocation1 [shape = 'u32[144,128]{1,0:T(1,128)}', space=vmem, size = 0x12000, scoped, tag = 'internal scratch']
  %s0 = inlined_call_operand.vmem [shape: f32[2,128], index: 0, kind: input, shape index: {}]
  %s1 = inlined_call_operand.vmem [shape: f32[1,128], index: 1, kind: input, shape index: {}]
  %s2 = inlined_call_operand.vmem [shape: f32[1,128], index: 2, kind: input, shape index: {}]
  %s3 = inlined_call_operand.hbm [shape: f32[2,128], index: 3, kind: output, shape index: {}]
  %s4 = sld [smem:[#allocation0]]
  $region22: #{clip_vision_encoder.25} parent=0
    _
  %s6 = ssub.s32 1, %s4
  %s7 = scalar_select 0, %s6, %s4
  $region1: #{clip_vision_encoder.25} parent=0
    #allocation2 [shape = 'u8[1024]{0}', space=vmem, size = 0x400, scoped, tag = 'output window, operand 0, single buffered']
    #allocation3 [shape = 's32[1]{0}', space=sflag, size = 0x4, scoped, tag = 'scoped memory for clip_vision_encoder.25']
    %8 = vsyncpa [#allocation3], 0
    // Predicated region
    $region2: #{clip_vision_encoder.25} parent=1 // pred_check
      _
    $region3: #{clip_vision_encoder.25} parent=1 // pred_check_branch
      %10 = sbr.rel (0) target = $region5
    $region4: #{clip_vision_encoder.25} parent=1 // pred_region
      _
    $region5: #{clip_vision_encoder.25} parent=1 // pred_fallthru
      _
    // Predicated region
    $region6: #{clip_vision_encoder.25} parent=1 // pred_check
      _
    $region7: #{clip_vision_encoder.25} parent=1 // pred_check_branch
      %12 = sbr.rel (0) target = $region9
    $region8: #{clip_vision_encoder.25} parent=1 // pred_region
      _
    $region9: #{clip_vision_encoder.25} parent=1 // pred_fallthru
      _
    // Predicated region
    $region10: #{clip_vision_encoder.25} parent=1 // pred_check
      _
    $region11: #{clip_vision_encoder.25} parent=1 // pred_check_branch
      %14 = sbr.rel (0) target = $region13
    $region12: #{clip_vision_encoder.25} parent=1 // pred_region
      _
    $region13: #{clip_vision_encoder.25} parent=1 // pred_fallthru
      _
    %v15 = vld [vmem:[%s0] sm:$0x3]
    %vm16 = vcmask 1041408
    %v17 = vsel %vm16, %v15, 0.0
    %18 = vadd.xlane.f32.xlu0 %v17
    %v19 = vpop.xlane.xlu0 %18
    %v20 = vrcp.pop 128.0
    %v21 = vmul.f32 %v19, %v20
    %v22 = vsub.f32 %v15, %v21
    %v23 = vmul.f32 %v22, %v22
    %v24 = vsel %vm16, %v23, 0.0
    %25 = vadd.xlane.f32.xlu0 %v24
    %v26 = vpop.xlane.xlu0 %25
    %v27 = vmul.f32 %v26, %v20
    %v28 = vadd.f32 %v27, 1e-05
    %v29 = vrsqrt.pop %v28
    %v30 = vmul.f32 %v22, %v29
    %v31 = vld [vmem:[%s1] sm:$0x1]
    %v33 = vlaneseq
    %v34 = vshrl.u32 %v33, 7
    %v35 = vsub.s32 0, %v34
    %v36 = vrot.slane %v31, %v35
    %v38 = vmul.f32 %v30, %v36
    %v39 = vld [vmem:[%s2] sm:$0x1]
    %v41 = vlaneseq
    %v42 = vshrl.u32 %v41, 7
    %v43 = vsub.s32 0, %v42
    %v44 = vrot.slane %v39, %v43
    %v46 = vadd.f32 %v38, %v44
    %47 = vst [vmem:[#allocation2] sm:$0x3] %v46
    // Predicated region
    $region14: #{clip_vision_encoder.25} parent=1 // pred_check
      _
    $region15: #{clip_vision_encoder.25} parent=1 // pred_check_branch
      %49 = sbr.rel (0) target = $region17
    $region16: #{clip_vision_encoder.25} parent=1 // pred_region
      %s51 = ssub.s32 32, 32
      %52 = vsyncadd [#allocation3], %s51
      %s54 = sshll.u32 [#allocation2], 4
      %s55 = int_to_ptr.vmem [resolvable:$true] %s54
      %57 = dma.vmem_to_hbm [thread:$0]  %s55, 32, %s3, [#allocation3]
    $region17: #{clip_vision_encoder.25} parent=1 // pred_fallthru
      _
    // Predicated region
    $region18: #{clip_vision_encoder.25} parent=1 // pred_check
      _
    $region19: #{clip_vision_encoder.25} parent=1 // pred_check_branch
      %59 = sbr.rel (0) target = $region21
    $region20: #{clip_vision_encoder.25} parent=1 // pred_region
      %60 = dma.done [#allocation3], 32
    $region21: #{clip_vision_encoder.25} parent=1 // pred_fallthru
      _
    %61 = vsyncpa [#allocation3], 1

</llo_original>
